<compile_context>
chip_gen: v5e
topology: v5e:2x2
jax: 0.10.0
libtpu: 0.0.40
codegen_flags: <defaults>
</compile_context>

<pallas_src>
import functools
import math

import jax
import jax.numpy as jnp
from jax import lax
from jax.experimental import pallas as pl
from jax.experimental.pallas import tpu as pltpu


# ---------------------------------------------------------------------------
# Fused SLIP loss kernel: normalize (step 0) + SimCLR CE + CLIP CE -> scalar
# ---------------------------------------------------------------------------

def _slip_loss_kernel(z1_ref, z2_ref, zi_ref, zt_ref,      # resident raw f32 [N, D]
                      out_ref,                             # SMEM (1, 1) scalar loss
                      n1_ref, n2_ref, ni_ref, nt_ref,      # VMEM bf16 [N, D] keys
                      acc_ref,                             # SMEM (2,) f32 accumulators
                      *, inv_tau, logit_scale, c, n_total, bn):
    i = pl.program_id(0)

    @pl.when(i == 0)
    def _init():
        acc_ref[0] = jnp.float32(0.0)
        acc_ref[1] = jnp.float32(0.0)
        # F.normalize(p=2, dim=1, eps=1e-12) done once for all four tensors;
        # 1/max(||x||,1e-12) == rsqrt(max(sum(x^2),1e-24)) (one EUP op).
        # Keys stored bf16 -> MXU fast path, half the resident-key VMEM.
        for src, dst in ((z1_ref, n1_ref), (z2_ref, n2_ref),
                         (zi_ref, ni_ref), (zt_ref, nt_ref)):
            x = src[...].astype(jnp.float32)
            inv = lax.rsqrt(jnp.maximum(jnp.sum(x * x, axis=-1, keepdims=True),
                                        jnp.float32(1e-24)))
            dst[...] = (x * inv).astype(jnp.bfloat16)

    row0 = pl.multiple_of(i * bn, bn)

    # Current query row block, sliced out of the resident normalized keys
    # (no duplicated row-block inputs / extra DMAs).
    n1r = n1_ref[pl.ds(row0, bn), :]
    n2r = n2_ref[pl.ds(row0, bn), :]
    nir = ni_ref[pl.ds(row0, bn), :]
    ntr = nt_ref[pl.ds(row0, bn), :]

    # Fold 1/tau (SimCLR) and exp(s) (CLIP) into the O(bn*D) query rows,
    # in f32, instead of scaling the O(bn*N) logits.
    q1f = n1r.astype(jnp.float32) * inv_tau
    q2f = n2r.astype(jnp.float32) * inv_tau
    qif = nir.astype(jnp.float32) * logit_scale
    qtf = ntr.astype(jnp.float32) * logit_scale

    # Positive logits via O(bn*D) row-wise dots (each value serves both CE
    # terms of its loss) instead of where(diag)+sum over [bn, N].
    pos12 = jnp.sum(q1f * n2r.astype(jnp.float32), axis=-1, keepdims=True)
    posit = jnp.sum(qif * ntr.astype(jnp.float32), axis=-1, keepdims=True)

    q1 = q1f.astype(jnp.bfloat16)
    q2 = q2f.astype(jnp.bfloat16)
    qi = qif.astype(jnp.bfloat16)
    qt = qtf.astype(jnp.bfloat16)

    n1f, n2f = n1_ref[...], n2_ref[...]
    nif, ntf = ni_ref[...], nt_ref[...]

    def gram(a, b):
        # a: [bn, D] bf16, b: [N, D] bf16 -> a @ b.T on the MXU, f32 accumulate.
        return lax.dot_general(a, b, (((1,), (1,)), ((), ())),
                               preferred_element_type=jnp.float32)

    # Diag mask for the current row block (global row index == column index).
    row_ids = row0 + lax.broadcasted_iota(jnp.int32, (bn, n_total), 0)
    col_ids = lax.broadcasted_iota(jnp.int32, (bn, n_total), 1)
    diag = row_ids == col_ids
    neg_big = jnp.float32(-1.0e9)

    def ce_two(lp, ls, pos):
        # Per-row CE over concat([lp, ls], axis=1); concat never materialized.
        m = jnp.maximum(jnp.max(lp, axis=-1, keepdims=True),
                        jnp.max(ls, axis=-1, keepdims=True))
        denom = (jnp.sum(jnp.exp(lp - m), axis=-1, keepdims=True) +
                 jnp.sum(jnp.exp(ls - m), axis=-1, keepdims=True))
        return m + jnp.log(denom) - pos                        # [bn, 1]

    def ce_one(lg, pos):
        m = jnp.max(lg, axis=-1, keepdims=True)
        lse = m + jnp.log(jnp.sum(jnp.exp(lg - m), axis=-1, keepdims=True))
        return lse - pos                                       # [bn, 1]

    # SimCLR: rows of z1 vs [z2 | z1-masked]; rows of z2 vs [z1 | z2-masked].
    ce1 = ce_two(gram(q1, n2f), jnp.where(diag, neg_big, gram(q1, n1f)), pos12)
    ce2 = ce_two(gram(q2, n1f), jnp.where(diag, neg_big, gram(q2, n2f)), pos12)
    # CLIP: image->text and text->image (exp(s) already folded into qi/qt).
    cei = ce_one(gram(qi, ntf), posit)
    cet = ce_one(gram(qt, nif), posit)

    acc_ref[0] += jnp.sum(ce1 + ce2)
    acc_ref[1] += jnp.sum(cei + cet)

    @pl.when(i == pl.num_programs(0) - 1)
    def _finish():
        inv_2n = jnp.float32(1.0 / (2.0 * n_total))
        simclr = acc_ref[0] * inv_2n        # == (l1 + l2) / 2 with mean-CE
        clip = acc_ref[1] * inv_2n          # == (li + lt) / 2
        out_ref[0, 0] = jnp.float32(c) * simclr * clip


def pallas_slip_loss(z1, z2, zi, zt, *, c, tau, s, block_rows=None):
    n, d = z1.shape
    assert z2.shape == (n, d) and zi.shape == (n, d) and zt.shape == (n, d)
    bn = block_rows if block_rows is not None else min(n, 256)
    assert n % bn == 0 and bn % 8 == 0, "row block must tile N, sublane aligned"

    kernel = functools.partial(
        _slip_loss_kernel,
        inv_tau=float(1.0 / tau),
        logit_scale=float(math.exp(s)),   # c / tau / s are constructor constants
        c=float(c),
        n_total=n,
        bn=bn,
    )

    full_spec = pl.BlockSpec((n, d), lambda i: (0, 0))   # resident, DMA'd once

    # VMEM budget: resident raw f32 inputs (double-buffered by the pipeline),
    # bf16 normalized-key scratch, [bn, N]/[bn, D] temporaries + headroom.
    est = (2 * 4 * n * d * 4) + (4 * n * d * 2) + (16 * bn * n * 4) + (8 * bn * d * 4)
    vmem_limit = int(min(max(est + (4 << 20), 16 << 20), 48 << 20))

    out = pl.pallas_call(
        kernel,
        grid=(n // bn,),
        in_specs=[full_spec, full_spec, full_spec, full_spec],
        out_specs=pl.BlockSpec(memory_space=pltpu.MemorySpace.SMEM),
        out_shape=jax.ShapeDtypeStruct((1, 1), jnp.float32),
        scratch_shapes=[pltpu.VMEM((n, d), jnp.bfloat16)] * 4
                      + [pltpu.SMEM((2,), jnp.float32)],
        compiler_params=pltpu.CompilerParams(
            dimension_semantics=("arbitrary",),   # carried keys + accumulator
            vmem_limit_bytes=vmem_limit),
    )(z1, z2, zi, zt)
    return out[0, 0]


# ---------------------------------------------------------------------------
# Pure-JAX reference (mirrors the intended PyTorch semantics) for validation
# ---------------------------------------------------------------------------

def _slip_loss_ref(z1, z2, zi, zt, *, c, tau, s):
    def norm(x):
        nrm = jnp.sqrt(jnp.sum(x * x, axis=-1, keepdims=True))
        return x / jnp.maximum(nrm, 1e-12)

    n1, n2, ni, nt = norm(z1), norm(z2), norm(zi), norm(zt)
    n = z1.shape[0]
    idx = jnp.arange(n)

    def ce(logits):
        lse = jax.scipy.special.logsumexp(logits, axis=1)
        return jnp.mean(lse - logits[idx, idx])

    mask = jnp.eye(n, dtype=jnp.float32) * 1.0e9
    l12 = n1 @ n2.T
    logit1 = jnp.concatenate([l12, n1 @ n1.T - mask], axis=1) / tau
    logit2 = jnp.concatenate([l12.T, n2 @ n2.T - mask], axis=1) / tau
    simclr = (ce(logit1) + ce(logit2)) / 2.0

    logit = float(math.exp(s)) * (ni @ nt.T)
    clip = (ce(logit) + ce(logit.T)) / 2.0
    return c * simclr * clip


# ---------------------------------------------------------------------------
# Demo
# ---------------------------------------------------------------------------

if __name__ == "__main__":
    N, D = 256, 128            # lane/sublane-aligned; two 128-row grid steps
    BN = 128
    C_COEF, TAU, S = 1.0, 0.1, 0.3

    key = jax.random.PRNGKey(0)
    k1, k2, k3, k4 = jax.random.split(key, 4)
    z1 = jax.random.normal(k1, (N, D), jnp.float32)
    z2 = jax.random.normal(k2, (N, D), jnp.float32)
    zi = jax.random.normal(k3, (N, D), jnp.float32)
    zt = jax.random.normal(k4, (N, D), jnp.float32)

    loss_fn = jax.jit(functools.partial(
        pallas_slip_loss, c=C_COEF, tau=TAU, s=S, block_rows=BN))
    loss = loss_fn(z1, z2, zi, zt)
    jax.block_until_ready(loss)

    ref = _slip_loss_ref(z1, z2, zi, zt, c=C_COEF, tau=TAU, s=S)
    assert loss.shape == ()
    assert bool(jnp.isfinite(loss))
    # bf16 MXU operands (f32 accumulation / LSE math) -> slightly looser
    # tolerance than a pure-f32 comparison.
    assert bool(jnp.allclose(loss, ref, rtol=1e-2, atol=1e-2)), (loss, ref)
    print("KERNEL_OK")
</pallas_src>

<mosaic_0001>
module attributes {stable_mosaic.version = 11 : i64} {
  func.func @_slip_loss_kernel(%arg0: i32, %arg1: memref<256x128xf32, #tpu.memory_space<vmem>>, %arg2: memref<256x128xf32, #tpu.memory_space<vmem>>, %arg3: memref<256x128xf32, #tpu.memory_space<vmem>>, %arg4: memref<256x128xf32, #tpu.memory_space<vmem>>, %arg5: memref<1x1xf32, #tpu.memory_space<smem>>, %arg6: memref<256x128xbf16, #tpu.memory_space<vmem>>, %arg7: memref<256x128xbf16, #tpu.memory_space<vmem>>, %arg8: memref<256x128xbf16, #tpu.memory_space<vmem>>, %arg9: memref<256x128xbf16, #tpu.memory_space<vmem>>, %arg10: memref<2xf32, #tpu.memory_space<smem>>) attributes {dimension_semantics = [#tpu.dimension_semantics<arbitrary>], iteration_bounds = array<i64: 2>, scalar_prefetch = 0 : i64, scratch_operands = 5 : i64, tpu.core_type = #tpu.core_type<tc>, window_params = [{pipeline_mode = #tpu.pipeline_mode<synchronous>, transform_indices = @transform_0, window_bounds = array<i64: 256, 128>}, {pipeline_mode = #tpu.pipeline_mode<synchronous>, transform_indices = @transform_1, window_bounds = array<i64: 256, 128>}, {pipeline_mode = #tpu.pipeline_mode<synchronous>, transform_indices = @transform_2, window_bounds = array<i64: 256, 128>}, {pipeline_mode = #tpu.pipeline_mode<synchronous>, transform_indices = @transform_3, window_bounds = array<i64: 256, 128>}, {transform_indices = @transform_4, window_bounds = array<i64: 1, 1>}]} {
    %c0_i32 = arith.constant 0 : i32
    %0 = arith.cmpi eq, %arg0, %c0_i32 : i32
    %1 = arith.extui %0 : i1 to i32
    %c0_i32_0 = arith.constant 0 : i32
    %2 = arith.cmpi ne, %1, %c0_i32_0 : i32
    scf.if %2 {
      %cst_43 = arith.constant 0.000000e+00 : f32
      %c0_44 = arith.constant 0 : index
      %133 = memref.load %arg10[%c0_44] : memref<2xf32, #tpu.memory_space<smem>>
      memref.store %cst_43, %arg10[%c0_44] : memref<2xf32, #tpu.memory_space<smem>>
      %cst_45 = arith.constant 0.000000e+00 : f32
      %c1_46 = arith.constant 1 : index
      %134 = memref.load %arg10[%c1_46] : memref<2xf32, #tpu.memory_space<smem>>
      memref.store %cst_45, %arg10[%c1_46] : memref<2xf32, #tpu.memory_space<smem>>
      %c0_47 = arith.constant 0 : index
      %c0_48 = arith.constant 0 : index
      %135 = vector.load %arg1[%c0_47, %c0_48] : memref<256x128xf32, #tpu.memory_space<vmem>>, vector<256x128xf32>
      %136 = arith.mulf %135, %135 : vector<256x128xf32>
      %cst_49 = arith.constant dense<0.000000e+00> : vector<256xf32>
      %137 = vector.multi_reduction <add>, %136, %cst_49 [1] : vector<256x128xf32> to vector<256xf32>
      %138 = vector.shape_cast %137 : vector<256xf32> to vector<256x1xf32>
      %cst_50 = arith.constant 1.000000e-24 : f32
      %139 = vector.broadcast %cst_50 : f32 to vector<256x1xf32>
      %140 = arith.maximumf %138, %139 : vector<256x1xf32>
      %141 = math.rsqrt %140 : vector<256x1xf32>
      %142 = vector.broadcast %141 : vector<256x1xf32> to vector<256x128xf32>
      %143 = arith.mulf %135, %142 : vector<256x128xf32>
      %144 = arith.truncf %143 : vector<256x128xf32> to vector<256x128xbf16>
      %c0_51 = arith.constant 0 : index
      %c0_52 = arith.constant 0 : index
      %145 = vector.load %arg6[%c0_51, %c0_52] : memref<256x128xbf16, #tpu.memory_space<vmem>>, vector<256x128xbf16>
      tpu.vector_store %arg6[%c0_51, %c0_52], %144 {strides = array<i32>} : memref<256x128xbf16, #tpu.memory_space<vmem>>, vector<256x128xbf16>,
      %c0_53 = arith.constant 0 : index
      %c0_54 = arith.constant 0 : index
      %146 = vector.load %arg2[%c0_53, %c0_54] : memref<256x128xf32, #tpu.memory_space<vmem>>, vector<256x128xf32>
      %147 = arith.mulf %146, %146 : vector<256x128xf32>
      %cst_55 = arith.constant dense<0.000000e+00> : vector<256xf32>
      %148 = vector.multi_reduction <add>, %147, %cst_55 [1] : vector<256x128xf32> to vector<256xf32>
      %149 = vector.shape_cast %148 : vector<256xf32> to vector<256x1xf32>
      %cst_56 = arith.constant 1.000000e-24 : f32
      %150 = vector.broadcast %cst_56 : f32 to vector<256x1xf32>
      %151 = arith.maximumf %149, %150 : vector<256x1xf32>
      %152 = math.rsqrt %151 : vector<256x1xf32>
      %153 = vector.broadcast %152 : vector<256x1xf32> to vector<256x128xf32>
      %154 = arith.mulf %146, %153 : vector<256x128xf32>
      %155 = arith.truncf %154 : vector<256x128xf32> to vector<256x128xbf16>
      %c0_57 = arith.constant 0 : index
      %c0_58 = arith.constant 0 : index
      %156 = vector.load %arg7[%c0_57, %c0_58] : memref<256x128xbf16, #tpu.memory_space<vmem>>, vector<256x128xbf16>
      tpu.vector_store %arg7[%c0_57, %c0_58], %155 {strides = array<i32>} : memref<256x128xbf16, #tpu.memory_space<vmem>>, vector<256x128xbf16>,
      %c0_59 = arith.constant 0 : index
      %c0_60 = arith.constant 0 : index
      %157 = vector.load %arg3[%c0_59, %c0_60] : memref<256x128xf32, #tpu.memory_space<vmem>>, vector<256x128xf32>
      %158 = arith.mulf %157, %157 : vector<256x128xf32>
      %cst_61 = arith.constant dense<0.000000e+00> : vector<256xf32>
      %159 = vector.multi_reduction <add>, %158, %cst_61 [1] : vector<256x128xf32> to vector<256xf32>
      %160 = vector.shape_cast %159 : vector<256xf32> to vector<256x1xf32>
      %cst_62 = arith.constant 1.000000e-24 : f32
      %161 = vector.broadcast %cst_62 : f32 to vector<256x1xf32>
      %162 = arith.maximumf %160, %161 : vector<256x1xf32>
      %163 = math.rsqrt %162 : vector<256x1xf32>
      %164 = vector.broadcast %163 : vector<256x1xf32> to vector<256x128xf32>
      %165 = arith.mulf %157, %164 : vector<256x128xf32>
      %166 = arith.truncf %165 : vector<256x128xf32> to vector<256x128xbf16>
      %c0_63 = arith.constant 0 : index
      %c0_64 = arith.constant 0 : index
      %167 = vector.load %arg8[%c0_63, %c0_64] : memref<256x128xbf16, #tpu.memory_space<vmem>>, vector<256x128xbf16>
      tpu.vector_store %arg8[%c0_63, %c0_64], %166 {strides = array<i32>} : memref<256x128xbf16, #tpu.memory_space<vmem>>, vector<256x128xbf16>,
      %c0_65 = arith.constant 0 : index
      %c0_66 = arith.constant 0 : index
      %168 = vector.load %arg4[%c0_65, %c0_66] : memref<256x128xf32, #tpu.memory_space<vmem>>, vector<256x128xf32>
      %169 = arith.mulf %168, %168 : vector<256x128xf32>
      %cst_67 = arith.constant dense<0.000000e+00> : vector<256xf32>
      %170 = vector.multi_reduction <add>, %169, %cst_67 [1] : vector<256x128xf32> to vector<256xf32>
      %171 = vector.shape_cast %170 : vector<256xf32> to vector<256x1xf32>
      %cst_68 = arith.constant 1.000000e-24 : f32
      %172 = vector.broadcast %cst_68 : f32 to vector<256x1xf32>
      %173 = arith.maximumf %171, %172 : vector<256x1xf32>
      %174 = math.rsqrt %173 : vector<256x1xf32>
      %175 = vector.broadcast %174 : vector<256x1xf32> to vector<256x128xf32>
      %176 = arith.mulf %168, %175 : vector<256x128xf32>
      %177 = arith.truncf %176 : vector<256x128xf32> to vector<256x128xbf16>
      %c0_69 = arith.constant 0 : index
      %c0_70 = arith.constant 0 : index
      %178 = vector.load %arg9[%c0_69, %c0_70] : memref<256x128xbf16, #tpu.memory_space<vmem>>, vector<256x128xbf16>
      tpu.vector_store %arg9[%c0_69, %c0_70], %177 {strides = array<i32>} : memref<256x128xbf16, #tpu.memory_space<vmem>>, vector<256x128xbf16>,
    } else {
    }
    %c128_i32 = arith.constant 128 : i32
    %3 = arith.muli %arg0, %c128_i32 : i32
    %4 = tpu.assume_multiple %3, 128 : i32
    %5 = arith.index_cast %4 : i32 to index
    %c0 = arith.constant 0 : index
    %6 = vector.load %arg6[%5, %c0] : memref<256x128xbf16, #tpu.memory_space<vmem>>, vector<128x128xbf16>
    %7 = arith.index_cast %4 : i32 to index
    %c0_1 = arith.constant 0 : index
    %8 = vector.load %arg7[%7, %c0_1] : memref<256x128xbf16, #tpu.memory_space<vmem>>, vector<128x128xbf16>
    %9 = arith.index_cast %4 : i32 to index
    %c0_2 = arith.constant 0 : index
    %10 = vector.load %arg8[%9, %c0_2] : memref<256x128xbf16, #tpu.memory_space<vmem>>, vector<128x128xbf16>
    %11 = arith.index_cast %4 : i32 to index
    %c0_3 = arith.constant 0 : index
    %12 = vector.load %arg9[%11, %c0_3] : memref<256x128xbf16, #tpu.memory_space<vmem>>, vector<128x128xbf16>
    %13 = arith.extf %6 : vector<128x128xbf16> to vector<128x128xf32>
    %cst = arith.constant 1.000000e+01 : f32
    %14 = vector.broadcast %cst : f32 to vector<128x128xf32>
    %15 = arith.mulf %13, %14 : vector<128x128xf32>
    %16 = arith.extf %8 : vector<128x128xbf16> to vector<128x128xf32>
    %cst_4 = arith.constant 1.000000e+01 : f32
    %17 = vector.broadcast %cst_4 : f32 to vector<128x128xf32>
    %18 = arith.mulf %16, %17 : vector<128x128xf32>
    %19 = arith.extf %10 : vector<128x128xbf16> to vector<128x128xf32>
    %cst_5 = arith.constant 1.34985876 : f32
    %20 = vector.broadcast %cst_5 : f32 to vector<128x128xf32>
    %21 = arith.mulf %19, %20 : vector<128x128xf32>
    %22 = arith.extf %12 : vector<128x128xbf16> to vector<128x128xf32>
    %cst_6 = arith.constant 1.34985876 : f32
    %23 = vector.broadcast %cst_6 : f32 to vector<128x128xf32>
    %24 = arith.mulf %22, %23 : vector<128x128xf32>
    %25 = arith.extf %8 : vector<128x128xbf16> to vector<128x128xf32>
    %26 = arith.mulf %15, %25 : vector<128x128xf32>
    %cst_7 = arith.constant dense<0.000000e+00> : vector<128xf32>
    %27 = vector.multi_reduction <add>, %26, %cst_7 [1] : vector<128x128xf32> to vector<128xf32>
    %28 = vector.shape_cast %27 : vector<128xf32> to vector<128x1xf32>
    %29 = arith.extf %12 : vector<128x128xbf16> to vector<128x128xf32>
    %30 = arith.mulf %21, %29 : vector<128x128xf32>
    %cst_8 = arith.constant dense<0.000000e+00> : vector<128xf32>
    %31 = vector.multi_reduction <add>, %30, %cst_8 [1] : vector<128x128xf32> to vector<128xf32>
    %32 = vector.shape_cast %31 : vector<128xf32> to vector<128x1xf32>
    %33 = arith.truncf %15 : vector<128x128xf32> to vector<128x128xbf16>
    %34 = arith.truncf %18 : vector<128x128xf32> to vector<128x128xbf16>
    %35 = arith.truncf %21 : vector<128x128xf32> to vector<128x128xbf16>
    %36 = arith.truncf %24 : vector<128x128xf32> to vector<128x128xbf16>
    %c0_9 = arith.constant 0 : index
    %c0_10 = arith.constant 0 : index
    %37 = vector.load %arg6[%c0_9, %c0_10] : memref<256x128xbf16, #tpu.memory_space<vmem>>, vector<256x128xbf16>
    %c0_11 = arith.constant 0 : index
    %c0_12 = arith.constant 0 : index
    %38 = vector.load %arg7[%c0_11, %c0_12] : memref<256x128xbf16, #tpu.memory_space<vmem>>, vector<256x128xbf16>
    %c0_13 = arith.constant 0 : index
    %c0_14 = arith.constant 0 : index
    %39 = vector.load %arg8[%c0_13, %c0_14] : memref<256x128xbf16, #tpu.memory_space<vmem>>, vector<256x128xbf16>
    %c0_15 = arith.constant 0 : index
    %c0_16 = arith.constant 0 : index
    %40 = vector.load %arg9[%c0_15, %c0_16] : memref<256x128xbf16, #tpu.memory_space<vmem>>, vector<256x128xbf16>
    %41 = tpu.iota {dimensions = array<i32: 0>} : vector<128x256xi32>
    %42 = vector.broadcast %4 : i32 to vector<128x256xi32>
    %43 = arith.addi %42, %41 : vector<128x256xi32>
    %44 = tpu.iota {dimensions = array<i32: 1>} : vector<128x256xi32>
    %45 = arith.cmpi eq, %43, %44 : vector<128x256xi32>
    %cst_17 = arith.constant dense<0.000000e+00> : vector<128x256xf32>
    %46 = tpu.matmul %33, %38, %cst_17 {dimension_numbers = #tpu.dot_dimension_numbers<[1], [1], [0], [0], [0, 0, 1, 0], [], []>} : vector<128x128xbf16>, vector<256x128xbf16>, vector<128x256xf32> -> vector<128x256xf32>
    %cst_18 = arith.constant dense<0.000000e+00> : vector<128x256xf32>
    %47 = tpu.matmul %33, %37, %cst_18 {dimension_numbers = #tpu.dot_dimension_numbers<[1], [1], [0], [0], [0, 0, 1, 0], [], []>} : vector<128x128xbf16>, vector<256x128xbf16>, vector<128x256xf32> -> vector<128x256xf32>
    %cst_19 = arith.constant -1.000000e+09 : f32
    %48 = vector.broadcast %cst_19 : f32 to vector<128x256xf32>
    %49 = arith.select %45, %48, %47 : vector<128x256xi1>, vector<128x256xf32>
    %cst_20 = arith.constant dense<0xFF800000> : vector<128xf32>
    %50 = vector.multi_reduction <maximumf>, %46, %cst_20 [1] : vector<128x256xf32> to vector<128xf32>
    %51 = vector.shape_cast %50 : vector<128xf32> to vector<128x1xf32>
    %cst_21 = arith.constant dense<0xFF800000> : vector<128xf32>
    %52 = vector.multi_reduction <maximumf>, %49, %cst_21 [1] : vector<128x256xf32> to vector<128xf32>
    %53 = vector.shape_cast %52 : vector<128xf32> to vector<128x1xf32>
    %54 = arith.maximumf %51, %53 : vector<128x1xf32>
    %55 = vector.broadcast %54 : vector<128x1xf32> to vector<128x256xf32>
    %56 = arith.subf %46, %55 : vector<128x256xf32>
    %57 = math.exp %56 : vector<128x256xf32>
    %cst_22 = arith.constant dense<0.000000e+00> : vector<128xf32>
    %58 = vector.multi_reduction <add>, %57, %cst_22 [1] : vector<128x256xf32> to vector<128xf32>
    %59 = vector.shape_cast %58 : vector<128xf32> to vector<128x1xf32>
    %60 = vector.broadcast %54 : vector<128x1xf32> to vector<128x256xf32>
    %61 = arith.subf %49, %60 : vector<128x256xf32>
    %62 = math.exp %61 : vector<128x256xf32>
    %cst_23 = arith.constant dense<0.000000e+00> : vector<128xf32>
    %63 = vector.multi_reduction <add>, %62, %cst_23 [1] : vector<128x256xf32> to vector<128xf32>
    %64 = vector.shape_cast %63 : vector<128xf32> to vector<128x1xf32>
    %65 = arith.addf %59, %64 : vector<128x1xf32>
    %66 = math.log %65 : vector<128x1xf32>
    %67 = arith.addf %54, %66 : vector<128x1xf32>
    %68 = arith.subf %67, %28 : vector<128x1xf32>
    %cst_24 = arith.constant dense<0.000000e+00> : vector<128x256xf32>
    %69 = tpu.matmul %34, %37, %cst_24 {dimension_numbers = #tpu.dot_dimension_numbers<[1], [1], [0], [0], [0, 0, 1, 0], [], []>} : vector<128x128xbf16>, vector<256x128xbf16>, vector<128x256xf32> -> vector<128x256xf32>
    %cst_25 = arith.constant dense<0.000000e+00> : vector<128x256xf32>
    %70 = tpu.matmul %34, %38, %cst_25 {dimension_numbers = #tpu.dot_dimension_numbers<[1], [1], [0], [0], [0, 0, 1, 0], [], []>} : vector<128x128xbf16>, vector<256x128xbf16>, vector<128x256xf32> -> vector<128x256xf32>
    %cst_26 = arith.constant -1.000000e+09 : f32
    %71 = vector.broadcast %cst_26 : f32 to vector<128x256xf32>
    %72 = arith.select %45, %71, %70 : vector<128x256xi1>, vector<128x256xf32>
    %cst_27 = arith.constant dense<0xFF800000> : vector<128xf32>
    %73 = vector.multi_reduction <maximumf>, %69, %cst_27 [1] : vector<128x256xf32> to vector<128xf32>
    %74 = vector.shape_cast %73 : vector<128xf32> to vector<128x1xf32>
    %cst_28 = arith.constant dense<0xFF800000> : vector<128xf32>
    %75 = vector.multi_reduction <maximumf>, %72, %cst_28 [1] : vector<128x256xf32> to vector<128xf32>
    %76 = vector.shape_cast %75 : vector<128xf32> to vector<128x1xf32>
    %77 = arith.maximumf %74, %76 : vector<128x1xf32>
    %78 = vector.broadcast %77 : vector<128x1xf32> to vector<128x256xf32>
    %79 = arith.subf %69, %78 : vector<128x256xf32>
    %80 = math.exp %79 : vector<128x256xf32>
    %cst_29 = arith.constant dense<0.000000e+00> : vector<128xf32>
    %81 = vector.multi_reduction <add>, %80, %cst_29 [1] : vector<128x256xf32> to vector<128xf32>
    %82 = vector.shape_cast %81 : vector<128xf32> to vector<128x1xf32>
    %83 = vector.broadcast %77 : vector<128x1xf32> to vector<128x256xf32>
    %84 = arith.subf %72, %83 : vector<128x256xf32>
    %85 = math.exp %84 : vector<128x256xf32>
    %cst_30 = arith.constant dense<0.000000e+00> : vector<128xf32>
    %86 = vector.multi_reduction <add>, %85, %cst_30 [1] : vector<128x256xf32> to vector<128xf32>
    %87 = vector.shape_cast %86 : vector<128xf32> to vector<128x1xf32>
    %88 = arith.addf %82, %87 : vector<128x1xf32>
    %89 = math.log %88 : vector<128x1xf32>
    %90 = arith.addf %77, %89 : vector<128x1xf32>
    %91 = arith.subf %90, %28 : vector<128x1xf32>
    %cst_31 = arith.constant dense<0.000000e+00> : vector<128x256xf32>
    %92 = tpu.matmul %35, %40, %cst_31 {dimension_numbers = #tpu.dot_dimension_numbers<[1], [1], [0], [0], [0, 0, 1, 0], [], []>} : vector<128x128xbf16>, vector<256x128xbf16>, vector<128x256xf32> -> vector<128x256xf32>
    %cst_32 = arith.constant dense<0xFF800000> : vector<128xf32>
    %93 = vector.multi_reduction <maximumf>, %92, %cst_32 [1] : vector<128x256xf32> to vector<128xf32>
    %94 = vector.shape_cast %93 : vector<128xf32> to vector<128x1xf32>
    %95 = vector.broadcast %94 : vector<128x1xf32> to vector<128x256xf32>
    %96 = arith.subf %92, %95 : vector<128x256xf32>
    %97 = math.exp %96 : vector<128x256xf32>
    %cst_33 = arith.constant dense<0.000000e+00> : vector<128xf32>
    %98 = vector.multi_reduction <add>, %97, %cst_33 [1] : vector<128x256xf32> to vector<128xf32>
    %99 = vector.shape_cast %98 : vector<128xf32> to vector<128x1xf32>
    %100 = math.log %99 : vector<128x1xf32>
    %101 = arith.addf %94, %100 : vector<128x1xf32>
    %102 = arith.subf %101, %32 : vector<128x1xf32>
    %cst_34 = arith.constant dense<0.000000e+00> : vector<128x256xf32>
    %103 = tpu.matmul %36, %39, %cst_34 {dimension_numbers = #tpu.dot_dimension_numbers<[1], [1], [0], [0], [0, 0, 1, 0], [], []>} : vector<128x128xbf16>, vector<256x128xbf16>, vector<128x256xf32> -> vector<128x256xf32>
    %cst_35 = arith.constant dense<0xFF800000> : vector<128xf32>
    %104 = vector.multi_reduction <maximumf>, %103, %cst_35 [1] : vector<128x256xf32> to vector<128xf32>
    %105 = vector.shape_cast %104 : vector<128xf32> to vector<128x1xf32>
    %106 = vector.broadcast %105 : vector<128x1xf32> to vector<128x256xf32>
    %107 = arith.subf %103, %106 : vector<128x256xf32>
    %108 = math.exp %107 : vector<128x256xf32>
    %cst_36 = arith.constant dense<0.000000e+00> : vector<128xf32>
    %109 = vector.multi_reduction <add>, %108, %cst_36 [1] : vector<128x256xf32> to vector<128xf32>
    %110 = vector.shape_cast %109 : vector<128xf32> to vector<128x1xf32>
    %111 = math.log %110 : vector<128x1xf32>
    %112 = arith.addf %105, %111 : vector<128x1xf32>
    %113 = arith.subf %112, %32 : vector<128x1xf32>
    %c0_37 = arith.constant 0 : index
    %114 = memref.load %arg10[%c0_37] : memref<2xf32, #tpu.memory_space<smem>>
    %115 = arith.addf %68, %91 : vector<128x1xf32>
    %116 = vector.shape_cast %115 : vector<128x1xf32> to vector<1x128x1xf32>
    %cst_38 = arith.constant dense<0.000000e+00> : vector<1xf32>
    %117 = vector.multi_reduction <add>, %116, %cst_38 [1, 2] : vector<1x128x1xf32> to vector<1xf32>
    %118 = vector.shape_cast %117 : vector<1xf32> to vector<1x1x1xf32>
    %119 = vector.extract %118[0, 0, 0] : f32 from vector<1x1x1xf32>
    %120 = arith.addf %114, %119 : f32
    %c0_39 = arith.constant 0 : index
    %121 = memref.load %arg10[%c0_39] : memref<2xf32, #tpu.memory_space<smem>>
    memref.store %120, %arg10[%c0_39] : memref<2xf32, #tpu.memory_space<smem>>
    %c1 = arith.constant 1 : index
    %122 = memref.load %arg10[%c1] : memref<2xf32, #tpu.memory_space<smem>>
    %123 = arith.addf %102, %113 : vector<128x1xf32>
    %124 = vector.shape_cast %123 : vector<128x1xf32> to vector<1x128x1xf32>
    %cst_40 = arith.constant dense<0.000000e+00> : vector<1xf32>
    %125 = vector.multi_reduction <add>, %124, %cst_40 [1, 2] : vector<1x128x1xf32> to vector<1xf32>
    %126 = vector.shape_cast %125 : vector<1xf32> to vector<1x1x1xf32>
    %127 = vector.extract %126[0, 0, 0] : f32 from vector<1x1x1xf32>
    %128 = arith.addf %122, %127 : f32
    %c1_41 = arith.constant 1 : index
    %129 = memref.load %arg10[%c1_41] : memref<2xf32, #tpu.memory_space<smem>>
    memref.store %128, %arg10[%c1_41] : memref<2xf32, #tpu.memory_space<smem>>
    %c1_i32 = arith.constant 1 : i32
    %130 = arith.cmpi eq, %arg0, %c1_i32 : i32
    %131 = arith.extui %130 : i1 to i32
    %c0_i32_42 = arith.constant 0 : i32
    %132 = arith.cmpi ne, %131, %c0_i32_42 : i32
    scf.if %132 {
      %c0_43 = arith.constant 0 : index
      %133 = memref.load %arg10[%c0_43] : memref<2xf32, #tpu.memory_space<smem>>
      %cst_44 = arith.constant 0.001953125 : f32
      %134 = arith.mulf %133, %cst_44 : f32
      %c1_45 = arith.constant 1 : index
      %135 = memref.load %arg10[%c1_45] : memref<2xf32, #tpu.memory_space<smem>>
      %cst_46 = arith.constant 0.001953125 : f32
      %136 = arith.mulf %135, %cst_46 : f32
      %cst_47 = arith.constant 1.000000e+00 : f32
      %137 = arith.mulf %cst_47, %134 : f32
      %138 = arith.mulf %137, %136 : f32
      %c0_48 = arith.constant 0 : index
      %c0_49 = arith.constant 0 : index
      %139 = memref.load %arg5[%c0_48, %c0_49] : memref<1x1xf32, #tpu.memory_space<smem>>
      memref.store %138, %arg5[%c0_48, %c0_49] : memref<1x1xf32, #tpu.memory_space<smem>>
    } else {
    }
    return
  }
  func.func @transform_0(%arg0: i32) -> (i32, i32) {
    %c0_i32 = arith.constant 0 : i32
    %c0_i32_0 = arith.constant 0 : i32
    %c0_i32_1 = arith.constant 0 : i32
    return %c0_i32, %c0_i32_0 : i32, i32
  }
  func.func @transform_1(%arg0: i32) -> (i32, i32) {
    %c0_i32 = arith.constant 0 : i32
    %c0_i32_0 = arith.constant 0 : i32
    %c0_i32_1 = arith.constant 0 : i32
    return %c0_i32, %c0_i32_0 : i32, i32
  }
  func.func @transform_2(%arg0: i32) -> (i32, i32) {
    %c0_i32 = arith.constant 0 : i32
    %c0_i32_0 = arith.constant 0 : i32
    %c0_i32_1 = arith.constant 0 : i32
    return %c0_i32, %c0_i32_0 : i32, i32
  }
  func.func @transform_3(%arg0: i32) -> (i32, i32) {
    %c0_i32 = arith.constant 0 : i32
    %c0_i32_0 = arith.constant 0 : i32
    %c0_i32_1 = arith.constant 0 : i32
    return %c0_i32, %c0_i32_0 : i32, i32
  }
  func.func @transform_4(%arg0: i32) -> (i32, i32) {
    %c0_i32 = arith.constant 0 : i32
    %c0_i32_0 = arith.constant 0 : i32
    %c0_i32_1 = arith.constant 0 : i32
    return %c0_i32, %c0_i32_0 : i32, i32
  }
}

</mosaic_0001>

<llo_original>
// kernel: pallas_slip_loss.1
$region0: #{pallas_slip_loss.1}
  #allocation0 [shape = 'u32[]', space=smem, size = 0x4, offset = 0x4, fixed_abs, tag = 'smem constant byte address 0x4 - core index']
  #allocation1 [shape = 'u32[72,128]{1,0:T(1,128)}', space=vmem, size = 0x9000, scoped, tag = 'internal scratch']
  #allocation2 [shape = 'bf16[256,128]{1,0:T(8,128)(2,1)}', space=vmem, size = 0x10000, scoped, tag = 'scratch operand']
  #allocation3 [shape = 'bf16[256,128]{1,0:T(8,128)(2,1)}', space=vmem, size = 0x10000, scoped, tag = 'scratch operand']
  #allocation4 [shape = 'bf16[256,128]{1,0:T(8,128)(2,1)}', space=vmem, size = 0x10000, scoped, tag = 'scratch operand']
  #allocation5 [shape = 'bf16[256,128]{1,0:T(8,128)(2,1)}', space=vmem, size = 0x10000, scoped, tag = 'scratch operand']
  #allocation6 [shape = 'f32[2]{0:T(128)}', space=smem, size = 0x200, scoped, tag = 'scratch operand']
  %s0 = inlined_call_operand.hbm [shape: f32[256,128], index: 0, kind: input, shape index: {}]
  %s1 = inlined_call_operand.hbm [shape: f32[256,128], index: 1, kind: input, shape index: {}]
  %s2 = inlined_call_operand.hbm [shape: f32[256,128], index: 2, kind: input, shape index: {}]
  %s3 = inlined_call_operand.hbm [shape: f32[256,128], index: 3, kind: input, shape index: {}]
  %s4 = inlined_call_operand.hbm [shape: f32[1,1], index: 4, kind: output, shape index: {}]
  %s5 = sld [smem:[#allocation0]]
  $region73: #{pallas_slip_loss.1} parent=0
    _
  %s7 = ssub.s32 1, %s5
  %s8 = scalar_select 0, %s7, %s5
  $region1: #{pallas_slip_loss.1} parent=0
    #allocation7 [shape = 'u8[131072]{0}', space=vmem, size = 0x20000, scoped, tag = 'input window, operand 0, single buffered']
    #allocation8 [shape = 's32[2]{0}', space=sflag, size = 0x8, scoped, tag = 'scoped memory for pallas_slip_loss.1']
    #allocation9 [shape = 's32[2]{0}', space=sflag, size = 0x8, scoped, tag = 'scoped memory for pallas_slip_loss.1']
    #allocation10 [shape = 'u8[131072]{0}', space=vmem, size = 0x20000, scoped, tag = 'input window, operand 1, single buffered']
    #allocation11 [shape = 's32[1]{0}', space=sflag, size = 0x4, scoped, tag = 'scoped memory for pallas_slip_loss.1']
    #allocation12 [shape = 'u8[131072]{0}', space=vmem, size = 0x20000, scoped, tag = 'input window, operand 2, single buffered']
    #allocation13 [shape = 'u8[131072]{0}', space=vmem, size = 0x20000, scoped, tag = 'input window, operand 3, single buffered']
    #allocation14 [shape = 's32[1]{0}', space=sflag, size = 0x4, scoped, tag = 'scoped memory for pallas_slip_loss.1']
    #allocation15 [shape = 'u8[512]{0}', space=smem, size = 0x200, scoped, tag = 'output window, operand 0, single buffered']
    %9 = vsyncpa [#allocation8], 0
    %10 = vsyncpa [#allocation11], 0
    %11 = vsyncpa [#allocation14], 0
    %12 = vsyncpa [#allocation9], 0
    loop: start=0, step=1, limit=4
    $region2: #{pallas_slip_loss.1} parent=1 // loop_pre_header
      _
    $region3: #{pallas_slip_loss.1} parent=1 // loop_header
      %s14 = sphi 0, %s18
      %p15 = scmp.ge.s32.totalorder %s14, 4
      %s22 = sphi 0, %s22
      %s24 = sphi 0, %s22
      %s25 = sphi 0, %s24
      %s39 = sphi 0, %s25
      %s43 = sphi 0, %s43
      %s45 = sphi 0, %s43
      %s46 = sphi 0, %s45
      %s60 = sphi 0, %s46
      %s64 = sphi 0, %s64
      %s66 = sphi 0, %s64
      %s67 = sphi 0, %s66
      %s81 = sphi 0, %s67
      %s85 = sphi 0, %s85
      %s87 = sphi 0, %s85
      %s88 = sphi 0, %s87
      %s102 = sphi 0, %s88
      %s106 = sphi 0, %s106
      %s108 = sphi 0, %s106
      %s109 = sphi 0, %s108
      %s123 = sphi 0, %s109
    $region4: #{pallas_slip_loss.1} parent=1 // loop_header_branch
      %17 = sbr.rel (%p15) target = $region8
    $region5: #{pallas_slip_loss.1} parent=1 // loop_body
      %s19 = ssub.s32 %s14, 1
      %s20 = ssub.s32 %s14, 2
      %s21 = sadd.s32 %s14, 1
      %s23 = sadd.s32 %s22, 1
      %p26 = scmp.eq.s32.totalorder %s14, 1
      %p27 = scmp.ne.s32.totalorder %s22, %s24
      %p28 = scmp.eq.s32.totalorder %s14, 0
      %p29 = por %p27, %p28
      %p30 = scmp.ne.s32.totalorder %s22, %s24
      %p31 = scmp.eq.s32.totalorder %s19, 1
      %p32 = por %p30, %p31
      %p33 = scmp.ne.s32.totalorder %s24, %s25
      %p34 = scmp.eq.s32.totalorder %s19, 0
      %p35 = por %p33, %p34
      %p36 = scmp.ne.s32.totalorder %s24, %s25
      %p37 = scmp.eq.s32.totalorder %s20, 1
      %p38 = por %p36, %p37
      %p40 = scmp.ne.s32.totalorder %s25, %s39
      %p41 = scmp.eq.s32.totalorder %s20, 0
      %p42 = por %p40, %p41
      %s44 = sadd.s32 %s43, 1
      %p47 = scmp.eq.s32.totalorder %s14, 1
      %p48 = scmp.ne.s32.totalorder %s43, %s45
      %p49 = scmp.eq.s32.totalorder %s14, 0
      %p50 = por %p48, %p49
      %p51 = scmp.ne.s32.totalorder %s43, %s45
      %p52 = scmp.eq.s32.totalorder %s19, 1
      %p53 = por %p51, %p52
      %p54 = scmp.ne.s32.totalorder %s45, %s46
      %p55 = scmp.eq.s32.totalorder %s19, 0
      %p56 = por %p54, %p55
      %p57 = scmp.ne.s32.totalorder %s45, %s46
      %p58 = scmp.eq.s32.totalorder %s20, 1
      %p59 = por %p57, %p58
      %p61 = scmp.ne.s32.totalorder %s46, %s60
      %p62 = scmp.eq.s32.totalorder %s20, 0
      %p63 = por %p61, %p62
      %s65 = sadd.s32 %s64, 1
      %p68 = scmp.eq.s32.totalorder %s14, 1
      %p69 = scmp.ne.s32.totalorder %s64, %s66
      %p70 = scmp.eq.s32.totalorder %s14, 0
      %p71 = por %p69, %p70
      %p72 = scmp.ne.s32.totalorder %s64, %s66
      %p73 = scmp.eq.s32.totalorder %s19, 1
      %p74 = por %p72, %p73
      %p75 = scmp.ne.s32.totalorder %s66, %s67
      %p76 = scmp.eq.s32.totalorder %s19, 0
      %p77 = por %p75, %p76
      %p78 = scmp.ne.s32.totalorder %s66, %s67
      %p79 = scmp.eq.s32.totalorder %s20, 1
      %p80 = por %p78, %p79
      %p82 = scmp.ne.s32.totalorder %s67, %s81
      %p83 = scmp.eq.s32.totalorder %s20, 0
      %p84 = por %p82, %p83
      %s86 = sadd.s32 %s85, 1
      %p89 = scmp.eq.s32.totalorder %s14, 1
      %p90 = scmp.ne.s32.totalorder %s85, %s87
      %p91 = scmp.eq.s32.totalorder %s14, 0
      %p92 = por %p90, %p91
      %p93 = scmp.ne.s32.totalorder %s85, %s87
      %p94 = scmp.eq.s32.totalorder %s19, 1
      %p95 = por %p93, %p94
      %p96 = scmp.ne.s32.totalorder %s87, %s88
      %p97 = scmp.eq.s32.totalorder %s19, 0
      %p98 = por %p96, %p97
      %p99 = scmp.ne.s32.totalorder %s87, %s88
      %p100 = scmp.eq.s32.totalorder %s20, 1
      %p101 = por %p99, %p100
      %p103 = scmp.ne.s32.totalorder %s88, %s102
      %p104 = scmp.eq.s32.totalorder %s20, 0
      %p105 = por %p103, %p104
      %s107 = sadd.s32 %s106, 1
      %p110 = scmp.eq.s32.totalorder %s14, 1
      %p111 = scmp.ne.s32.totalorder %s106, %s108
      %p112 = scmp.eq.s32.totalorder %s14, 0
      %p113 = por %p111, %p112
      %p114 = scmp.ne.s32.totalorder %s106, %s108
      %p115 = scmp.eq.s32.totalorder %s19, 1
      %p116 = por %p114, %p115
      %p117 = scmp.ne.s32.totalorder %s108, %s109
      %p118 = scmp.eq.s32.totalorder %s19, 0
      %p119 = por %p117, %p118
      %p120 = scmp.ne.s32.totalorder %s108, %s109
      %p121 = scmp.eq.s32.totalorder %s20, 1
      %p122 = por %p120, %p121
      %p124 = scmp.ne.s32.totalorder %s109, %s123
      %p125 = scmp.eq.s32.totalorder %s20, 0
      %p126 = por %p124, %p125
      %p127 = scmp.le.s32.totalorder 1, %s14
      %p128 = scmp.lt.s32.totalorder %s14, 3
      %p129 = pnand %p127, %p128
      %p130 = pneg %p129
      // Predicated region
      $region9: #{pallas_slip_loss.1} parent=5 // pred_check
        _
      $region10: #{pallas_slip_loss.1} parent=5 // pred_check_branch
        %132 = sbr.rel (%p129) target = $region12
      $region11: #{pallas_slip_loss.1} parent=5 // pred_region
        %s133 = ssub.s32 %s14, 1
        // Predicated region
        $region13: #{pallas_slip_loss.1} parent=11 // pred_check
          %p134 = pneg %p35
        $region14: #{pallas_slip_loss.1} parent=11 // pred_check_branch
          %136 = sbr.rel (%p134) target = $region16
        $region15: #{pallas_slip_loss.1} parent=11 // pred_region
          %138 = vsyncadd [#allocation8], 0
          %s139 = sshll.u32 %s0, 4
          %s140 = int_to_ptr.hbm [resolvable:$true] %s139
          %s141 = sshll.u32 [#allocation7], 4
          %s142 = int_to_ptr.vmem [resolvable:$true] %s141
          %147 = dma.hbm_to_vmem [thread:$0]  %s140, 4096, %s142, [#allocation8], 128, 128, 8
        $region16: #{pallas_slip_loss.1} parent=11 // pred_fallthru
          _
        // Predicated region
        $region17: #{pallas_slip_loss.1} parent=11 // pred_check
          %p148 = pneg %p56
        $region18: #{pallas_slip_loss.1} parent=11 // pred_check_branch
          %150 = sbr.rel (%p148) target = $region20
        $region19: #{pallas_slip_loss.1} parent=11 // pred_region
          %152 = vsyncadd [#allocation11], 0
          %s153 = sshll.u32 %s1, 4
          %s154 = int_to_ptr.hbm [resolvable:$true] %s153
          %s155 = sshll.u32 [#allocation10], 4
          %s156 = int_to_ptr.vmem [resolvable:$true] %s155
          %161 = dma.hbm_to_vmem [thread:$0]  %s154, 4096, %s156, [#allocation11], 128, 128, 8
        $region20: #{pallas_slip_loss.1} parent=11 // pred_fallthru
          _
        // Predicated region
        $region21: #{pallas_slip_loss.1} parent=11 // pred_check
          %p162 = pneg %p77
        $region22: #{pallas_slip_loss.1} parent=11 // pred_check_branch
          %164 = sbr.rel (%p162) target = $region24
        $region23: #{pallas_slip_loss.1} parent=11 // pred_region
          %166 = vsyncadd [#allocation11], 0
          %s167 = sshll.u32 %s2, 4
          %s168 = int_to_ptr.hbm [resolvable:$true] %s167
          %s169 = sshll.u32 [#allocation12], 4
          %s170 = int_to_ptr.vmem [resolvable:$true] %s169
          %175 = dma.hbm_to_vmem [thread:$0]  %s168, 4096, %s170, [#allocation11], 128, 128, 8
        $region24: #{pallas_slip_loss.1} parent=11 // pred_fallthru
          _
        // Predicated region
        $region25: #{pallas_slip_loss.1} parent=11 // pred_check
          %p176 = pneg %p98
        $region26: #{pallas_slip_loss.1} parent=11 // pred_check_branch
          %178 = sbr.rel (%p176) target = $region28
        $region27: #{pallas_slip_loss.1} parent=11 // pred_region
          %180 = vsyncadd [#allocation14], 0
          %s181 = sshll.u32 %s3, 4
          %s182 = int_to_ptr.hbm [resolvable:$true] %s181
          %s183 = sshll.u32 [#allocation13], 4
          %s184 = int_to_ptr.vmem [resolvable:$true] %s183
          %189 = dma.hbm_to_vmem [thread:$0]  %s182, 4096, %s184, [#allocation14], 128, 128, 8
        $region28: #{pallas_slip_loss.1} parent=11 // pred_fallthru
          _
      $region12: #{pallas_slip_loss.1} parent=5 // pred_fallthru
        _
      %p190 = scmp.lt.s32.totalorder %s14, 2
      // Predicated region
      $region29: #{pallas_slip_loss.1} parent=5 // pred_check
        %p191 = pneg %p190
      $region30: #{pallas_slip_loss.1} parent=5 // pred_check_branch
        %193 = sbr.rel (%p191) target = $region32
      $region31: #{pallas_slip_loss.1} parent=5 // pred_region
        _
      $region32: #{pallas_slip_loss.1} parent=5 // pred_fallthru
        _
      %p194 = scmp.le.s32.totalorder 1, %s14
      %p195 = scmp.lt.s32.totalorder %s14, 3
      %p196 = pnand %p194, %p195
      %p197 = pneg %p196
      // Predicated region
      $region33: #{pallas_slip_loss.1} parent=5 // pred_check
        _
      $region34: #{pallas_slip_loss.1} parent=5 // pred_check_branch
        %199 = sbr.rel (%p196) target = $region36
      $region35: #{pallas_slip_loss.1} parent=5 // pred_region
        %s200 = ssub.s32 %s14, 1
        // Predicated region
        $region37: #{pallas_slip_loss.1} parent=35 // pred_check
          %p201 = pneg %p35
        $region38: #{pallas_slip_loss.1} parent=35 // pred_check_branch
          %203 = sbr.rel (%p201) target = $region40
        $region39: #{pallas_slip_loss.1} parent=35 // pred_region
          %205 = dma.done [#allocation8], 4096
        $region40: #{pallas_slip_loss.1} parent=35 // pred_fallthru
          _
        // Predicated region
        $region41: #{pallas_slip_loss.1} parent=35 // pred_check
          %p206 = pneg %p56
        $region42: #{pallas_slip_loss.1} parent=35 // pred_check_branch
          %208 = sbr.rel (%p206) target = $region44
        $region43: #{pallas_slip_loss.1} parent=35 // pred_region
          %210 = dma.done [#allocation11], 4096
        $region44: #{pallas_slip_loss.1} parent=35 // pred_fallthru
          _
        // Predicated region
        $region45: #{pallas_slip_loss.1} parent=35 // pred_check
          %p211 = pneg %p77
        $region46: #{pallas_slip_loss.1} parent=35 // pred_check_branch
          %213 = sbr.rel (%p211) target = $region48
        $region47: #{pallas_slip_loss.1} parent=35 // pred_region
          %215 = dma.done [#allocation11], 4096
        $region48: #{pallas_slip_loss.1} parent=35 // pred_fallthru
          _
        // Predicated region
        $region49: #{pallas_slip_loss.1} parent=35 // pred_check
          %p216 = pneg %p98
        $region50: #{pallas_slip_loss.1} parent=35 // pred_check_branch
          %218 = sbr.rel (%p216) target = $region52
        $region51: #{pallas_slip_loss.1} parent=35 // pred_region
          %220 = dma.done [#allocation14], 4096
        $region52: #{pallas_slip_loss.1} parent=35 // pred_fallthru
          _
        %p221 = pneg %p35
        %p222 = pneg %p32
        %p223 = pneg %p56
        %p224 = pneg %p53
        %p225 = pneg %p77
        %p226 = pneg %p74
        %p227 = pneg %p98
        %p228 = pneg %p95
        %p229 = pneg %p119
        %p230 = pneg %p116
        %p231 = scmp.eq.s32.totalorder %s19, 0
        // Predicated region
        $region53: #{pallas_slip_loss.1} parent=35 // pred_check
          %p232 = pneg %p231
        $region54: #{pallas_slip_loss.1} parent=35 // pred_check_branch
          %234 = sbr.rel (%p232) target = $region56
        $region55: #{pallas_slip_loss.1} parent=35 // pred_region
          %s235 = scalar_lea.smem [#allocation6], 0
          %236 = sst [smem:[%s235]] 0.0
          %s237 = scalar_lea.smem [#allocation6], 1
          %238 = sst [smem:[%s237]] 0.0
          %v239 = vld [vmem:[#allocation7] sm:$0xff]
          %v240 = vld [vmem:[#allocation7 + $0x8] sm:$0xff]
          %v241 = vld [vmem:[#allocation7 + $0x10] sm:$0xff]
          %v242 = vld [vmem:[#allocation7 + $0x18] sm:$0xff]
          %v243 = vld [vmem:[#allocation7 + $0x20] sm:$0xff]
          %v244 = vld [vmem:[#allocation7 + $0x28] sm:$0xff]
          %v245 = vld [vmem:[#allocation7 + $0x30] sm:$0xff]
          %v246 = vld [vmem:[#allocation7 + $0x38] sm:$0xff]
          %v247 = vld [vmem:[#allocation7 + $0x40] sm:$0xff]
          %v248 = vld [vmem:[#allocation7 + $0x48] sm:$0xff]
          %v249 = vld [vmem:[#allocation7 + $0x50] sm:$0xff]
          %v250 = vld [vmem:[#allocation7 + $0x58] sm:$0xff]
          %v251 = vld [vmem:[#allocation7 + $0x60] sm:$0xff]
          %v252 = vld [vmem:[#allocation7 + $0x68] sm:$0xff]
          %v253 = vld [vmem:[#allocation7 + $0x70] sm:$0xff]
          %v254 = vld [vmem:[#allocation7 + $0x78] sm:$0xff]
          %v255 = vld [vmem:[#allocation7 + $0x80] sm:$0xff]
          %v256 = vld [vmem:[#allocation7 + $0x88] sm:$0xff]
          %v257 = vld [vmem:[#allocation7 + $0x90] sm:$0xff]
          %v258 = vld [vmem:[#allocation7 + $0x98] sm:$0xff]
          %v259 = vld [vmem:[#allocation7 + $0xa0] sm:$0xff]
          %v260 = vld [vmem:[#allocation7 + $0xa8] sm:$0xff]
          %v261 = vld [vmem:[#allocation7 + $0xb0] sm:$0xff]
          %v262 = vld [vmem:[#allocation7 + $0xb8] sm:$0xff]
          %v263 = vld [vmem:[#allocation7 + $0xc0] sm:$0xff]
          %v264 = vld [vmem:[#allocation7 + $0xc8] sm:$0xff]
          %v265 = vld [vmem:[#allocation7 + $0xd0] sm:$0xff]
          %v266 = vld [vmem:[#allocation7 + $0xd8] sm:$0xff]
          %v267 = vld [vmem:[#allocation7 + $0xe0] sm:$0xff]
          %v268 = vld [vmem:[#allocation7 + $0xe8] sm:$0xff]
          %v269 = vld [vmem:[#allocation7 + $0xf0] sm:$0xff]
          %v270 = vld [vmem:[#allocation7 + $0xf8] sm:$0xff]
          %v271 = vmul.f32 %v239, %v239
          %v272 = vmul.f32 %v240, %v240
          %v273 = vmul.f32 %v241, %v241
          %v274 = vmul.f32 %v242, %v242
          %v275 = vmul.f32 %v243, %v243
          %v276 = vmul.f32 %v244, %v244
          %v277 = vmul.f32 %v245, %v245
          %v278 = vmul.f32 %v246, %v246
          %v279 = vmul.f32 %v247, %v247
          %v280 = vmul.f32 %v248, %v248
          %v281 = vmul.f32 %v249, %v249
          %v282 = vmul.f32 %v250, %v250
          %v283 = vmul.f32 %v251, %v251
          %v284 = vmul.f32 %v252, %v252
          %v285 = vmul.f32 %v253, %v253
          %v286 = vmul.f32 %v254, %v254
          %v287 = vmul.f32 %v255, %v255
          %v288 = vmul.f32 %v256, %v256
          %v289 = vmul.f32 %v257, %v257
          %v290 = vmul.f32 %v258, %v258
          %v291 = vmul.f32 %v259, %v259
          %v292 = vmul.f32 %v260, %v260
          %v293 = vmul.f32 %v261, %v261
          %v294 = vmul.f32 %v262, %v262
          %v295 = vmul.f32 %v263, %v263
          %v296 = vmul.f32 %v264, %v264
          %v297 = vmul.f32 %v265, %v265
          %v298 = vmul.f32 %v266, %v266
          %v299 = vmul.f32 %v267, %v267
          %v300 = vmul.f32 %v268, %v268
          %v301 = vmul.f32 %v269, %v269
          %v302 = vmul.f32 %v270, %v270
          %303 = vadd.xlane.f32.xlu0 %v271
          %v304 = vpop.xlane.xlu0 %303
          %305 = vadd.xlane.f32.xlu0 %v272
          %v306 = vpop.xlane.xlu0 %305
          %307 = vadd.xlane.f32.xlu0 %v273
          %v308 = vpop.xlane.xlu0 %307
          %309 = vadd.xlane.f32.xlu0 %v274
          %v310 = vpop.xlane.xlu0 %309
          %311 = vadd.xlane.f32.xlu0 %v275
          %v312 = vpop.xlane.xlu0 %311
          %313 = vadd.xlane.f32.xlu0 %v276
          %v314 = vpop.xlane.xlu0 %313
          %315 = vadd.xlane.f32.xlu0 %v277
          %v316 = vpop.xlane.xlu0 %315
          %317 = vadd.xlane.f32.xlu0 %v278
          %v318 = vpop.xlane.xlu0 %317
          %319 = vadd.xlane.f32.xlu0 %v279
          %v320 = vpop.xlane.xlu0 %319
          %321 = vadd.xlane.f32.xlu0 %v280
          %v322 = vpop.xlane.xlu0 %321
          %323 = vadd.xlane.f32.xlu0 %v281
          %v324 = vpop.xlane.xlu0 %323
          %325 = vadd.xlane.f32.xlu0 %v282
          %v326 = vpop.xlane.xlu0 %325
          %327 = vadd.xlane.f32.xlu0 %v283
          %v328 = vpop.xlane.xlu0 %327
          %329 = vadd.xlane.f32.xlu0 %v284
          %v330 = vpop.xlane.xlu0 %329
          %331 = vadd.xlane.f32.xlu0 %v285
          %v332 = vpop.xlane.xlu0 %331
          %333 = vadd.xlane.f32.xlu0 %v286
          %v334 = vpop.xlane.xlu0 %333
          %335 = vadd.xlane.f32.xlu0 %v287
          %v336 = vpop.xlane.xlu0 %335
          %337 = vadd.xlane.f32.xlu0 %v288
          %v338 = vpop.xlane.xlu0 %337
          %339 = vadd.xlane.f32.xlu0 %v289
          %v340 = vpop.xlane.xlu0 %339
          %341 = vadd.xlane.f32.xlu0 %v290
          %v342 = vpop.xlane.xlu0 %341
          %343 = vadd.xlane.f32.xlu0 %v291
          %v344 = vpop.xlane.xlu0 %343
          %345 = vadd.xlane.f32.xlu0 %v292
          %v346 = vpop.xlane.xlu0 %345
          %347 = vadd.xlane.f32.xlu0 %v293
          %v348 = vpop.xlane.xlu0 %347
          %349 = vadd.xlane.f32.xlu0 %v294
          %v350 = vpop.xlane.xlu0 %349
          %351 = vadd.xlane.f32.xlu0 %v295
          %v352 = vpop.xlane.xlu0 %351
          %353 = vadd.xlane.f32.xlu0 %v296
          %v354 = vpop.xlane.xlu0 %353
          %355 = vadd.xlane.f32.xlu0 %v297
          %v356 = vpop.xlane.xlu0 %355
          %357 = vadd.xlane.f32.xlu0 %v298
          %v358 = vpop.xlane.xlu0 %357
          %359 = vadd.xlane.f32.xlu0 %v299
          %v360 = vpop.xlane.xlu0 %359
          %361 = vadd.xlane.f32.xlu0 %v300
          %v362 = vpop.xlane.xlu0 %361
          %363 = vadd.xlane.f32.xlu0 %v301
          %v364 = vpop.xlane.xlu0 %363
          %365 = vadd.xlane.f32.xlu0 %v302
          %v366 = vpop.xlane.xlu0 %365
          %v367 = vmax.f32 %v304, 1e-24
          %v368 = vmax.f32 %v306, 1e-24
          %v369 = vmax.f32 %v308, 1e-24
          %v370 = vmax.f32 %v310, 1e-24
          %v371 = vmax.f32 %v312, 1e-24
          %v372 = vmax.f32 %v314, 1e-24
          %v373 = vmax.f32 %v316, 1e-24
          %v374 = vmax.f32 %v318, 1e-24
          %v375 = vmax.f32 %v320, 1e-24
          %v376 = vmax.f32 %v322, 1e-24
          %v377 = vmax.f32 %v324, 1e-24
          %v378 = vmax.f32 %v326, 1e-24
          %v379 = vmax.f32 %v328, 1e-24
          %v380 = vmax.f32 %v330, 1e-24
          %v381 = vmax.f32 %v332, 1e-24
          %v382 = vmax.f32 %v334, 1e-24
          %v383 = vmax.f32 %v336, 1e-24
          %v384 = vmax.f32 %v338, 1e-24
          %v385 = vmax.f32 %v340, 1e-24
          %v386 = vmax.f32 %v342, 1e-24
          %v387 = vmax.f32 %v344, 1e-24
          %v388 = vmax.f32 %v346, 1e-24
          %v389 = vmax.f32 %v348, 1e-24
          %v390 = vmax.f32 %v350, 1e-24
          %v391 = vmax.f32 %v352, 1e-24
          %v392 = vmax.f32 %v354, 1e-24
          %v393 = vmax.f32 %v356, 1e-24
          %v394 = vmax.f32 %v358, 1e-24
          %v395 = vmax.f32 %v360, 1e-24
          %v396 = vmax.f32 %v362, 1e-24
          %v397 = vmax.f32 %v364, 1e-24
          %v398 = vmax.f32 %v366, 1e-24
          %v399 = vrsqrt.pop %v367
          %v400 = vmul.f32 %v399, %v367
          %v401 = vmul.f32 %v400, %v399
          %v402 = vmul.f32 0.5, %v401
          %v403 = vsub.f32 1.5, %v402
          %v404 = vmul.f32 %v399, %v403
          %vm405 = vweird.f32 %v367
          %vm406 = vweird.f32 %v399
          %vm407 = vmor %vm405, %vm406
          %v408 = vsel %vm407, %v399, %v404
          %v409 = vrsqrt.pop %v368
          %v410 = vmul.f32 %v409, %v368
          %v411 = vmul.f32 %v410, %v409
          %v412 = vmul.f32 0.5, %v411
          %v413 = vsub.f32 1.5, %v412
          %v414 = vmul.f32 %v409, %v413
          %vm415 = vweird.f32 %v368
          %vm416 = vweird.f32 %v409
          %vm417 = vmor %vm415, %vm416
          %v418 = vsel %vm417, %v409, %v414
          %v419 = vrsqrt.pop %v369
          %v420 = vmul.f32 %v419, %v369
          %v421 = vmul.f32 %v420, %v419
          %v422 = vmul.f32 0.5, %v421
          %v423 = vsub.f32 1.5, %v422
          %v424 = vmul.f32 %v419, %v423
          %vm425 = vweird.f32 %v369
          %vm426 = vweird.f32 %v419
          %vm427 = vmor %vm425, %vm426
          %v428 = vsel %vm427, %v419, %v424
          %v429 = vrsqrt.pop %v370
          %v430 = vmul.f32 %v429, %v370
          %v431 = vmul.f32 %v430, %v429
          %v432 = vmul.f32 0.5, %v431
          %v433 = vsub.f32 1.5, %v432
          %v434 = vmul.f32 %v429, %v433
          %vm435 = vweird.f32 %v370
          %vm436 = vweird.f32 %v429
          %vm437 = vmor %vm435, %vm436
          %v438 = vsel %vm437, %v429, %v434
          %v439 = vrsqrt.pop %v371
          %v440 = vmul.f32 %v439, %v371
          %v441 = vmul.f32 %v440, %v439
          %v442 = vmul.f32 0.5, %v441
          %v443 = vsub.f32 1.5, %v442
          %v444 = vmul.f32 %v439, %v443
          %vm445 = vweird.f32 %v371
          %vm446 = vweird.f32 %v439
          %vm447 = vmor %vm445, %vm446
          %v448 = vsel %vm447, %v439, %v444
          %v449 = vrsqrt.pop %v372
          %v450 = vmul.f32 %v449, %v372
          %v451 = vmul.f32 %v450, %v449
          %v452 = vmul.f32 0.5, %v451
          %v453 = vsub.f32 1.5, %v452
          %v454 = vmul.f32 %v449, %v453
          %vm455 = vweird.f32 %v372
          %vm456 = vweird.f32 %v449
          %vm457 = vmor %vm455, %vm456
          %v458 = vsel %vm457, %v449, %v454
          %v459 = vrsqrt.pop %v373
          %v460 = vmul.f32 %v459, %v373
          %v461 = vmul.f32 %v460, %v459
          %v462 = vmul.f32 0.5, %v461
          %v463 = vsub.f32 1.5, %v462
          %v464 = vmul.f32 %v459, %v463
          %vm465 = vweird.f32 %v373
          %vm466 = vweird.f32 %v459
          %vm467 = vmor %vm465, %vm466
          %v468 = vsel %vm467, %v459, %v464
          %v469 = vrsqrt.pop %v374
          %v470 = vmul.f32 %v469, %v374
          %v471 = vmul.f32 %v470, %v469
          %v472 = vmul.f32 0.5, %v471
          %v473 = vsub.f32 1.5, %v472
          %v474 = vmul.f32 %v469, %v473
          %vm475 = vweird.f32 %v374
          %vm476 = vweird.f32 %v469
          %vm477 = vmor %vm475, %vm476
          %v478 = vsel %vm477, %v469, %v474
          %v479 = vrsqrt.pop %v375
          %v480 = vmul.f32 %v479, %v375
          %v481 = vmul.f32 %v480, %v479
          %v482 = vmul.f32 0.5, %v481
          %v483 = vsub.f32 1.5, %v482
          %v484 = vmul.f32 %v479, %v483
          %vm485 = vweird.f32 %v375
          %vm486 = vweird.f32 %v479
          %vm487 = vmor %vm485, %vm486
          %v488 = vsel %vm487, %v479, %v484
          %v489 = vrsqrt.pop %v376
          %v490 = vmul.f32 %v489, %v376
          %v491 = vmul.f32 %v490, %v489
          %v492 = vmul.f32 0.5, %v491
          %v493 = vsub.f32 1.5, %v492
          %v494 = vmul.f32 %v489, %v493
          %vm495 = vweird.f32 %v376
          %vm496 = vweird.f32 %v489
          %vm497 = vmor %vm495, %vm496
          %v498 = vsel %vm497, %v489, %v494
          %v499 = vrsqrt.pop %v377
          %v500 = vmul.f32 %v499, %v377
          %v501 = vmul.f32 %v500, %v499
          %v502 = vmul.f32 0.5, %v501
          %v503 = vsub.f32 1.5, %v502
          %v504 = vmul.f32 %v499, %v503
          %vm505 = vweird.f32 %v377
          %vm506 = vweird.f32 %v499
          %vm507 = vmor %vm505, %vm506
          %v508 = vsel %vm507, %v499, %v504
          %v509 = vrsqrt.pop %v378
          %v510 = vmul.f32 %v509, %v378
          %v511 = vmul.f32 %v510, %v509
          %v512 = vmul.f32 0.5, %v511
          %v513 = vsub.f32 1.5, %v512
          %v514 = vmul.f32 %v509, %v513
          %vm515 = vweird.f32 %v378
          %vm516 = vweird.f32 %v509
          %vm517 = vmor %vm515, %vm516
          %v518 = vsel %vm517, %v509, %v514
          %v519 = vrsqrt.pop %v379
          %v520 = vmul.f32 %v519, %v379
          %v521 = vmul.f32 %v520, %v519
          %v522 = vmul.f32 0.5, %v521
          %v523 = vsub.f32 1.5, %v522
          %v524 = vmul.f32 %v519, %v523
          %vm525 = vweird.f32 %v379
          %vm526 = vweird.f32 %v519
          %vm527 = vmor %vm525, %vm526
          %v528 = vsel %vm527, %v519, %v524
          %v529 = vrsqrt.pop %v380
          %v530 = vmul.f32 %v529, %v380
          %v531 = vmul.f32 %v530, %v529
          %v532 = vmul.f32 0.5, %v531
          %v533 = vsub.f32 1.5, %v532
          %v534 = vmul.f32 %v529, %v533
          %vm535 = vweird.f32 %v380
          %vm536 = vweird.f32 %v529
          %vm537 = vmor %vm535, %vm536
          %v538 = vsel %vm537, %v529, %v534
          %v539 = vrsqrt.pop %v381
          %v540 = vmul.f32 %v539, %v381
          %v541 = vmul.f32 %v540, %v539
          %v542 = vmul.f32 0.5, %v541
          %v543 = vsub.f32 1.5, %v542
          %v544 = vmul.f32 %v539, %v543
          %vm545 = vweird.f32 %v381
          %vm546 = vweird.f32 %v539
          %vm547 = vmor %vm545, %vm546
          %v548 = vsel %vm547, %v539, %v544
          %v549 = vrsqrt.pop %v382
          %v550 = vmul.f32 %v549, %v382
          %v551 = vmul.f32 %v550, %v549
          %v552 = vmul.f32 0.5, %v551
          %v553 = vsub.f32 1.5, %v552
          %v554 = vmul.f32 %v549, %v553
          %vm555 = vweird.f32 %v382
          %vm556 = vweird.f32 %v549
          %vm557 = vmor %vm555, %vm556
          %v558 = vsel %vm557, %v549, %v554
          %v559 = vrsqrt.pop %v383
          %v560 = vmul.f32 %v559, %v383
          %v561 = vmul.f32 %v560, %v559
          %v562 = vmul.f32 0.5, %v561
          %v563 = vsub.f32 1.5, %v562
          %v564 = vmul.f32 %v559, %v563
          %vm565 = vweird.f32 %v383
          %vm566 = vweird.f32 %v559
          %vm567 = vmor %vm565, %vm566
          %v568 = vsel %vm567, %v559, %v564
          %v569 = vrsqrt.pop %v384
          %v570 = vmul.f32 %v569, %v384
          %v571 = vmul.f32 %v570, %v569
          %v572 = vmul.f32 0.5, %v571
          %v573 = vsub.f32 1.5, %v572
          %v574 = vmul.f32 %v569, %v573
          %vm575 = vweird.f32 %v384
          %vm576 = vweird.f32 %v569
          %vm577 = vmor %vm575, %vm576
          %v578 = vsel %vm577, %v569, %v574
          %v579 = vrsqrt.pop %v385
          %v580 = vmul.f32 %v579, %v385
          %v581 = vmul.f32 %v580, %v579
          %v582 = vmul.f32 0.5, %v581
          %v583 = vsub.f32 1.5, %v582
          %v584 = vmul.f32 %v579, %v583
          %vm585 = vweird.f32 %v385
          %vm586 = vweird.f32 %v579
          %vm587 = vmor %vm585, %vm586
          %v588 = vsel %vm587, %v579, %v584
          %v589 = vrsqrt.pop %v386
          %v590 = vmul.f32 %v589, %v386
          %v591 = vmul.f32 %v590, %v589
          %v592 = vmul.f32 0.5, %v591
          %v593 = vsub.f32 1.5, %v592
          %v594 = vmul.f32 %v589, %v593
          %vm595 = vweird.f32 %v386
          %vm596 = vweird.f32 %v589
          %vm597 = vmor %vm595, %vm596
          %v598 = vsel %vm597, %v589, %v594
          %v599 = vrsqrt.pop %v387
          %v600 = vmul.f32 %v599, %v387
          %v601 = vmul.f32 %v600, %v599
          %v602 = vmul.f32 0.5, %v601
          %v603 = vsub.f32 1.5, %v602
          %v604 = vmul.f32 %v599, %v603
          %vm605 = vweird.f32 %v387
          %vm606 = vweird.f32 %v599
          %vm607 = vmor %vm605, %vm606
          %v608 = vsel %vm607, %v599, %v604
          %v609 = vrsqrt.pop %v388
          %v610 = vmul.f32 %v609, %v388
          %v611 = vmul.f32 %v610, %v609
          %v612 = vmul.f32 0.5, %v611
          %v613 = vsub.f32 1.5, %v612
          %v614 = vmul.f32 %v609, %v613
          %vm615 = vweird.f32 %v388
          %vm616 = vweird.f32 %v609
          %vm617 = vmor %vm615, %vm616
          %v618 = vsel %vm617, %v609, %v614
          %v619 = vrsqrt.pop %v389
          %v620 = vmul.f32 %v619, %v389
          %v621 = vmul.f32 %v620, %v619
          %v622 = vmul.f32 0.5, %v621
          %v623 = vsub.f32 1.5, %v622
          %v624 = vmul.f32 %v619, %v623
          %vm625 = vweird.f32 %v389
          %vm626 = vweird.f32 %v619
          %vm627 = vmor %vm625, %vm626
          %v628 = vsel %vm627, %v619, %v624
          %v629 = vrsqrt.pop %v390
          %v630 = vmul.f32 %v629, %v390
          %v631 = vmul.f32 %v630, %v629
          %v632 = vmul.f32 0.5, %v631
          %v633 = vsub.f32 1.5, %v632
          %v634 = vmul.f32 %v629, %v633
          %vm635 = vweird.f32 %v390
          %vm636 = vweird.f32 %v629
          %vm637 = vmor %vm635, %vm636
          %v638 = vsel %vm637, %v629, %v634
          %v639 = vrsqrt.pop %v391
          %v640 = vmul.f32 %v639, %v391
          %v641 = vmul.f32 %v640, %v639
          %v642 = vmul.f32 0.5, %v641
          %v643 = vsub.f32 1.5, %v642
          %v644 = vmul.f32 %v639, %v643
          %vm645 = vweird.f32 %v391
          %vm646 = vweird.f32 %v639
          %vm647 = vmor %vm645, %vm646
          %v648 = vsel %vm647, %v639, %v644
          %v649 = vrsqrt.pop %v392
          %v650 = vmul.f32 %v649, %v392
          %v651 = vmul.f32 %v650, %v649
          %v652 = vmul.f32 0.5, %v651
          %v653 = vsub.f32 1.5, %v652
          %v654 = vmul.f32 %v649, %v653
          %vm655 = vweird.f32 %v392
          %vm656 = vweird.f32 %v649
          %vm657 = vmor %vm655, %vm656
          %v658 = vsel %vm657, %v649, %v654
          %v659 = vrsqrt.pop %v393
          %v660 = vmul.f32 %v659, %v393
          %v661 = vmul.f32 %v660, %v659
          %v662 = vmul.f32 0.5, %v661
          %v663 = vsub.f32 1.5, %v662
          %v664 = vmul.f32 %v659, %v663
          %vm665 = vweird.f32 %v393
          %vm666 = vweird.f32 %v659
          %vm667 = vmor %vm665, %vm666
          %v668 = vsel %vm667, %v659, %v664
          %v669 = vrsqrt.pop %v394
          %v670 = vmul.f32 %v669, %v394
          %v671 = vmul.f32 %v670, %v669
          %v672 = vmul.f32 0.5, %v671
          %v673 = vsub.f32 1.5, %v672
          %v674 = vmul.f32 %v669, %v673
          %vm675 = vweird.f32 %v394
          %vm676 = vweird.f32 %v669
          %vm677 = vmor %vm675, %vm676
          %v678 = vsel %vm677, %v669, %v674
          %v679 = vrsqrt.pop %v395
          %v680 = vmul.f32 %v679, %v395
          %v681 = vmul.f32 %v680, %v679
          %v682 = vmul.f32 0.5, %v681
          %v683 = vsub.f32 1.5, %v682
          %v684 = vmul.f32 %v679, %v683
          %vm685 = vweird.f32 %v395
          %vm686 = vweird.f32 %v679
          %vm687 = vmor %vm685, %vm686
          %v688 = vsel %vm687, %v679, %v684
          %v689 = vrsqrt.pop %v396
          %v690 = vmul.f32 %v689, %v396
          %v691 = vmul.f32 %v690, %v689
          %v692 = vmul.f32 0.5, %v691
          %v693 = vsub.f32 1.5, %v692
          %v694 = vmul.f32 %v689, %v693
          %vm695 = vweird.f32 %v396
          %vm696 = vweird.f32 %v689
          %vm697 = vmor %vm695, %vm696
          %v698 = vsel %vm697, %v689, %v694
          %v699 = vrsqrt.pop %v397
          %v700 = vmul.f32 %v699, %v397
          %v701 = vmul.f32 %v700, %v699
          %v702 = vmul.f32 0.5, %v701
          %v703 = vsub.f32 1.5, %v702
          %v704 = vmul.f32 %v699, %v703
          %vm705 = vweird.f32 %v397
          %vm706 = vweird.f32 %v699
          %vm707 = vmor %vm705, %vm706
          %v708 = vsel %vm707, %v699, %v704
          %v709 = vrsqrt.pop %v398
          %v710 = vmul.f32 %v709, %v398
          %v711 = vmul.f32 %v710, %v709
          %v712 = vmul.f32 0.5, %v711
          %v713 = vsub.f32 1.5, %v712
          %v714 = vmul.f32 %v709, %v713
          %vm715 = vweird.f32 %v398
          %vm716 = vweird.f32 %v709
          %vm717 = vmor %vm715, %vm716
          %v718 = vsel %vm717, %v709, %v714
          %v719 = vmul.f32 %v239, %v408
          %v720 = vmul.f32 %v240, %v418
          %v721 = vmul.f32 %v241, %v428
          %v722 = vmul.f32 %v242, %v438
          %v723 = vmul.f32 %v243, %v448
          %v724 = vmul.f32 %v244, %v458
          %v725 = vmul.f32 %v245, %v468
          %v726 = vmul.f32 %v246, %v478
          %v727 = vmul.f32 %v247, %v488
          %v728 = vmul.f32 %v248, %v498
          %v729 = vmul.f32 %v249, %v508
          %v730 = vmul.f32 %v250, %v518
          %v731 = vmul.f32 %v251, %v528
          %v732 = vmul.f32 %v252, %v538
          %v733 = vmul.f32 %v253, %v548
          %v734 = vmul.f32 %v254, %v558
          %v735 = vmul.f32 %v255, %v568
          %v736 = vmul.f32 %v256, %v578
          %v737 = vmul.f32 %v257, %v588
          %v738 = vmul.f32 %v258, %v598
          %v739 = vmul.f32 %v259, %v608
          %v740 = vmul.f32 %v260, %v618
          %v741 = vmul.f32 %v261, %v628
          %v742 = vmul.f32 %v262, %v638
          %v743 = vmul.f32 %v263, %v648
          %v744 = vmul.f32 %v264, %v658
          %v745 = vmul.f32 %v265, %v668
          %v746 = vmul.f32 %v266, %v678
          %v747 = vmul.f32 %v267, %v688
          %v748 = vmul.f32 %v268, %v698
          %v749 = vmul.f32 %v269, %v708
          %v750 = vmul.f32 %v270, %v718
          %v751 = vpack.c.bf16 %v719, %v719
          %v752 = vpack.c.bf16 %v720, %v720
          %v753 = vpack.c.bf16 %v721, %v721
          %v754 = vpack.c.bf16 %v722, %v722
          %v755 = vpack.c.bf16 %v723, %v723
          %v756 = vpack.c.bf16 %v724, %v724
          %v757 = vpack.c.bf16 %v725, %v725
          %v758 = vpack.c.bf16 %v726, %v726
          %v759 = vpack.c.bf16 %v727, %v727
          %v760 = vpack.c.bf16 %v728, %v728
          %v761 = vpack.c.bf16 %v729, %v729
          %v762 = vpack.c.bf16 %v730, %v730
          %v763 = vpack.c.bf16 %v731, %v731
          %v764 = vpack.c.bf16 %v732, %v732
          %v765 = vpack.c.bf16 %v733, %v733
          %v766 = vpack.c.bf16 %v734, %v734
          %v767 = vpack.c.bf16 %v735, %v735
          %v768 = vpack.c.bf16 %v736, %v736
          %v769 = vpack.c.bf16 %v737, %v737
          %v770 = vpack.c.bf16 %v738, %v738
          %v771 = vpack.c.bf16 %v739, %v739
          %v772 = vpack.c.bf16 %v740, %v740
          %v773 = vpack.c.bf16 %v741, %v741
          %v774 = vpack.c.bf16 %v742, %v742
          %v775 = vpack.c.bf16 %v743, %v743
          %v776 = vpack.c.bf16 %v744, %v744
          %v777 = vpack.c.bf16 %v745, %v745
          %v778 = vpack.c.bf16 %v746, %v746
          %v779 = vpack.c.bf16 %v747, %v747
          %v780 = vpack.c.bf16 %v748, %v748
          %v781 = vpack.c.bf16 %v749, %v749
          %v782 = vpack.c.bf16 %v750, %v750
          %783 = vst [vmem:[#allocation2] sm:$0xf] %v751
          %784 = vst [vmem:[#allocation2 + $0x4] sm:$0xf] %v752
          %785 = vst [vmem:[#allocation2 + $0x8] sm:$0xf] %v753
          %786 = vst [vmem:[#allocation2 + $0xc] sm:$0xf] %v754
          %787 = vst [vmem:[#allocation2 + $0x10] sm:$0xf] %v755
          %788 = vst [vmem:[#allocation2 + $0x14] sm:$0xf] %v756
          %789 = vst [vmem:[#allocation2 + $0x18] sm:$0xf] %v757
          %790 = vst [vmem:[#allocation2 + $0x1c] sm:$0xf] %v758
          %791 = vst [vmem:[#allocation2 + $0x20] sm:$0xf] %v759
          %792 = vst [vmem:[#allocation2 + $0x24] sm:$0xf] %v760
          %793 = vst [vmem:[#allocation2 + $0x28] sm:$0xf] %v761
          %794 = vst [vmem:[#allocation2 + $0x2c] sm:$0xf] %v762
          %795 = vst [vmem:[#allocation2 + $0x30] sm:$0xf] %v763
          %796 = vst [vmem:[#allocation2 + $0x34] sm:$0xf] %v764
          %797 = vst [vmem:[#allocation2 + $0x38] sm:$0xf] %v765
          %798 = vst [vmem:[#allocation2 + $0x3c] sm:$0xf] %v766
          %799 = vst [vmem:[#allocation2 + $0x40] sm:$0xf] %v767
          %800 = vst [vmem:[#allocation2 + $0x44] sm:$0xf] %v768
          %801 = vst [vmem:[#allocation2 + $0x48] sm:$0xf] %v769
          %802 = vst [vmem:[#allocation2 + $0x4c] sm:$0xf] %v770
          %803 = vst [vmem:[#allocation2 + $0x50] sm:$0xf] %v771
          %804 = vst [vmem:[#allocation2 + $0x54] sm:$0xf] %v772
          %805 = vst [vmem:[#allocation2 + $0x58] sm:$0xf] %v773
          %806 = vst [vmem:[#allocation2 + $0x5c] sm:$0xf] %v774
          %807 = vst [vmem:[#allocation2 + $0x60] sm:$0xf] %v775
          %808 = vst [vmem:[#allocation2 + $0x64] sm:$0xf] %v776
          %809 = vst [vmem:[#allocation2 + $0x68] sm:$0xf] %v777
          %810 = vst [vmem:[#allocation2 + $0x6c] sm:$0xf] %v778
          %811 = vst [vmem:[#allocation2 + $0x70] sm:$0xf] %v779
          %812 = vst [vmem:[#allocation2 + $0x74] sm:$0xf] %v780
          %813 = vst [vmem:[#allocation2 + $0x78] sm:$0xf] %v781
          %814 = vst [vmem:[#allocation2 + $0x7c] sm:$0xf] %v782
          %v815 = vld [vmem:[#allocation10] sm:$0xff]
          %v816 = vld [vmem:[#allocation10 + $0x8] sm:$0xff]
          %v817 = vld [vmem:[#allocation10 + $0x10] sm:$0xff]
          %v818 = vld [vmem:[#allocation10 + $0x18] sm:$0xff]
          %v819 = vld [vmem:[#allocation10 + $0x20] sm:$0xff]
          %v820 = vld [vmem:[#allocation10 + $0x28] sm:$0xff]
          %v821 = vld [vmem:[#allocation10 + $0x30] sm:$0xff]
          %v822 = vld [vmem:[#allocation10 + $0x38] sm:$0xff]
          %v823 = vld [vmem:[#allocation10 + $0x40] sm:$0xff]
          %v824 = vld [vmem:[#allocation10 + $0x48] sm:$0xff]
          %v825 = vld [vmem:[#allocation10 + $0x50] sm:$0xff]
          %v826 = vld [vmem:[#allocation10 + $0x58] sm:$0xff]
          %v827 = vld [vmem:[#allocation10 + $0x60] sm:$0xff]
          %v828 = vld [vmem:[#allocation10 + $0x68] sm:$0xff]
          %v829 = vld [vmem:[#allocation10 + $0x70] sm:$0xff]
          %v830 = vld [vmem:[#allocation10 + $0x78] sm:$0xff]
          %v831 = vld [vmem:[#allocation10 + $0x80] sm:$0xff]
          %v832 = vld [vmem:[#allocation10 + $0x88] sm:$0xff]
          %v833 = vld [vmem:[#allocation10 + $0x90] sm:$0xff]
          %v834 = vld [vmem:[#allocation10 + $0x98] sm:$0xff]
          %v835 = vld [vmem:[#allocation10 + $0xa0] sm:$0xff]
          %v836 = vld [vmem:[#allocation10 + $0xa8] sm:$0xff]
          %v837 = vld [vmem:[#allocation10 + $0xb0] sm:$0xff]
          %v838 = vld [vmem:[#allocation10 + $0xb8] sm:$0xff]
          %v839 = vld [vmem:[#allocation10 + $0xc0] sm:$0xff]
          %v840 = vld [vmem:[#allocation10 + $0xc8] sm:$0xff]
          %v841 = vld [vmem:[#allocation10 + $0xd0] sm:$0xff]
          %v842 = vld [vmem:[#allocation10 + $0xd8] sm:$0xff]
          %v843 = vld [vmem:[#allocation10 + $0xe0] sm:$0xff]
          %v844 = vld [vmem:[#allocation10 + $0xe8] sm:$0xff]
          %v845 = vld [vmem:[#allocation10 + $0xf0] sm:$0xff]
          %v846 = vld [vmem:[#allocation10 + $0xf8] sm:$0xff]
          %v847 = vmul.f32 %v815, %v815
          %v848 = vmul.f32 %v816, %v816
          %v849 = vmul.f32 %v817, %v817
          %v850 = vmul.f32 %v818, %v818
          %v851 = vmul.f32 %v819, %v819
          %v852 = vmul.f32 %v820, %v820
          %v853 = vmul.f32 %v821, %v821
          %v854 = vmul.f32 %v822, %v822
          %v855 = vmul.f32 %v823, %v823
          %v856 = vmul.f32 %v824, %v824
          %v857 = vmul.f32 %v825, %v825
          %v858 = vmul.f32 %v826, %v826
          %v859 = vmul.f32 %v827, %v827
          %v860 = vmul.f32 %v828, %v828
          %v861 = vmul.f32 %v829, %v829
          %v862 = vmul.f32 %v830, %v830
          %v863 = vmul.f32 %v831, %v831
          %v864 = vmul.f32 %v832, %v832
          %v865 = vmul.f32 %v833, %v833
          %v866 = vmul.f32 %v834, %v834
          %v867 = vmul.f32 %v835, %v835
          %v868 = vmul.f32 %v836, %v836
          %v869 = vmul.f32 %v837, %v837
          %v870 = vmul.f32 %v838, %v838
          %v871 = vmul.f32 %v839, %v839
          %v872 = vmul.f32 %v840, %v840
          %v873 = vmul.f32 %v841, %v841
          %v874 = vmul.f32 %v842, %v842
          %v875 = vmul.f32 %v843, %v843
          %v876 = vmul.f32 %v844, %v844
          %v877 = vmul.f32 %v845, %v845
          %v878 = vmul.f32 %v846, %v846
          %879 = vadd.xlane.f32.xlu0 %v847
          %v880 = vpop.xlane.xlu0 %879
          %881 = vadd.xlane.f32.xlu0 %v848
          %v882 = vpop.xlane.xlu0 %881
          %883 = vadd.xlane.f32.xlu0 %v849
          %v884 = vpop.xlane.xlu0 %883
          %885 = vadd.xlane.f32.xlu0 %v850
          %v886 = vpop.xlane.xlu0 %885
          %887 = vadd.xlane.f32.xlu0 %v851
          %v888 = vpop.xlane.xlu0 %887
          %889 = vadd.xlane.f32.xlu0 %v852
          %v890 = vpop.xlane.xlu0 %889
          %891 = vadd.xlane.f32.xlu0 %v853
          %v892 = vpop.xlane.xlu0 %891
          %893 = vadd.xlane.f32.xlu0 %v854
          %v894 = vpop.xlane.xlu0 %893
          %895 = vadd.xlane.f32.xlu0 %v855
          %v896 = vpop.xlane.xlu0 %895
          %897 = vadd.xlane.f32.xlu0 %v856
          %v898 = vpop.xlane.xlu0 %897
          %899 = vadd.xlane.f32.xlu0 %v857
          %v900 = vpop.xlane.xlu0 %899
          %901 = vadd.xlane.f32.xlu0 %v858
          %v902 = vpop.xlane.xlu0 %901
          %903 = vadd.xlane.f32.xlu0 %v859
          %v904 = vpop.xlane.xlu0 %903
          %905 = vadd.xlane.f32.xlu0 %v860
          %v906 = vpop.xlane.xlu0 %905
          %907 = vadd.xlane.f32.xlu0 %v861
          %v908 = vpop.xlane.xlu0 %907
          %909 = vadd.xlane.f32.xlu0 %v862
          %v910 = vpop.xlane.xlu0 %909
          %911 = vadd.xlane.f32.xlu0 %v863
          %v912 = vpop.xlane.xlu0 %911
          %913 = vadd.xlane.f32.xlu0 %v864
          %v914 = vpop.xlane.xlu0 %913
          %915 = vadd.xlane.f32.xlu0 %v865
          %v916 = vpop.xlane.xlu0 %915
          %917 = vadd.xlane.f32.xlu0 %v866
          %v918 = vpop.xlane.xlu0 %917
          %919 = vadd.xlane.f32.xlu0 %v867
          %v920 = vpop.xlane.xlu0 %919
          %921 = vadd.xlane.f32.xlu0 %v868
          %v922 = vpop.xlane.xlu0 %921
          %923 = vadd.xlane.f32.xlu0 %v869
          %v924 = vpop.xlane.xlu0 %923
          %925 = vadd.xlane.f32.xlu0 %v870
          %v926 = vpop.xlane.xlu0 %925
          %927 = vadd.xlane.f32.xlu0 %v871
          %v928 = vpop.xlane.xlu0 %927
          %929 = vadd.xlane.f32.xlu0 %v872
          %v930 = vpop.xlane.xlu0 %929
          %931 = vadd.xlane.f32.xlu0 %v873
          %v932 = vpop.xlane.xlu0 %931
          %933 = vadd.xlane.f32.xlu0 %v874
          %v934 = vpop.xlane.xlu0 %933
          %935 = vadd.xlane.f32.xlu0 %v875
          %v936 = vpop.xlane.xlu0 %935
          %937 = vadd.xlane.f32.xlu0 %v876
          %v938 = vpop.xlane.xlu0 %937
          %939 = vadd.xlane.f32.xlu0 %v877
          %v940 = vpop.xlane.xlu0 %939
          %941 = vadd.xlane.f32.xlu0 %v878
          %v942 = vpop.xlane.xlu0 %941
          %v943 = vmax.f32 %v880, 1e-24
          %v944 = vmax.f32 %v882, 1e-24
          %v945 = vmax.f32 %v884, 1e-24
          %v946 = vmax.f32 %v886, 1e-24
          %v947 = vmax.f32 %v888, 1e-24
          %v948 = vmax.f32 %v890, 1e-24
          %v949 = vmax.f32 %v892, 1e-24
          %v950 = vmax.f32 %v894, 1e-24
          %v951 = vmax.f32 %v896, 1e-24
          %v952 = vmax.f32 %v898, 1e-24
          %v953 = vmax.f32 %v900, 1e-24
          %v954 = vmax.f32 %v902, 1e-24
          %v955 = vmax.f32 %v904, 1e-24
          %v956 = vmax.f32 %v906, 1e-24
          %v957 = vmax.f32 %v908, 1e-24
          %v958 = vmax.f32 %v910, 1e-24
          %v959 = vmax.f32 %v912, 1e-24
          %v960 = vmax.f32 %v914, 1e-24
          %v961 = vmax.f32 %v916, 1e-24
          %v962 = vmax.f32 %v918, 1e-24
          %v963 = vmax.f32 %v920, 1e-24
          %v964 = vmax.f32 %v922, 1e-24
          %v965 = vmax.f32 %v924, 1e-24
          %v966 = vmax.f32 %v926, 1e-24
          %v967 = vmax.f32 %v928, 1e-24
          %v968 = vmax.f32 %v930, 1e-24
          %v969 = vmax.f32 %v932, 1e-24
          %v970 = vmax.f32 %v934, 1e-24
          %v971 = vmax.f32 %v936, 1e-24
          %v972 = vmax.f32 %v938, 1e-24
          %v973 = vmax.f32 %v940, 1e-24
          %v974 = vmax.f32 %v942, 1e-24
          %v975 = vrsqrt.pop %v943
          %v976 = vmul.f32 %v975, %v943
          %v977 = vmul.f32 %v976, %v975
          %v978 = vmul.f32 0.5, %v977
          %v979 = vsub.f32 1.5, %v978
          %v980 = vmul.f32 %v975, %v979
          %vm981 = vweird.f32 %v943
          %vm982 = vweird.f32 %v975
          %vm983 = vmor %vm981, %vm982
          %v984 = vsel %vm983, %v975, %v980
          %v985 = vrsqrt.pop %v944
          %v986 = vmul.f32 %v985, %v944
          %v987 = vmul.f32 %v986, %v985
          %v988 = vmul.f32 0.5, %v987
          %v989 = vsub.f32 1.5, %v988
          %v990 = vmul.f32 %v985, %v989
          %vm991 = vweird.f32 %v944
          %vm992 = vweird.f32 %v985
          %vm993 = vmor %vm991, %vm992
          %v994 = vsel %vm993, %v985, %v990
          %v995 = vrsqrt.pop %v945
          %v996 = vmul.f32 %v995, %v945
          %v997 = vmul.f32 %v996, %v995
          %v998 = vmul.f32 0.5, %v997
          %v999 = vsub.f32 1.5, %v998
          %v1000 = vmul.f32 %v995, %v999
          %vm1001 = vweird.f32 %v945
          %vm1002 = vweird.f32 %v995
          %vm1003 = vmor %vm1001, %vm1002
          %v1004 = vsel %vm1003, %v995, %v1000
          %v1005 = vrsqrt.pop %v946
          %v1006 = vmul.f32 %v1005, %v946
          %v1007 = vmul.f32 %v1006, %v1005
          %v1008 = vmul.f32 0.5, %v1007
          %v1009 = vsub.f32 1.5, %v1008
          %v1010 = vmul.f32 %v1005, %v1009
          %vm1011 = vweird.f32 %v946
          %vm1012 = vweird.f32 %v1005
          %vm1013 = vmor %vm1011, %vm1012
          %v1014 = vsel %vm1013, %v1005, %v1010
          %v1015 = vrsqrt.pop %v947
          %v1016 = vmul.f32 %v1015, %v947
          %v1017 = vmul.f32 %v1016, %v1015
          %v1018 = vmul.f32 0.5, %v1017
          %v1019 = vsub.f32 1.5, %v1018
          %v1020 = vmul.f32 %v1015, %v1019
          %vm1021 = vweird.f32 %v947
          %vm1022 = vweird.f32 %v1015
          %vm1023 = vmor %vm1021, %vm1022
          %v1024 = vsel %vm1023, %v1015, %v1020
          %v1025 = vrsqrt.pop %v948
          %v1026 = vmul.f32 %v1025, %v948
          %v1027 = vmul.f32 %v1026, %v1025
          %v1028 = vmul.f32 0.5, %v1027
          %v1029 = vsub.f32 1.5, %v1028
          %v1030 = vmul.f32 %v1025, %v1029
          %vm1031 = vweird.f32 %v948
          %vm1032 = vweird.f32 %v1025
          %vm1033 = vmor %vm1031, %vm1032
          %v1034 = vsel %vm1033, %v1025, %v1030
          %v1035 = vrsqrt.pop %v949
          %v1036 = vmul.f32 %v1035, %v949
          %v1037 = vmul.f32 %v1036, %v1035
          %v1038 = vmul.f32 0.5, %v1037
          %v1039 = vsub.f32 1.5, %v1038
          %v1040 = vmul.f32 %v1035, %v1039
          %vm1041 = vweird.f32 %v949
          %vm1042 = vweird.f32 %v1035
          %vm1043 = vmor %vm1041, %vm1042
          %v1044 = vsel %vm1043, %v1035, %v1040
          %v1045 = vrsqrt.pop %v950
          %v1046 = vmul.f32 %v1045, %v950
          %v1047 = vmul.f32 %v1046, %v1045
          %v1048 = vmul.f32 0.5, %v1047
          %v1049 = vsub.f32 1.5, %v1048
          %v1050 = vmul.f32 %v1045, %v1049
          %vm1051 = vweird.f32 %v950
          %vm1052 = vweird.f32 %v1045
          %vm1053 = vmor %vm1051, %vm1052
          %v1054 = vsel %vm1053, %v1045, %v1050
          %v1055 = vrsqrt.pop %v951
          %v1056 = vmul.f32 %v1055, %v951
          %v1057 = vmul.f32 %v1056, %v1055
          %v1058 = vmul.f32 0.5, %v1057
          %v1059 = vsub.f32 1.5, %v1058
          %v1060 = vmul.f32 %v1055, %v1059
          %vm1061 = vweird.f32 %v951
          %vm1062 = vweird.f32 %v1055
          %vm1063 = vmor %vm1061, %vm1062
          %v1064 = vsel %vm1063, %v1055, %v1060
          %v1065 = vrsqrt.pop %v952
          %v1066 = vmul.f32 %v1065, %v952
          %v1067 = vmul.f32 %v1066, %v1065
          %v1068 = vmul.f32 0.5, %v1067
          %v1069 = vsub.f32 1.5, %v1068
          %v1070 = vmul.f32 %v1065, %v1069
          %vm1071 = vweird.f32 %v952
          %vm1072 = vweird.f32 %v1065
          %vm1073 = vmor %vm1071, %vm1072
          %v1074 = vsel %vm1073, %v1065, %v1070
          %v1075 = vrsqrt.pop %v953
          %v1076 = vmul.f32 %v1075, %v953
          %v1077 = vmul.f32 %v1076, %v1075
          %v1078 = vmul.f32 0.5, %v1077
          %v1079 = vsub.f32 1.5, %v1078
          %v1080 = vmul.f32 %v1075, %v1079
          %vm1081 = vweird.f32 %v953
          %vm1082 = vweird.f32 %v1075
          %vm1083 = vmor %vm1081, %vm1082
          %v1084 = vsel %vm1083, %v1075, %v1080
          %v1085 = vrsqrt.pop %v954
          %v1086 = vmul.f32 %v1085, %v954
          %v1087 = vmul.f32 %v1086, %v1085
          %v1088 = vmul.f32 0.5, %v1087
          %v1089 = vsub.f32 1.5, %v1088
          %v1090 = vmul.f32 %v1085, %v1089
          %vm1091 = vweird.f32 %v954
          %vm1092 = vweird.f32 %v1085
          %vm1093 = vmor %vm1091, %vm1092
          %v1094 = vsel %vm1093, %v1085, %v1090
          %v1095 = vrsqrt.pop %v955
          %v1096 = vmul.f32 %v1095, %v955
          %v1097 = vmul.f32 %v1096, %v1095
          %v1098 = vmul.f32 0.5, %v1097
          %v1099 = vsub.f32 1.5, %v1098
          %v1100 = vmul.f32 %v1095, %v1099
          %vm1101 = vweird.f32 %v955
          %vm1102 = vweird.f32 %v1095
          %vm1103 = vmor %vm1101, %vm1102
          %v1104 = vsel %vm1103, %v1095, %v1100
          %v1105 = vrsqrt.pop %v956
          %v1106 = vmul.f32 %v1105, %v956
          %v1107 = vmul.f32 %v1106, %v1105
          %v1108 = vmul.f32 0.5, %v1107
          %v1109 = vsub.f32 1.5, %v1108
          %v1110 = vmul.f32 %v1105, %v1109
          %vm1111 = vweird.f32 %v956
          %vm1112 = vweird.f32 %v1105
          %vm1113 = vmor %vm1111, %vm1112
          %v1114 = vsel %vm1113, %v1105, %v1110
          %v1115 = vrsqrt.pop %v957
          %v1116 = vmul.f32 %v1115, %v957
          %v1117 = vmul.f32 %v1116, %v1115
          %v1118 = vmul.f32 0.5, %v1117
          %v1119 = vsub.f32 1.5, %v1118
          %v1120 = vmul.f32 %v1115, %v1119
          %vm1121 = vweird.f32 %v957
          %vm1122 = vweird.f32 %v1115
          %vm1123 = vmor %vm1121, %vm1122
          %v1124 = vsel %vm1123, %v1115, %v1120
          %v1125 = vrsqrt.pop %v958
          %v1126 = vmul.f32 %v1125, %v958
          %v1127 = vmul.f32 %v1126, %v1125
          %v1128 = vmul.f32 0.5, %v1127
          %v1129 = vsub.f32 1.5, %v1128
          %v1130 = vmul.f32 %v1125, %v1129
          %vm1131 = vweird.f32 %v958
          %vm1132 = vweird.f32 %v1125
          %vm1133 = vmor %vm1131, %vm1132
          %v1134 = vsel %vm1133, %v1125, %v1130
          %v1135 = vrsqrt.pop %v959
          %v1136 = vmul.f32 %v1135, %v959
          %v1137 = vmul.f32 %v1136, %v1135
          %v1138 = vmul.f32 0.5, %v1137
          %v1139 = vsub.f32 1.5, %v1138
          %v1140 = vmul.f32 %v1135, %v1139
          %vm1141 = vweird.f32 %v959
          %vm1142 = vweird.f32 %v1135
          %vm1143 = vmor %vm1141, %vm1142
          %v1144 = vsel %vm1143, %v1135, %v1140
          %v1145 = vrsqrt.pop %v960
          %v1146 = vmul.f32 %v1145, %v960
          %v1147 = vmul.f32 %v1146, %v1145
          %v1148 = vmul.f32 0.5, %v1147
          %v1149 = vsub.f32 1.5, %v1148
          %v1150 = vmul.f32 %v1145, %v1149
          %vm1151 = vweird.f32 %v960
          %vm1152 = vweird.f32 %v1145
          %vm1153 = vmor %vm1151, %vm1152
          %v1154 = vsel %vm1153, %v1145, %v1150
          %v1155 = vrsqrt.pop %v961
          %v1156 = vmul.f32 %v1155, %v961
          %v1157 = vmul.f32 %v1156, %v1155
          %v1158 = vmul.f32 0.5, %v1157
          %v1159 = vsub.f32 1.5, %v1158
          %v1160 = vmul.f32 %v1155, %v1159
          %vm1161 = vweird.f32 %v961
          %vm1162 = vweird.f32 %v1155
          %vm1163 = vmor %vm1161, %vm1162
          %v1164 = vsel %vm1163, %v1155, %v1160
          %v1165 = vrsqrt.pop %v962
          %v1166 = vmul.f32 %v1165, %v962
          %v1167 = vmul.f32 %v1166, %v1165
          %v1168 = vmul.f32 0.5, %v1167
          %v1169 = vsub.f32 1.5, %v1168
          %v1170 = vmul.f32 %v1165, %v1169
          %vm1171 = vweird.f32 %v962
          %vm1172 = vweird.f32 %v1165
          %vm1173 = vmor %vm1171, %vm1172
          %v1174 = vsel %vm1173, %v1165, %v1170
          %v1175 = vrsqrt.pop %v963
          %v1176 = vmul.f32 %v1175, %v963
          %v1177 = vmul.f32 %v1176, %v1175
          %v1178 = vmul.f32 0.5, %v1177
          %v1179 = vsub.f32 1.5, %v1178
          %v1180 = vmul.f32 %v1175, %v1179
          %vm1181 = vweird.f32 %v963
          %vm1182 = vweird.f32 %v1175
          %vm1183 = vmor %vm1181, %vm1182
          %v1184 = vsel %vm1183, %v1175, %v1180
          %v1185 = vrsqrt.pop %v964
          %v1186 = vmul.f32 %v1185, %v964
          %v1187 = vmul.f32 %v1186, %v1185
          %v1188 = vmul.f32 0.5, %v1187
          %v1189 = vsub.f32 1.5, %v1188
          %v1190 = vmul.f32 %v1185, %v1189
          %vm1191 = vweird.f32 %v964
          %vm1192 = vweird.f32 %v1185
          %vm1193 = vmor %vm1191, %vm1192
          %v1194 = vsel %vm1193, %v1185, %v1190
          %v1195 = vrsqrt.pop %v965
          %v1196 = vmul.f32 %v1195, %v965
          %v1197 = vmul.f32 %v1196, %v1195
          %v1198 = vmul.f32 0.5, %v1197
          %v1199 = vsub.f32 1.5, %v1198
          %v1200 = vmul.f32 %v1195, %v1199
          %vm1201 = vweird.f32 %v965
          %vm1202 = vweird.f32 %v1195
          %vm1203 = vmor %vm1201, %vm1202
          %v1204 = vsel %vm1203, %v1195, %v1200
          %v1205 = vrsqrt.pop %v966
          %v1206 = vmul.f32 %v1205, %v966
          %v1207 = vmul.f32 %v1206, %v1205
          %v1208 = vmul.f32 0.5, %v1207
          %v1209 = vsub.f32 1.5, %v1208
          %v1210 = vmul.f32 %v1205, %v1209
          %vm1211 = vweird.f32 %v966
          %vm1212 = vweird.f32 %v1205
          %vm1213 = vmor %vm1211, %vm1212
          %v1214 = vsel %vm1213, %v1205, %v1210
          %v1215 = vrsqrt.pop %v967
          %v1216 = vmul.f32 %v1215, %v967
          %v1217 = vmul.f32 %v1216, %v1215
          %v1218 = vmul.f32 0.5, %v1217
          %v1219 = vsub.f32 1.5, %v1218
          %v1220 = vmul.f32 %v1215, %v1219
          %vm1221 = vweird.f32 %v967
          %vm1222 = vweird.f32 %v1215
          %vm1223 = vmor %vm1221, %vm1222
          %v1224 = vsel %vm1223, %v1215, %v1220
          %v1225 = vrsqrt.pop %v968
          %v1226 = vmul.f32 %v1225, %v968
          %v1227 = vmul.f32 %v1226, %v1225
          %v1228 = vmul.f32 0.5, %v1227
          %v1229 = vsub.f32 1.5, %v1228
          %v1230 = vmul.f32 %v1225, %v1229
          %vm1231 = vweird.f32 %v968
          %vm1232 = vweird.f32 %v1225
          %vm1233 = vmor %vm1231, %vm1232
          %v1234 = vsel %vm1233, %v1225, %v1230
          %v1235 = vrsqrt.pop %v969
          %v1236 = vmul.f32 %v1235, %v969
          %v1237 = vmul.f32 %v1236, %v1235
          %v1238 = vmul.f32 0.5, %v1237
          %v1239 = vsub.f32 1.5, %v1238
          %v1240 = vmul.f32 %v1235, %v1239
          %vm1241 = vweird.f32 %v969
          %vm1242 = vweird.f32 %v1235
          %vm1243 = vmor %vm1241, %vm1242
          %v1244 = vsel %vm1243, %v1235, %v1240
          %v1245 = vrsqrt.pop %v970
          %v1246 = vmul.f32 %v1245, %v970
          %v1247 = vmul.f32 %v1246, %v1245
          %v1248 = vmul.f32 0.5, %v1247
          %v1249 = vsub.f32 1.5, %v1248
          %v1250 = vmul.f32 %v1245, %v1249
          %vm1251 = vweird.f32 %v970
          %vm1252 = vweird.f32 %v1245
          %vm1253 = vmor %vm1251, %vm1252
          %v1254 = vsel %vm1253, %v1245, %v1250
          %v1255 = vrsqrt.pop %v971
          %v1256 = vmul.f32 %v1255, %v971
          %v1257 = vmul.f32 %v1256, %v1255
          %v1258 = vmul.f32 0.5, %v1257
          %v1259 = vsub.f32 1.5, %v1258
          %v1260 = vmul.f32 %v1255, %v1259
          %vm1261 = vweird.f32 %v971
          %vm1262 = vweird.f32 %v1255
          %vm1263 = vmor %vm1261, %vm1262
          %v1264 = vsel %vm1263, %v1255, %v1260
          %v1265 = vrsqrt.pop %v972
          %v1266 = vmul.f32 %v1265, %v972
          %v1267 = vmul.f32 %v1266, %v1265
          %v1268 = vmul.f32 0.5, %v1267
          %v1269 = vsub.f32 1.5, %v1268
          %v1270 = vmul.f32 %v1265, %v1269
          %vm1271 = vweird.f32 %v972
          %vm1272 = vweird.f32 %v1265
          %vm1273 = vmor %vm1271, %vm1272
          %v1274 = vsel %vm1273, %v1265, %v1270
          %v1275 = vrsqrt.pop %v973
          %v1276 = vmul.f32 %v1275, %v973
          %v1277 = vmul.f32 %v1276, %v1275
          %v1278 = vmul.f32 0.5, %v1277
          %v1279 = vsub.f32 1.5, %v1278
          %v1280 = vmul.f32 %v1275, %v1279
          %vm1281 = vweird.f32 %v973
          %vm1282 = vweird.f32 %v1275
          %vm1283 = vmor %vm1281, %vm1282
          %v1284 = vsel %vm1283, %v1275, %v1280
          %v1285 = vrsqrt.pop %v974
          %v1286 = vmul.f32 %v1285, %v974
          %v1287 = vmul.f32 %v1286, %v1285
          %v1288 = vmul.f32 0.5, %v1287
          %v1289 = vsub.f32 1.5, %v1288
          %v1290 = vmul.f32 %v1285, %v1289
          %vm1291 = vweird.f32 %v974
          %vm1292 = vweird.f32 %v1285
          %vm1293 = vmor %vm1291, %vm1292
          %v1294 = vsel %vm1293, %v1285, %v1290
          %v1295 = vmul.f32 %v815, %v984
          %v1296 = vmul.f32 %v816, %v994
          %v1297 = vmul.f32 %v817, %v1004
          %v1298 = vmul.f32 %v818, %v1014
          %v1299 = vmul.f32 %v819, %v1024
          %v1300 = vmul.f32 %v820, %v1034
          %v1301 = vmul.f32 %v821, %v1044
          %v1302 = vmul.f32 %v822, %v1054
          %v1303 = vmul.f32 %v823, %v1064
          %v1304 = vmul.f32 %v824, %v1074
          %v1305 = vmul.f32 %v825, %v1084
          %v1306 = vmul.f32 %v826, %v1094
          %v1307 = vmul.f32 %v827, %v1104
          %v1308 = vmul.f32 %v828, %v1114
          %v1309 = vmul.f32 %v829, %v1124
          %v1310 = vmul.f32 %v830, %v1134
          %v1311 = vmul.f32 %v831, %v1144
          %v1312 = vmul.f32 %v832, %v1154
          %v1313 = vmul.f32 %v833, %v1164
          %v1314 = vmul.f32 %v834, %v1174
          %v1315 = vmul.f32 %v835, %v1184
          %v1316 = vmul.f32 %v836, %v1194
          %v1317 = vmul.f32 %v837, %v1204
          %v1318 = vmul.f32 %v838, %v1214
          %v1319 = vmul.f32 %v839, %v1224
          %v1320 = vmul.f32 %v840, %v1234
          %v1321 = vmul.f32 %v841, %v1244
          %v1322 = vmul.f32 %v842, %v1254
          %v1323 = vmul.f32 %v843, %v1264
          %v1324 = vmul.f32 %v844, %v1274
          %v1325 = vmul.f32 %v845, %v1284
          %v1326 = vmul.f32 %v846, %v1294
          %v1327 = vpack.c.bf16 %v1295, %v1295
          %v1328 = vpack.c.bf16 %v1296, %v1296
          %v1329 = vpack.c.bf16 %v1297, %v1297
          %v1330 = vpack.c.bf16 %v1298, %v1298
          %v1331 = vpack.c.bf16 %v1299, %v1299
          %v1332 = vpack.c.bf16 %v1300, %v1300
          %v1333 = vpack.c.bf16 %v1301, %v1301
          %v1334 = vpack.c.bf16 %v1302, %v1302
          %v1335 = vpack.c.bf16 %v1303, %v1303
          %v1336 = vpack.c.bf16 %v1304, %v1304
          %v1337 = vpack.c.bf16 %v1305, %v1305
          %v1338 = vpack.c.bf16 %v1306, %v1306
          %v1339 = vpack.c.bf16 %v1307, %v1307
          %v1340 = vpack.c.bf16 %v1308, %v1308
          %v1341 = vpack.c.bf16 %v1309, %v1309
          %v1342 = vpack.c.bf16 %v1310, %v1310
          %v1343 = vpack.c.bf16 %v1311, %v1311
          %v1344 = vpack.c.bf16 %v1312, %v1312
          %v1345 = vpack.c.bf16 %v1313, %v1313
          %v1346 = vpack.c.bf16 %v1314, %v1314
          %v1347 = vpack.c.bf16 %v1315, %v1315
          %v1348 = vpack.c.bf16 %v1316, %v1316
          %v1349 = vpack.c.bf16 %v1317, %v1317
          %v1350 = vpack.c.bf16 %v1318, %v1318
          %v1351 = vpack.c.bf16 %v1319, %v1319
          %v1352 = vpack.c.bf16 %v1320, %v1320
          %v1353 = vpack.c.bf16 %v1321, %v1321
          %v1354 = vpack.c.bf16 %v1322, %v1322
          %v1355 = vpack.c.bf16 %v1323, %v1323
          %v1356 = vpack.c.bf16 %v1324, %v1324
          %v1357 = vpack.c.bf16 %v1325, %v1325
          %v1358 = vpack.c.bf16 %v1326, %v1326
          %1359 = vst [vmem:[#allocation3] sm:$0xf] %v1327
          %1360 = vst [vmem:[#allocation3 + $0x4] sm:$0xf] %v1328
          %1361 = vst [vmem:[#allocation3 + $0x8] sm:$0xf] %v1329
          %1362 = vst [vmem:[#allocation3 + $0xc] sm:$0xf] %v1330
          %1363 = vst [vmem:[#allocation3 + $0x10] sm:$0xf] %v1331
          %1364 = vst [vmem:[#allocation3 + $0x14] sm:$0xf] %v1332
          %1365 = vst [vmem:[#allocation3 + $0x18] sm:$0xf] %v1333
          %1366 = vst [vmem:[#allocation3 + $0x1c] sm:$0xf] %v1334
          %1367 = vst [vmem:[#allocation3 + $0x20] sm:$0xf] %v1335
          %1368 = vst [vmem:[#allocation3 + $0x24] sm:$0xf] %v1336
          %1369 = vst [vmem:[#allocation3 + $0x28] sm:$0xf] %v1337
          %1370 = vst [vmem:[#allocation3 + $0x2c] sm:$0xf] %v1338
          %1371 = vst [vmem:[#allocation3 + $0x30] sm:$0xf] %v1339
          %1372 = vst [vmem:[#allocation3 + $0x34] sm:$0xf] %v1340
          %1373 = vst [vmem:[#allocation3 + $0x38] sm:$0xf] %v1341
          %1374 = vst [vmem:[#allocation3 + $0x3c] sm:$0xf] %v1342
          %1375 = vst [vmem:[#allocation3 + $0x40] sm:$0xf] %v1343
          %1376 = vst [vmem:[#allocation3 + $0x44] sm:$0xf] %v1344
          %1377 = vst [vmem:[#allocation3 + $0x48] sm:$0xf] %v1345
          %1378 = vst [vmem:[#allocation3 + $0x4c] sm:$0xf] %v1346
          %1379 = vst [vmem:[#allocation3 + $0x50] sm:$0xf] %v1347
          %1380 = vst [vmem:[#allocation3 + $0x54] sm:$0xf] %v1348
          %1381 = vst [vmem:[#allocation3 + $0x58] sm:$0xf] %v1349
          %1382 = vst [vmem:[#allocation3 + $0x5c] sm:$0xf] %v1350
          %1383 = vst [vmem:[#allocation3 + $0x60] sm:$0xf] %v1351
          %1384 = vst [vmem:[#allocation3 + $0x64] sm:$0xf] %v1352
          %1385 = vst [vmem:[#allocation3 + $0x68] sm:$0xf] %v1353
          %1386 = vst [vmem:[#allocation3 + $0x6c] sm:$0xf] %v1354
          %1387 = vst [vmem:[#allocation3 + $0x70] sm:$0xf] %v1355
          %1388 = vst [vmem:[#allocation3 + $0x74] sm:$0xf] %v1356
          %1389 = vst [vmem:[#allocation3 + $0x78] sm:$0xf] %v1357
          %1390 = vst [vmem:[#allocation3 + $0x7c] sm:$0xf] %v1358
          %v1391 = vld [vmem:[#allocation12] sm:$0xff]
          %v1392 = vld [vmem:[#allocation12 + $0x8] sm:$0xff]
          %v1393 = vld [vmem:[#allocation12 + $0x10] sm:$0xff]
          %v1394 = vld [vmem:[#allocation12 + $0x18] sm:$0xff]
          %v1395 = vld [vmem:[#allocation12 + $0x20] sm:$0xff]
          %v1396 = vld [vmem:[#allocation12 + $0x28] sm:$0xff]
          %v1397 = vld [vmem:[#allocation12 + $0x30] sm:$0xff]
          %v1398 = vld [vmem:[#allocation12 + $0x38] sm:$0xff]
          %v1399 = vld [vmem:[#allocation12 + $0x40] sm:$0xff]
          %v1400 = vld [vmem:[#allocation12 + $0x48] sm:$0xff]
          %v1401 = vld [vmem:[#allocation12 + $0x50] sm:$0xff]
          %v1402 = vld [vmem:[#allocation12 + $0x58] sm:$0xff]
          %v1403 = vld [vmem:[#allocation12 + $0x60] sm:$0xff]
          %v1404 = vld [vmem:[#allocation12 + $0x68] sm:$0xff]
          %v1405 = vld [vmem:[#allocation12 + $0x70] sm:$0xff]
          %v1406 = vld [vmem:[#allocation12 + $0x78] sm:$0xff]
          %v1407 = vld [vmem:[#allocation12 + $0x80] sm:$0xff]
          %v1408 = vld [vmem:[#allocation12 + $0x88] sm:$0xff]
          %v1409 = vld [vmem:[#allocation12 + $0x90] sm:$0xff]
          %v1410 = vld [vmem:[#allocation12 + $0x98] sm:$0xff]
          %v1411 = vld [vmem:[#allocation12 + $0xa0] sm:$0xff]
          %v1412 = vld [vmem:[#allocation12 + $0xa8] sm:$0xff]
          %v1413 = vld [vmem:[#allocation12 + $0xb0] sm:$0xff]
          %v1414 = vld [vmem:[#allocation12 + $0xb8] sm:$0xff]
          %v1415 = vld [vmem:[#allocation12 + $0xc0] sm:$0xff]
          %v1416 = vld [vmem:[#allocation12 + $0xc8] sm:$0xff]
          %v1417 = vld [vmem:[#allocation12 + $0xd0] sm:$0xff]
          %v1418 = vld [vmem:[#allocation12 + $0xd8] sm:$0xff]
          %v1419 = vld [vmem:[#allocation12 + $0xe0] sm:$0xff]
          %v1420 = vld [vmem:[#allocation12 + $0xe8] sm:$0xff]
          %v1421 = vld [vmem:[#allocation12 + $0xf0] sm:$0xff]
          %v1422 = vld [vmem:[#allocation12 + $0xf8] sm:$0xff]
          %v1423 = vmul.f32 %v1391, %v1391
          %v1424 = vmul.f32 %v1392, %v1392
          %v1425 = vmul.f32 %v1393, %v1393
          %v1426 = vmul.f32 %v1394, %v1394
          %v1427 = vmul.f32 %v1395, %v1395
          %v1428 = vmul.f32 %v1396, %v1396
          %v1429 = vmul.f32 %v1397, %v1397
          %v1430 = vmul.f32 %v1398, %v1398
          %v1431 = vmul.f32 %v1399, %v1399
          %v1432 = vmul.f32 %v1400, %v1400
          %v1433 = vmul.f32 %v1401, %v1401
          %v1434 = vmul.f32 %v1402, %v1402
          %v1435 = vmul.f32 %v1403, %v1403
          %v1436 = vmul.f32 %v1404, %v1404
          %v1437 = vmul.f32 %v1405, %v1405
          %v1438 = vmul.f32 %v1406, %v1406
          %v1439 = vmul.f32 %v1407, %v1407
          %v1440 = vmul.f32 %v1408, %v1408
          %v1441 = vmul.f32 %v1409, %v1409
          %v1442 = vmul.f32 %v1410, %v1410
          %v1443 = vmul.f32 %v1411, %v1411
          %v1444 = vmul.f32 %v1412, %v1412
          %v1445 = vmul.f32 %v1413, %v1413
          %v1446 = vmul.f32 %v1414, %v1414
          %v1447 = vmul.f32 %v1415, %v1415
          %v1448 = vmul.f32 %v1416, %v1416
          %v1449 = vmul.f32 %v1417, %v1417
          %v1450 = vmul.f32 %v1418, %v1418
          %v1451 = vmul.f32 %v1419, %v1419
          %v1452 = vmul.f32 %v1420, %v1420
          %v1453 = vmul.f32 %v1421, %v1421
          %v1454 = vmul.f32 %v1422, %v1422
          %1455 = vadd.xlane.f32.xlu0 %v1423
          %v1456 = vpop.xlane.xlu0 %1455
          %1457 = vadd.xlane.f32.xlu0 %v1424
          %v1458 = vpop.xlane.xlu0 %1457
          %1459 = vadd.xlane.f32.xlu0 %v1425
          %v1460 = vpop.xlane.xlu0 %1459
          %1461 = vadd.xlane.f32.xlu0 %v1426
          %v1462 = vpop.xlane.xlu0 %1461
          %1463 = vadd.xlane.f32.xlu0 %v1427
          %v1464 = vpop.xlane.xlu0 %1463
          %1465 = vadd.xlane.f32.xlu0 %v1428
          %v1466 = vpop.xlane.xlu0 %1465
          %1467 = vadd.xlane.f32.xlu0 %v1429
          %v1468 = vpop.xlane.xlu0 %1467
          %1469 = vadd.xlane.f32.xlu0 %v1430
          %v1470 = vpop.xlane.xlu0 %1469
          %1471 = vadd.xlane.f32.xlu0 %v1431
          %v1472 = vpop.xlane.xlu0 %1471
          %1473 = vadd.xlane.f32.xlu0 %v1432
          %v1474 = vpop.xlane.xlu0 %1473
          %1475 = vadd.xlane.f32.xlu0 %v1433
          %v1476 = vpop.xlane.xlu0 %1475
          %1477 = vadd.xlane.f32.xlu0 %v1434
          %v1478 = vpop.xlane.xlu0 %1477
          %1479 = vadd.xlane.f32.xlu0 %v1435
          %v1480 = vpop.xlane.xlu0 %1479
          %1481 = vadd.xlane.f32.xlu0 %v1436
          %v1482 = vpop.xlane.xlu0 %1481
          %1483 = vadd.xlane.f32.xlu0 %v1437
          %v1484 = vpop.xlane.xlu0 %1483
          %1485 = vadd.xlane.f32.xlu0 %v1438
          %v1486 = vpop.xlane.xlu0 %1485
          %1487 = vadd.xlane.f32.xlu0 %v1439
          %v1488 = vpop.xlane.xlu0 %1487
          %1489 = vadd.xlane.f32.xlu0 %v1440
          %v1490 = vpop.xlane.xlu0 %1489
          %1491 = vadd.xlane.f32.xlu0 %v1441
          %v1492 = vpop.xlane.xlu0 %1491
          %1493 = vadd.xlane.f32.xlu0 %v1442
          %v1494 = vpop.xlane.xlu0 %1493
          %1495 = vadd.xlane.f32.xlu0 %v1443
          %v1496 = vpop.xlane.xlu0 %1495
          %1497 = vadd.xlane.f32.xlu0 %v1444
          %v1498 = vpop.xlane.xlu0 %1497
          %1499 = vadd.xlane.f32.xlu0 %v1445
          %v1500 = vpop.xlane.xlu0 %1499
          %1501 = vadd.xlane.f32.xlu0 %v1446
          %v1502 = vpop.xlane.xlu0 %1501
          %1503 = vadd.xlane.f32.xlu0 %v1447
          %v1504 = vpop.xlane.xlu0 %1503
          %1505 = vadd.xlane.f32.xlu0 %v1448
          %v1506 = vpop.xlane.xlu0 %1505
          %1507 = vadd.xlane.f32.xlu0 %v1449
          %v1508 = vpop.xlane.xlu0 %1507
          %1509 = vadd.xlane.f32.xlu0 %v1450
          %v1510 = vpop.xlane.xlu0 %1509
          %1511 = vadd.xlane.f32.xlu0 %v1451
          %v1512 = vpop.xlane.xlu0 %1511
          %1513 = vadd.xlane.f32.xlu0 %v1452
          %v1514 = vpop.xlane.xlu0 %1513
          %1515 = vadd.xlane.f32.xlu0 %v1453
          %v1516 = vpop.xlane.xlu0 %1515
          %1517 = vadd.xlane.f32.xlu0 %v1454
          %v1518 = vpop.xlane.xlu0 %1517
          %v1519 = vmax.f32 %v1456, 1e-24
          %v1520 = vmax.f32 %v1458, 1e-24
          %v1521 = vmax.f32 %v1460, 1e-24
          %v1522 = vmax.f32 %v1462, 1e-24
          %v1523 = vmax.f32 %v1464, 1e-24
          %v1524 = vmax.f32 %v1466, 1e-24
          %v1525 = vmax.f32 %v1468, 1e-24
          %v1526 = vmax.f32 %v1470, 1e-24
          %v1527 = vmax.f32 %v1472, 1e-24
          %v1528 = vmax.f32 %v1474, 1e-24
          %v1529 = vmax.f32 %v1476, 1e-24
          %v1530 = vmax.f32 %v1478, 1e-24
          %v1531 = vmax.f32 %v1480, 1e-24
          %v1532 = vmax.f32 %v1482, 1e-24
          %v1533 = vmax.f32 %v1484, 1e-24
          %v1534 = vmax.f32 %v1486, 1e-24
          %v1535 = vmax.f32 %v1488, 1e-24
          %v1536 = vmax.f32 %v1490, 1e-24
          %v1537 = vmax.f32 %v1492, 1e-24
          %v1538 = vmax.f32 %v1494, 1e-24
          %v1539 = vmax.f32 %v1496, 1e-24
          %v1540 = vmax.f32 %v1498, 1e-24
          %v1541 = vmax.f32 %v1500, 1e-24
          %v1542 = vmax.f32 %v1502, 1e-24
          %v1543 = vmax.f32 %v1504, 1e-24
          %v1544 = vmax.f32 %v1506, 1e-24
          %v1545 = vmax.f32 %v1508, 1e-24
          %v1546 = vmax.f32 %v1510, 1e-24
          %v1547 = vmax.f32 %v1512, 1e-24
          %v1548 = vmax.f32 %v1514, 1e-24
          %v1549 = vmax.f32 %v1516, 1e-24
          %v1550 = vmax.f32 %v1518, 1e-24
          %v1551 = vrsqrt.pop %v1519
          %v1552 = vmul.f32 %v1551, %v1519
          %v1553 = vmul.f32 %v1552, %v1551
          %v1554 = vmul.f32 0.5, %v1553
          %v1555 = vsub.f32 1.5, %v1554
          %v1556 = vmul.f32 %v1551, %v1555
          %vm1557 = vweird.f32 %v1519
          %vm1558 = vweird.f32 %v1551
          %vm1559 = vmor %vm1557, %vm1558
          %v1560 = vsel %vm1559, %v1551, %v1556
          %v1561 = vrsqrt.pop %v1520
          %v1562 = vmul.f32 %v1561, %v1520
          %v1563 = vmul.f32 %v1562, %v1561
          %v1564 = vmul.f32 0.5, %v1563
          %v1565 = vsub.f32 1.5, %v1564
          %v1566 = vmul.f32 %v1561, %v1565
          %vm1567 = vweird.f32 %v1520
          %vm1568 = vweird.f32 %v1561
          %vm1569 = vmor %vm1567, %vm1568
          %v1570 = vsel %vm1569, %v1561, %v1566
          %v1571 = vrsqrt.pop %v1521
          %v1572 = vmul.f32 %v1571, %v1521
          %v1573 = vmul.f32 %v1572, %v1571
          %v1574 = vmul.f32 0.5, %v1573
          %v1575 = vsub.f32 1.5, %v1574
          %v1576 = vmul.f32 %v1571, %v1575
          %vm1577 = vweird.f32 %v1521
          %vm1578 = vweird.f32 %v1571
          %vm1579 = vmor %vm1577, %vm1578
          %v1580 = vsel %vm1579, %v1571, %v1576
          %v1581 = vrsqrt.pop %v1522
          %v1582 = vmul.f32 %v1581, %v1522
          %v1583 = vmul.f32 %v1582, %v1581
          %v1584 = vmul.f32 0.5, %v1583
          %v1585 = vsub.f32 1.5, %v1584
          %v1586 = vmul.f32 %v1581, %v1585
          %vm1587 = vweird.f32 %v1522
          %vm1588 = vweird.f32 %v1581
          %vm1589 = vmor %vm1587, %vm1588
          %v1590 = vsel %vm1589, %v1581, %v1586
          %v1591 = vrsqrt.pop %v1523
          %v1592 = vmul.f32 %v1591, %v1523
          %v1593 = vmul.f32 %v1592, %v1591
          %v1594 = vmul.f32 0.5, %v1593
          %v1595 = vsub.f32 1.5, %v1594
          %v1596 = vmul.f32 %v1591, %v1595
          %vm1597 = vweird.f32 %v1523
          %vm1598 = vweird.f32 %v1591
          %vm1599 = vmor %vm1597, %vm1598
          %v1600 = vsel %vm1599, %v1591, %v1596
          %v1601 = vrsqrt.pop %v1524
          %v1602 = vmul.f32 %v1601, %v1524
          %v1603 = vmul.f32 %v1602, %v1601
          %v1604 = vmul.f32 0.5, %v1603
          %v1605 = vsub.f32 1.5, %v1604
          %v1606 = vmul.f32 %v1601, %v1605
          %vm1607 = vweird.f32 %v1524
          %vm1608 = vweird.f32 %v1601
          %vm1609 = vmor %vm1607, %vm1608
          %v1610 = vsel %vm1609, %v1601, %v1606
          %v1611 = vrsqrt.pop %v1525
          %v1612 = vmul.f32 %v1611, %v1525
          %v1613 = vmul.f32 %v1612, %v1611
          %v1614 = vmul.f32 0.5, %v1613
          %v1615 = vsub.f32 1.5, %v1614
          %v1616 = vmul.f32 %v1611, %v1615
          %vm1617 = vweird.f32 %v1525
          %vm1618 = vweird.f32 %v1611
          %vm1619 = vmor %vm1617, %vm1618
          %v1620 = vsel %vm1619, %v1611, %v1616
          %v1621 = vrsqrt.pop %v1526
          %v1622 = vmul.f32 %v1621, %v1526
          %v1623 = vmul.f32 %v1622, %v1621
          %v1624 = vmul.f32 0.5, %v1623
          %v1625 = vsub.f32 1.5, %v1624
          %v1626 = vmul.f32 %v1621, %v1625
          %vm1627 = vweird.f32 %v1526
          %vm1628 = vweird.f32 %v1621
          %vm1629 = vmor %vm1627, %vm1628
          %v1630 = vsel %vm1629, %v1621, %v1626
          %v1631 = vrsqrt.pop %v1527
          %v1632 = vmul.f32 %v1631, %v1527
          %v1633 = vmul.f32 %v1632, %v1631
          %v1634 = vmul.f32 0.5, %v1633
          %v1635 = vsub.f32 1.5, %v1634
          %v1636 = vmul.f32 %v1631, %v1635
          %vm1637 = vweird.f32 %v1527
          %vm1638 = vweird.f32 %v1631
          %vm1639 = vmor %vm1637, %vm1638
          %v1640 = vsel %vm1639, %v1631, %v1636
          %v1641 = vrsqrt.pop %v1528
          %v1642 = vmul.f32 %v1641, %v1528
          %v1643 = vmul.f32 %v1642, %v1641
          %v1644 = vmul.f32 0.5, %v1643
          %v1645 = vsub.f32 1.5, %v1644
          %v1646 = vmul.f32 %v1641, %v1645
          %vm1647 = vweird.f32 %v1528
          %vm1648 = vweird.f32 %v1641
          %vm1649 = vmor %vm1647, %vm1648
          %v1650 = vsel %vm1649, %v1641, %v1646
          %v1651 = vrsqrt.pop %v1529
          %v1652 = vmul.f32 %v1651, %v1529
          %v1653 = vmul.f32 %v1652, %v1651
          %v1654 = vmul.f32 0.5, %v1653
          %v1655 = vsub.f32 1.5, %v1654
          %v1656 = vmul.f32 %v1651, %v1655
          %vm1657 = vweird.f32 %v1529
          %vm1658 = vweird.f32 %v1651
          %vm1659 = vmor %vm1657, %vm1658
          %v1660 = vsel %vm1659, %v1651, %v1656
          %v1661 = vrsqrt.pop %v1530
          %v1662 = vmul.f32 %v1661, %v1530
          %v1663 = vmul.f32 %v1662, %v1661
          %v1664 = vmul.f32 0.5, %v1663
          %v1665 = vsub.f32 1.5, %v1664
          %v1666 = vmul.f32 %v1661, %v1665
          %vm1667 = vweird.f32 %v1530
          %vm1668 = vweird.f32 %v1661
          %vm1669 = vmor %vm1667, %vm1668
          %v1670 = vsel %vm1669, %v1661, %v1666
          %v1671 = vrsqrt.pop %v1531
          %v1672 = vmul.f32 %v1671, %v1531
          %v1673 = vmul.f32 %v1672, %v1671
          %v1674 = vmul.f32 0.5, %v1673
          %v1675 = vsub.f32 1.5, %v1674
          %v1676 = vmul.f32 %v1671, %v1675
          %vm1677 = vweird.f32 %v1531
          %vm1678 = vweird.f32 %v1671
          %vm1679 = vmor %vm1677, %vm1678
          %v1680 = vsel %vm1679, %v1671, %v1676
          %v1681 = vrsqrt.pop %v1532
          %v1682 = vmul.f32 %v1681, %v1532
          %v1683 = vmul.f32 %v1682, %v1681
          %v1684 = vmul.f32 0.5, %v1683
          %v1685 = vsub.f32 1.5, %v1684
          %v1686 = vmul.f32 %v1681, %v1685
          %vm1687 = vweird.f32 %v1532
          %vm1688 = vweird.f32 %v1681
          %vm1689 = vmor %vm1687, %vm1688
          %v1690 = vsel %vm1689, %v1681, %v1686
          %v1691 = vrsqrt.pop %v1533
          %v1692 = vmul.f32 %v1691, %v1533
          %v1693 = vmul.f32 %v1692, %v1691
          %v1694 = vmul.f32 0.5, %v1693
          %v1695 = vsub.f32 1.5, %v1694
          %v1696 = vmul.f32 %v1691, %v1695
          %vm1697 = vweird.f32 %v1533
          %vm1698 = vweird.f32 %v1691
          %vm1699 = vmor %vm1697, %vm1698
          %v1700 = vsel %vm1699, %v1691, %v1696
          %v1701 = vrsqrt.pop %v1534
          %v1702 = vmul.f32 %v1701, %v1534
          %v1703 = vmul.f32 %v1702, %v1701
          %v1704 = vmul.f32 0.5, %v1703
          %v1705 = vsub.f32 1.5, %v1704
          %v1706 = vmul.f32 %v1701, %v1705
          %vm1707 = vweird.f32 %v1534
          %vm1708 = vweird.f32 %v1701
          %vm1709 = vmor %vm1707, %vm1708
          %v1710 = vsel %vm1709, %v1701, %v1706
          %v1711 = vrsqrt.pop %v1535
          %v1712 = vmul.f32 %v1711, %v1535
          %v1713 = vmul.f32 %v1712, %v1711
          %v1714 = vmul.f32 0.5, %v1713
          %v1715 = vsub.f32 1.5, %v1714
          %v1716 = vmul.f32 %v1711, %v1715
          %vm1717 = vweird.f32 %v1535
          %vm1718 = vweird.f32 %v1711
          %vm1719 = vmor %vm1717, %vm1718
          %v1720 = vsel %vm1719, %v1711, %v1716
          %v1721 = vrsqrt.pop %v1536
          %v1722 = vmul.f32 %v1721, %v1536
          %v1723 = vmul.f32 %v1722, %v1721
          %v1724 = vmul.f32 0.5, %v1723
          %v1725 = vsub.f32 1.5, %v1724
          %v1726 = vmul.f32 %v1721, %v1725
          %vm1727 = vweird.f32 %v1536
          %vm1728 = vweird.f32 %v1721
          %vm1729 = vmor %vm1727, %vm1728
          %v1730 = vsel %vm1729, %v1721, %v1726
          %v1731 = vrsqrt.pop %v1537
          %v1732 = vmul.f32 %v1731, %v1537
          %v1733 = vmul.f32 %v1732, %v1731
          %v1734 = vmul.f32 0.5, %v1733
          %v1735 = vsub.f32 1.5, %v1734
          %v1736 = vmul.f32 %v1731, %v1735
          %vm1737 = vweird.f32 %v1537
          %vm1738 = vweird.f32 %v1731
          %vm1739 = vmor %vm1737, %vm1738
          %v1740 = vsel %vm1739, %v1731, %v1736
          %v1741 = vrsqrt.pop %v1538
          %v1742 = vmul.f32 %v1741, %v1538
          %v1743 = vmul.f32 %v1742, %v1741
          %v1744 = vmul.f32 0.5, %v1743
          %v1745 = vsub.f32 1.5, %v1744
          %v1746 = vmul.f32 %v1741, %v1745
          %vm1747 = vweird.f32 %v1538
          %vm1748 = vweird.f32 %v1741
          %vm1749 = vmor %vm1747, %vm1748
          %v1750 = vsel %vm1749, %v1741, %v1746
          %v1751 = vrsqrt.pop %v1539
          %v1752 = vmul.f32 %v1751, %v1539
          %v1753 = vmul.f32 %v1752, %v1751
          %v1754 = vmul.f32 0.5, %v1753
          %v1755 = vsub.f32 1.5, %v1754
          %v1756 = vmul.f32 %v1751, %v1755
          %vm1757 = vweird.f32 %v1539
          %vm1758 = vweird.f32 %v1751
          %vm1759 = vmor %vm1757, %vm1758
          %v1760 = vsel %vm1759, %v1751, %v1756
          %v1761 = vrsqrt.pop %v1540
          %v1762 = vmul.f32 %v1761, %v1540
          %v1763 = vmul.f32 %v1762, %v1761
          %v1764 = vmul.f32 0.5, %v1763
          %v1765 = vsub.f32 1.5, %v1764
          %v1766 = vmul.f32 %v1761, %v1765
          %vm1767 = vweird.f32 %v1540
          %vm1768 = vweird.f32 %v1761
          %vm1769 = vmor %vm1767, %vm1768
          %v1770 = vsel %vm1769, %v1761, %v1766
          %v1771 = vrsqrt.pop %v1541
          %v1772 = vmul.f32 %v1771, %v1541
          %v1773 = vmul.f32 %v1772, %v1771
          %v1774 = vmul.f32 0.5, %v1773
          %v1775 = vsub.f32 1.5, %v1774
          %v1776 = vmul.f32 %v1771, %v1775
          %vm1777 = vweird.f32 %v1541
          %vm1778 = vweird.f32 %v1771
          %vm1779 = vmor %vm1777, %vm1778
          %v1780 = vsel %vm1779, %v1771, %v1776
          %v1781 = vrsqrt.pop %v1542
          %v1782 = vmul.f32 %v1781, %v1542
          %v1783 = vmul.f32 %v1782, %v1781
          %v1784 = vmul.f32 0.5, %v1783
          %v1785 = vsub.f32 1.5, %v1784
          %v1786 = vmul.f32 %v1781, %v1785
          %vm1787 = vweird.f32 %v1542
          %vm1788 = vweird.f32 %v1781
          %vm1789 = vmor %vm1787, %vm1788
          %v1790 = vsel %vm1789, %v1781, %v1786
          %v1791 = vrsqrt.pop %v1543
          %v1792 = vmul.f32 %v1791, %v1543
          %v1793 = vmul.f32 %v1792, %v1791
          %v1794 = vmul.f32 0.5, %v1793
          %v1795 = vsub.f32 1.5, %v1794
          %v1796 = vmul.f32 %v1791, %v1795
          %vm1797 = vweird.f32 %v1543
          %vm1798 = vweird.f32 %v1791
          %vm1799 = vmor %vm1797, %vm1798
          %v1800 = vsel %vm1799, %v1791, %v1796
          %v1801 = vrsqrt.pop %v1544
          %v1802 = vmul.f32 %v1801, %v1544
          %v1803 = vmul.f32 %v1802, %v1801
          %v1804 = vmul.f32 0.5, %v1803
          %v1805 = vsub.f32 1.5, %v1804
          %v1806 = vmul.f32 %v1801, %v1805
          %vm1807 = vweird.f32 %v1544
          %vm1808 = vweird.f32 %v1801
          %vm1809 = vmor %vm1807, %vm1808
          %v1810 = vsel %vm1809, %v1801, %v1806
          %v1811 = vrsqrt.pop %v1545
          %v1812 = vmul.f32 %v1811, %v1545
          %v1813 = vmul.f32 %v1812, %v1811
          %v1814 = vmul.f32 0.5, %v1813
          %v1815 = vsub.f32 1.5, %v1814
          %v1816 = vmul.f32 %v1811, %v1815
          %vm1817 = vweird.f32 %v1545
          %vm1818 = vweird.f32 %v1811
          %vm1819 = vmor %vm1817, %vm1818
          %v1820 = vsel %vm1819, %v1811, %v1816
          %v1821 = vrsqrt.pop %v1546
          %v1822 = vmul.f32 %v1821, %v1546
          %v1823 = vmul.f32 %v1822, %v1821
          %v1824 = vmul.f32 0.5, %v1823
          %v1825 = vsub.f32 1.5, %v1824
          %v1826 = vmul.f32 %v1821, %v1825
          %vm1827 = vweird.f32 %v1546
          %vm1828 = vweird.f32 %v1821
          %vm1829 = vmor %vm1827, %vm1828
          %v1830 = vsel %vm1829, %v1821, %v1826
          %v1831 = vrsqrt.pop %v1547
          %v1832 = vmul.f32 %v1831, %v1547
          %v1833 = vmul.f32 %v1832, %v1831
          %v1834 = vmul.f32 0.5, %v1833
          %v1835 = vsub.f32 1.5, %v1834
          %v1836 = vmul.f32 %v1831, %v1835
          %vm1837 = vweird.f32 %v1547
          %vm1838 = vweird.f32 %v1831
          %vm1839 = vmor %vm1837, %vm1838
          %v1840 = vsel %vm1839, %v1831, %v1836
          %v1841 = vrsqrt.pop %v1548
          %v1842 = vmul.f32 %v1841, %v1548
          %v1843 = vmul.f32 %v1842, %v1841
          %v1844 = vmul.f32 0.5, %v1843
          %v1845 = vsub.f32 1.5, %v1844
          %v1846 = vmul.f32 %v1841, %v1845
          %vm1847 = vweird.f32 %v1548
          %vm1848 = vweird.f32 %v1841
          %vm1849 = vmor %vm1847, %vm1848
          %v1850 = vsel %vm1849, %v1841, %v1846
          %v1851 = vrsqrt.pop %v1549
          %v1852 = vmul.f32 %v1851, %v1549
          %v1853 = vmul.f32 %v1852, %v1851
          %v1854 = vmul.f32 0.5, %v1853
          %v1855 = vsub.f32 1.5, %v1854
          %v1856 = vmul.f32 %v1851, %v1855
          %vm1857 = vweird.f32 %v1549
          %vm1858 = vweird.f32 %v1851
          %vm1859 = vmor %vm1857, %vm1858
          %v1860 = vsel %vm1859, %v1851, %v1856
          %v1861 = vrsqrt.pop %v1550
          %v1862 = vmul.f32 %v1861, %v1550
          %v1863 = vmul.f32 %v1862, %v1861
          %v1864 = vmul.f32 0.5, %v1863
          %v1865 = vsub.f32 1.5, %v1864
          %v1866 = vmul.f32 %v1861, %v1865
          %vm1867 = vweird.f32 %v1550
          %vm1868 = vweird.f32 %v1861
          %vm1869 = vmor %vm1867, %vm1868
          %v1870 = vsel %vm1869, %v1861, %v1866
          %v1871 = vmul.f32 %v1391, %v1560
          %v1872 = vmul.f32 %v1392, %v1570
          %v1873 = vmul.f32 %v1393, %v1580
          %v1874 = vmul.f32 %v1394, %v1590
          %v1875 = vmul.f32 %v1395, %v1600
          %v1876 = vmul.f32 %v1396, %v1610
          %v1877 = vmul.f32 %v1397, %v1620
          %v1878 = vmul.f32 %v1398, %v1630
          %v1879 = vmul.f32 %v1399, %v1640
          %v1880 = vmul.f32 %v1400, %v1650
          %v1881 = vmul.f32 %v1401, %v1660
          %v1882 = vmul.f32 %v1402, %v1670
          %v1883 = vmul.f32 %v1403, %v1680
          %v1884 = vmul.f32 %v1404, %v1690
          %v1885 = vmul.f32 %v1405, %v1700
          %v1886 = vmul.f32 %v1406, %v1710
          %v1887 = vmul.f32 %v1407, %v1720
          %v1888 = vmul.f32 %v1408, %v1730
          %v1889 = vmul.f32 %v1409, %v1740
          %v1890 = vmul.f32 %v1410, %v1750
          %v1891 = vmul.f32 %v1411, %v1760
          %v1892 = vmul.f32 %v1412, %v1770
          %v1893 = vmul.f32 %v1413, %v1780
          %v1894 = vmul.f32 %v1414, %v1790
          %v1895 = vmul.f32 %v1415, %v1800
          %v1896 = vmul.f32 %v1416, %v1810
          %v1897 = vmul.f32 %v1417, %v1820
          %v1898 = vmul.f32 %v1418, %v1830
          %v1899 = vmul.f32 %v1419, %v1840
          %v1900 = vmul.f32 %v1420, %v1850
          %v1901 = vmul.f32 %v1421, %v1860
          %v1902 = vmul.f32 %v1422, %v1870
          %v1903 = vpack.c.bf16 %v1871, %v1871
          %v1904 = vpack.c.bf16 %v1872, %v1872
          %v1905 = vpack.c.bf16 %v1873, %v1873
          %v1906 = vpack.c.bf16 %v1874, %v1874
          %v1907 = vpack.c.bf16 %v1875, %v1875
          %v1908 = vpack.c.bf16 %v1876, %v1876
          %v1909 = vpack.c.bf16 %v1877, %v1877
          %v1910 = vpack.c.bf16 %v1878, %v1878
          %v1911 = vpack.c.bf16 %v1879, %v1879
          %v1912 = vpack.c.bf16 %v1880, %v1880
          %v1913 = vpack.c.bf16 %v1881, %v1881
          %v1914 = vpack.c.bf16 %v1882, %v1882
          %v1915 = vpack.c.bf16 %v1883, %v1883
          %v1916 = vpack.c.bf16 %v1884, %v1884
          %v1917 = vpack.c.bf16 %v1885, %v1885
          %v1918 = vpack.c.bf16 %v1886, %v1886
          %v1919 = vpack.c.bf16 %v1887, %v1887
          %v1920 = vpack.c.bf16 %v1888, %v1888
          %v1921 = vpack.c.bf16 %v1889, %v1889
          %v1922 = vpack.c.bf16 %v1890, %v1890
          %v1923 = vpack.c.bf16 %v1891, %v1891
          %v1924 = vpack.c.bf16 %v1892, %v1892
          %v1925 = vpack.c.bf16 %v1893, %v1893
          %v1926 = vpack.c.bf16 %v1894, %v1894
          %v1927 = vpack.c.bf16 %v1895, %v1895
          %v1928 = vpack.c.bf16 %v1896, %v1896
          %v1929 = vpack.c.bf16 %v1897, %v1897
          %v1930 = vpack.c.bf16 %v1898, %v1898
          %v1931 = vpack.c.bf16 %v1899, %v1899
          %v1932 = vpack.c.bf16 %v1900, %v1900
          %v1933 = vpack.c.bf16 %v1901, %v1901
          %v1934 = vpack.c.bf16 %v1902, %v1902
          %1935 = vst [vmem:[#allocation4] sm:$0xf] %v1903
          %1936 = vst [vmem:[#allocation4 + $0x4] sm:$0xf] %v1904
          %1937 = vst [vmem:[#allocation4 + $0x8] sm:$0xf] %v1905
          %1938 = vst [vmem:[#allocation4 + $0xc] sm:$0xf] %v1906
          %1939 = vst [vmem:[#allocation4 + $0x10] sm:$0xf] %v1907
          %1940 = vst [vmem:[#allocation4 + $0x14] sm:$0xf] %v1908
          %1941 = vst [vmem:[#allocation4 + $0x18] sm:$0xf] %v1909
          %1942 = vst [vmem:[#allocation4 + $0x1c] sm:$0xf] %v1910
          %1943 = vst [vmem:[#allocation4 + $0x20] sm:$0xf] %v1911
          %1944 = vst [vmem:[#allocation4 + $0x24] sm:$0xf] %v1912
          %1945 = vst [vmem:[#allocation4 + $0x28] sm:$0xf] %v1913
          %1946 = vst [vmem:[#allocation4 + $0x2c] sm:$0xf] %v1914
          %1947 = vst [vmem:[#allocation4 + $0x30] sm:$0xf] %v1915
          %1948 = vst [vmem:[#allocation4 + $0x34] sm:$0xf] %v1916
          %1949 = vst [vmem:[#allocation4 + $0x38] sm:$0xf] %v1917
          %1950 = vst [vmem:[#allocation4 + $0x3c] sm:$0xf] %v1918
          %1951 = vst [vmem:[#allocation4 + $0x40] sm:$0xf] %v1919
          %1952 = vst [vmem:[#allocation4 + $0x44] sm:$0xf] %v1920
          %1953 = vst [vmem:[#allocation4 + $0x48] sm:$0xf] %v1921
          %1954 = vst [vmem:[#allocation4 + $0x4c] sm:$0xf] %v1922
          %1955 = vst [vmem:[#allocation4 + $0x50] sm:$0xf] %v1923
          %1956 = vst [vmem:[#allocation4 + $0x54] sm:$0xf] %v1924
          %1957 = vst [vmem:[#allocation4 + $0x58] sm:$0xf] %v1925
          %1958 = vst [vmem:[#allocation4 + $0x5c] sm:$0xf] %v1926
          %1959 = vst [vmem:[#allocation4 + $0x60] sm:$0xf] %v1927
          %1960 = vst [vmem:[#allocation4 + $0x64] sm:$0xf] %v1928
          %1961 = vst [vmem:[#allocation4 + $0x68] sm:$0xf] %v1929
          %1962 = vst [vmem:[#allocation4 + $0x6c] sm:$0xf] %v1930
          %1963 = vst [vmem:[#allocation4 + $0x70] sm:$0xf] %v1931
          %1964 = vst [vmem:[#allocation4 + $0x74] sm:$0xf] %v1932
          %1965 = vst [vmem:[#allocation4 + $0x78] sm:$0xf] %v1933
          %1966 = vst [vmem:[#allocation4 + $0x7c] sm:$0xf] %v1934
          %v1967 = vld [vmem:[#allocation13] sm:$0xff]
          %v1968 = vld [vmem:[#allocation13 + $0x8] sm:$0xff]
          %v1969 = vld [vmem:[#allocation13 + $0x10] sm:$0xff]
          %v1970 = vld [vmem:[#allocation13 + $0x18] sm:$0xff]
          %v1971 = vld [vmem:[#allocation13 + $0x20] sm:$0xff]
          %v1972 = vld [vmem:[#allocation13 + $0x28] sm:$0xff]
          %v1973 = vld [vmem:[#allocation13 + $0x30] sm:$0xff]
          %v1974 = vld [vmem:[#allocation13 + $0x38] sm:$0xff]
          %v1975 = vld [vmem:[#allocation13 + $0x40] sm:$0xff]
          %v1976 = vld [vmem:[#allocation13 + $0x48] sm:$0xff]
          %v1977 = vld [vmem:[#allocation13 + $0x50] sm:$0xff]
          %v1978 = vld [vmem:[#allocation13 + $0x58] sm:$0xff]
          %v1979 = vld [vmem:[#allocation13 + $0x60] sm:$0xff]
          %v1980 = vld [vmem:[#allocation13 + $0x68] sm:$0xff]
          %v1981 = vld [vmem:[#allocation13 + $0x70] sm:$0xff]
          %v1982 = vld [vmem:[#allocation13 + $0x78] sm:$0xff]
          %v1983 = vld [vmem:[#allocation13 + $0x80] sm:$0xff]
          %v1984 = vld [vmem:[#allocation13 + $0x88] sm:$0xff]
          %v1985 = vld [vmem:[#allocation13 + $0x90] sm:$0xff]
          %v1986 = vld [vmem:[#allocation13 + $0x98] sm:$0xff]
          %v1987 = vld [vmem:[#allocation13 + $0xa0] sm:$0xff]
          %v1988 = vld [vmem:[#allocation13 + $0xa8] sm:$0xff]
          %v1989 = vld [vmem:[#allocation13 + $0xb0] sm:$0xff]
          %v1990 = vld [vmem:[#allocation13 + $0xb8] sm:$0xff]
          %v1991 = vld [vmem:[#allocation13 + $0xc0] sm:$0xff]
          %v1992 = vld [vmem:[#allocation13 + $0xc8] sm:$0xff]
          %v1993 = vld [vmem:[#allocation13 + $0xd0] sm:$0xff]
          %v1994 = vld [vmem:[#allocation13 + $0xd8] sm:$0xff]
          %v1995 = vld [vmem:[#allocation13 + $0xe0] sm:$0xff]
          %v1996 = vld [vmem:[#allocation13 + $0xe8] sm:$0xff]
          %v1997 = vld [vmem:[#allocation13 + $0xf0] sm:$0xff]
          %v1998 = vld [vmem:[#allocation13 + $0xf8] sm:$0xff]
          %v1999 = vmul.f32 %v1967, %v1967
          %v2000 = vmul.f32 %v1968, %v1968
          %v2001 = vmul.f32 %v1969, %v1969
          %v2002 = vmul.f32 %v1970, %v1970
          %v2003 = vmul.f32 %v1971, %v1971
          %v2004 = vmul.f32 %v1972, %v1972
          %v2005 = vmul.f32 %v1973, %v1973
          %v2006 = vmul.f32 %v1974, %v1974
          %v2007 = vmul.f32 %v1975, %v1975
          %v2008 = vmul.f32 %v1976, %v1976
          %v2009 = vmul.f32 %v1977, %v1977
          %v2010 = vmul.f32 %v1978, %v1978
          %v2011 = vmul.f32 %v1979, %v1979
          %v2012 = vmul.f32 %v1980, %v1980
          %v2013 = vmul.f32 %v1981, %v1981
          %v2014 = vmul.f32 %v1982, %v1982
          %v2015 = vmul.f32 %v1983, %v1983
          %v2016 = vmul.f32 %v1984, %v1984
          %v2017 = vmul.f32 %v1985, %v1985
          %v2018 = vmul.f32 %v1986, %v1986
          %v2019 = vmul.f32 %v1987, %v1987
          %v2020 = vmul.f32 %v1988, %v1988
          %v2021 = vmul.f32 %v1989, %v1989
          %v2022 = vmul.f32 %v1990, %v1990
          %v2023 = vmul.f32 %v1991, %v1991
          %v2024 = vmul.f32 %v1992, %v1992
          %v2025 = vmul.f32 %v1993, %v1993
          %v2026 = vmul.f32 %v1994, %v1994
          %v2027 = vmul.f32 %v1995, %v1995
          %v2028 = vmul.f32 %v1996, %v1996
          %v2029 = vmul.f32 %v1997, %v1997
          %v2030 = vmul.f32 %v1998, %v1998
          %2031 = vadd.xlane.f32.xlu0 %v1999
          %v2032 = vpop.xlane.xlu0 %2031
          %2033 = vadd.xlane.f32.xlu0 %v2000
          %v2034 = vpop.xlane.xlu0 %2033
          %2035 = vadd.xlane.f32.xlu0 %v2001
          %v2036 = vpop.xlane.xlu0 %2035
          %2037 = vadd.xlane.f32.xlu0 %v2002
          %v2038 = vpop.xlane.xlu0 %2037
          %2039 = vadd.xlane.f32.xlu0 %v2003
          %v2040 = vpop.xlane.xlu0 %2039
          %2041 = vadd.xlane.f32.xlu0 %v2004
          %v2042 = vpop.xlane.xlu0 %2041
          %2043 = vadd.xlane.f32.xlu0 %v2005
          %v2044 = vpop.xlane.xlu0 %2043
          %2045 = vadd.xlane.f32.xlu0 %v2006
          %v2046 = vpop.xlane.xlu0 %2045
          %2047 = vadd.xlane.f32.xlu0 %v2007
          %v2048 = vpop.xlane.xlu0 %2047
          %2049 = vadd.xlane.f32.xlu0 %v2008
          %v2050 = vpop.xlane.xlu0 %2049
          %2051 = vadd.xlane.f32.xlu0 %v2009
          %v2052 = vpop.xlane.xlu0 %2051
          %2053 = vadd.xlane.f32.xlu0 %v2010
          %v2054 = vpop.xlane.xlu0 %2053
          %2055 = vadd.xlane.f32.xlu0 %v2011
          %v2056 = vpop.xlane.xlu0 %2055
          %2057 = vadd.xlane.f32.xlu0 %v2012
          %v2058 = vpop.xlane.xlu0 %2057
          %2059 = vadd.xlane.f32.xlu0 %v2013
          %v2060 = vpop.xlane.xlu0 %2059
          %2061 = vadd.xlane.f32.xlu0 %v2014
          %v2062 = vpop.xlane.xlu0 %2061
          %2063 = vadd.xlane.f32.xlu0 %v2015
          %v2064 = vpop.xlane.xlu0 %2063
          %2065 = vadd.xlane.f32.xlu0 %v2016
          %v2066 = vpop.xlane.xlu0 %2065
          %2067 = vadd.xlane.f32.xlu0 %v2017
          %v2068 = vpop.xlane.xlu0 %2067
          %2069 = vadd.xlane.f32.xlu0 %v2018
          %v2070 = vpop.xlane.xlu0 %2069
          %2071 = vadd.xlane.f32.xlu0 %v2019
          %v2072 = vpop.xlane.xlu0 %2071
          %2073 = vadd.xlane.f32.xlu0 %v2020
          %v2074 = vpop.xlane.xlu0 %2073
          %2075 = vadd.xlane.f32.xlu0 %v2021
          %v2076 = vpop.xlane.xlu0 %2075
          %2077 = vadd.xlane.f32.xlu0 %v2022
          %v2078 = vpop.xlane.xlu0 %2077
          %2079 = vadd.xlane.f32.xlu0 %v2023
          %v2080 = vpop.xlane.xlu0 %2079
          %2081 = vadd.xlane.f32.xlu0 %v2024
          %v2082 = vpop.xlane.xlu0 %2081
          %2083 = vadd.xlane.f32.xlu0 %v2025
          %v2084 = vpop.xlane.xlu0 %2083
          %2085 = vadd.xlane.f32.xlu0 %v2026
          %v2086 = vpop.xlane.xlu0 %2085
          %2087 = vadd.xlane.f32.xlu0 %v2027
          %v2088 = vpop.xlane.xlu0 %2087
          %2089 = vadd.xlane.f32.xlu0 %v2028
          %v2090 = vpop.xlane.xlu0 %2089
          %2091 = vadd.xlane.f32.xlu0 %v2029
          %v2092 = vpop.xlane.xlu0 %2091
          %2093 = vadd.xlane.f32.xlu0 %v2030
          %v2094 = vpop.xlane.xlu0 %2093
          %v2095 = vmax.f32 %v2032, 1e-24
          %v2096 = vmax.f32 %v2034, 1e-24
          %v2097 = vmax.f32 %v2036, 1e-24
          %v2098 = vmax.f32 %v2038, 1e-24
          %v2099 = vmax.f32 %v2040, 1e-24
          %v2100 = vmax.f32 %v2042, 1e-24
          %v2101 = vmax.f32 %v2044, 1e-24
          %v2102 = vmax.f32 %v2046, 1e-24
          %v2103 = vmax.f32 %v2048, 1e-24
          %v2104 = vmax.f32 %v2050, 1e-24
          %v2105 = vmax.f32 %v2052, 1e-24
          %v2106 = vmax.f32 %v2054, 1e-24
          %v2107 = vmax.f32 %v2056, 1e-24
          %v2108 = vmax.f32 %v2058, 1e-24
          %v2109 = vmax.f32 %v2060, 1e-24
          %v2110 = vmax.f32 %v2062, 1e-24
          %v2111 = vmax.f32 %v2064, 1e-24
          %v2112 = vmax.f32 %v2066, 1e-24
          %v2113 = vmax.f32 %v2068, 1e-24
          %v2114 = vmax.f32 %v2070, 1e-24
          %v2115 = vmax.f32 %v2072, 1e-24
          %v2116 = vmax.f32 %v2074, 1e-24
          %v2117 = vmax.f32 %v2076, 1e-24
          %v2118 = vmax.f32 %v2078, 1e-24
          %v2119 = vmax.f32 %v2080, 1e-24
          %v2120 = vmax.f32 %v2082, 1e-24
          %v2121 = vmax.f32 %v2084, 1e-24
          %v2122 = vmax.f32 %v2086, 1e-24
          %v2123 = vmax.f32 %v2088, 1e-24
          %v2124 = vmax.f32 %v2090, 1e-24
          %v2125 = vmax.f32 %v2092, 1e-24
          %v2126 = vmax.f32 %v2094, 1e-24
          %v2127 = vrsqrt.pop %v2095
          %v2128 = vmul.f32 %v2127, %v2095
          %v2129 = vmul.f32 %v2128, %v2127
          %v2130 = vmul.f32 0.5, %v2129
          %v2131 = vsub.f32 1.5, %v2130
          %v2132 = vmul.f32 %v2127, %v2131
          %vm2133 = vweird.f32 %v2095
          %vm2134 = vweird.f32 %v2127
          %vm2135 = vmor %vm2133, %vm2134
          %v2136 = vsel %vm2135, %v2127, %v2132
          %v2137 = vrsqrt.pop %v2096
          %v2138 = vmul.f32 %v2137, %v2096
          %v2139 = vmul.f32 %v2138, %v2137
          %v2140 = vmul.f32 0.5, %v2139
          %v2141 = vsub.f32 1.5, %v2140
          %v2142 = vmul.f32 %v2137, %v2141
          %vm2143 = vweird.f32 %v2096
          %vm2144 = vweird.f32 %v2137
          %vm2145 = vmor %vm2143, %vm2144
          %v2146 = vsel %vm2145, %v2137, %v2142
          %v2147 = vrsqrt.pop %v2097
          %v2148 = vmul.f32 %v2147, %v2097
          %v2149 = vmul.f32 %v2148, %v2147
          %v2150 = vmul.f32 0.5, %v2149
          %v2151 = vsub.f32 1.5, %v2150
          %v2152 = vmul.f32 %v2147, %v2151
          %vm2153 = vweird.f32 %v2097
          %vm2154 = vweird.f32 %v2147
          %vm2155 = vmor %vm2153, %vm2154
          %v2156 = vsel %vm2155, %v2147, %v2152
          %v2157 = vrsqrt.pop %v2098
          %v2158 = vmul.f32 %v2157, %v2098
          %v2159 = vmul.f32 %v2158, %v2157
          %v2160 = vmul.f32 0.5, %v2159
          %v2161 = vsub.f32 1.5, %v2160
          %v2162 = vmul.f32 %v2157, %v2161
          %vm2163 = vweird.f32 %v2098
          %vm2164 = vweird.f32 %v2157
          %vm2165 = vmor %vm2163, %vm2164
          %v2166 = vsel %vm2165, %v2157, %v2162
          %v2167 = vrsqrt.pop %v2099
          %v2168 = vmul.f32 %v2167, %v2099
          %v2169 = vmul.f32 %v2168, %v2167
          %v2170 = vmul.f32 0.5, %v2169
          %v2171 = vsub.f32 1.5, %v2170
          %v2172 = vmul.f32 %v2167, %v2171
          %vm2173 = vweird.f32 %v2099
          %vm2174 = vweird.f32 %v2167
          %vm2175 = vmor %vm2173, %vm2174
          %v2176 = vsel %vm2175, %v2167, %v2172
          %v2177 = vrsqrt.pop %v2100
          %v2178 = vmul.f32 %v2177, %v2100
          %v2179 = vmul.f32 %v2178, %v2177
          %v2180 = vmul.f32 0.5, %v2179
          %v2181 = vsub.f32 1.5, %v2180
          %v2182 = vmul.f32 %v2177, %v2181
          %vm2183 = vweird.f32 %v2100
          %vm2184 = vweird.f32 %v2177
          %vm2185 = vmor %vm2183, %vm2184
          %v2186 = vsel %vm2185, %v2177, %v2182
          %v2187 = vrsqrt.pop %v2101
          %v2188 = vmul.f32 %v2187, %v2101
          %v2189 = vmul.f32 %v2188, %v2187
          %v2190 = vmul.f32 0.5, %v2189
          %v2191 = vsub.f32 1.5, %v2190
          %v2192 = vmul.f32 %v2187, %v2191
          %vm2193 = vweird.f32 %v2101
          %vm2194 = vweird.f32 %v2187
          %vm2195 = vmor %vm2193, %vm2194
          %v2196 = vsel %vm2195, %v2187, %v2192
          %v2197 = vrsqrt.pop %v2102
          %v2198 = vmul.f32 %v2197, %v2102
          %v2199 = vmul.f32 %v2198, %v2197
          %v2200 = vmul.f32 0.5, %v2199
          %v2201 = vsub.f32 1.5, %v2200
          %v2202 = vmul.f32 %v2197, %v2201
          %vm2203 = vweird.f32 %v2102
          %vm2204 = vweird.f32 %v2197
          %vm2205 = vmor %vm2203, %vm2204
          %v2206 = vsel %vm2205, %v2197, %v2202
          %v2207 = vrsqrt.pop %v2103
          %v2208 = vmul.f32 %v2207, %v2103
          %v2209 = vmul.f32 %v2208, %v2207
          %v2210 = vmul.f32 0.5, %v2209
          %v2211 = vsub.f32 1.5, %v2210
          %v2212 = vmul.f32 %v2207, %v2211
          %vm2213 = vweird.f32 %v2103
          %vm2214 = vweird.f32 %v2207
          %vm2215 = vmor %vm2213, %vm2214
          %v2216 = vsel %vm2215, %v2207, %v2212
          %v2217 = vrsqrt.pop %v2104
          %v2218 = vmul.f32 %v2217, %v2104
          %v2219 = vmul.f32 %v2218, %v2217
          %v2220 = vmul.f32 0.5, %v2219
          %v2221 = vsub.f32 1.5, %v2220
          %v2222 = vmul.f32 %v2217, %v2221
          %vm2223 = vweird.f32 %v2104
          %vm2224 = vweird.f32 %v2217
          %vm2225 = vmor %vm2223, %vm2224
          %v2226 = vsel %vm2225, %v2217, %v2222
          %v2227 = vrsqrt.pop %v2105
          %v2228 = vmul.f32 %v2227, %v2105
          %v2229 = vmul.f32 %v2228, %v2227
          %v2230 = vmul.f32 0.5, %v2229
          %v2231 = vsub.f32 1.5, %v2230
          %v2232 = vmul.f32 %v2227, %v2231
          %vm2233 = vweird.f32 %v2105
          %vm2234 = vweird.f32 %v2227
          %vm2235 = vmor %vm2233, %vm2234
          %v2236 = vsel %vm2235, %v2227, %v2232
          %v2237 = vrsqrt.pop %v2106
          %v2238 = vmul.f32 %v2237, %v2106
          %v2239 = vmul.f32 %v2238, %v2237
          %v2240 = vmul.f32 0.5, %v2239
          %v2241 = vsub.f32 1.5, %v2240
          %v2242 = vmul.f32 %v2237, %v2241
          %vm2243 = vweird.f32 %v2106
          %vm2244 = vweird.f32 %v2237
          %vm2245 = vmor %vm2243, %vm2244
          %v2246 = vsel %vm2245, %v2237, %v2242
          %v2247 = vrsqrt.pop %v2107
          %v2248 = vmul.f32 %v2247, %v2107
          %v2249 = vmul.f32 %v2248, %v2247
          %v2250 = vmul.f32 0.5, %v2249
          %v2251 = vsub.f32 1.5, %v2250
          %v2252 = vmul.f32 %v2247, %v2251
          %vm2253 = vweird.f32 %v2107
          %vm2254 = vweird.f32 %v2247
          %vm2255 = vmor %vm2253, %vm2254
          %v2256 = vsel %vm2255, %v2247, %v2252
          %v2257 = vrsqrt.pop %v2108
          %v2258 = vmul.f32 %v2257, %v2108
          %v2259 = vmul.f32 %v2258, %v2257
          %v2260 = vmul.f32 0.5, %v2259
          %v2261 = vsub.f32 1.5, %v2260
          %v2262 = vmul.f32 %v2257, %v2261
          %vm2263 = vweird.f32 %v2108
          %vm2264 = vweird.f32 %v2257
          %vm2265 = vmor %vm2263, %vm2264
          %v2266 = vsel %vm2265, %v2257, %v2262
          %v2267 = vrsqrt.pop %v2109
          %v2268 = vmul.f32 %v2267, %v2109
          %v2269 = vmul.f32 %v2268, %v2267
          %v2270 = vmul.f32 0.5, %v2269
          %v2271 = vsub.f32 1.5, %v2270
          %v2272 = vmul.f32 %v2267, %v2271
          %vm2273 = vweird.f32 %v2109
          %vm2274 = vweird.f32 %v2267
          %vm2275 = vmor %vm2273, %vm2274
          %v2276 = vsel %vm2275, %v2267, %v2272
          %v2277 = vrsqrt.pop %v2110
          %v2278 = vmul.f32 %v2277, %v2110
          %v2279 = vmul.f32 %v2278, %v2277
          %v2280 = vmul.f32 0.5, %v2279
          %v2281 = vsub.f32 1.5, %v2280
          %v2282 = vmul.f32 %v2277, %v2281
          %vm2283 = vweird.f32 %v2110
          %vm2284 = vweird.f32 %v2277
          %vm2285 = vmor %vm2283, %vm2284
          %v2286 = vsel %vm2285, %v2277, %v2282
          %v2287 = vrsqrt.pop %v2111
          %v2288 = vmul.f32 %v2287, %v2111
          %v2289 = vmul.f32 %v2288, %v2287
          %v2290 = vmul.f32 0.5, %v2289
          %v2291 = vsub.f32 1.5, %v2290
          %v2292 = vmul.f32 %v2287, %v2291
          %vm2293 = vweird.f32 %v2111
          %vm2294 = vweird.f32 %v2287
          %vm2295 = vmor %vm2293, %vm2294
          %v2296 = vsel %vm2295, %v2287, %v2292
          %v2297 = vrsqrt.pop %v2112
          %v2298 = vmul.f32 %v2297, %v2112
          %v2299 = vmul.f32 %v2298, %v2297
          %v2300 = vmul.f32 0.5, %v2299
          %v2301 = vsub.f32 1.5, %v2300
          %v2302 = vmul.f32 %v2297, %v2301
          %vm2303 = vweird.f32 %v2112
          %vm2304 = vweird.f32 %v2297
          %vm2305 = vmor %vm2303, %vm2304
          %v2306 = vsel %vm2305, %v2297, %v2302
          %v2307 = vrsqrt.pop %v2113
          %v2308 = vmul.f32 %v2307, %v2113
          %v2309 = vmul.f32 %v2308, %v2307
          %v2310 = vmul.f32 0.5, %v2309
          %v2311 = vsub.f32 1.5, %v2310
          %v2312 = vmul.f32 %v2307, %v2311
          %vm2313 = vweird.f32 %v2113
          %vm2314 = vweird.f32 %v2307
          %vm2315 = vmor %vm2313, %vm2314
          %v2316 = vsel %vm2315, %v2307, %v2312
          %v2317 = vrsqrt.pop %v2114
          %v2318 = vmul.f32 %v2317, %v2114
          %v2319 = vmul.f32 %v2318, %v2317
          %v2320 = vmul.f32 0.5, %v2319
          %v2321 = vsub.f32 1.5, %v2320
          %v2322 = vmul.f32 %v2317, %v2321
          %vm2323 = vweird.f32 %v2114
          %vm2324 = vweird.f32 %v2317
          %vm2325 = vmor %vm2323, %vm2324
          %v2326 = vsel %vm2325, %v2317, %v2322
          %v2327 = vrsqrt.pop %v2115
          %v2328 = vmul.f32 %v2327, %v2115
          %v2329 = vmul.f32 %v2328, %v2327
          %v2330 = vmul.f32 0.5, %v2329
          %v2331 = vsub.f32 1.5, %v2330
          %v2332 = vmul.f32 %v2327, %v2331
          %vm2333 = vweird.f32 %v2115
          %vm2334 = vweird.f32 %v2327
          %vm2335 = vmor %vm2333, %vm2334
          %v2336 = vsel %vm2335, %v2327, %v2332
          %v2337 = vrsqrt.pop %v2116
          %v2338 = vmul.f32 %v2337, %v2116
          %v2339 = vmul.f32 %v2338, %v2337
          %v2340 = vmul.f32 0.5, %v2339
          %v2341 = vsub.f32 1.5, %v2340
          %v2342 = vmul.f32 %v2337, %v2341
          %vm2343 = vweird.f32 %v2116
          %vm2344 = vweird.f32 %v2337
          %vm2345 = vmor %vm2343, %vm2344
          %v2346 = vsel %vm2345, %v2337, %v2342
          %v2347 = vrsqrt.pop %v2117
          %v2348 = vmul.f32 %v2347, %v2117
          %v2349 = vmul.f32 %v2348, %v2347
          %v2350 = vmul.f32 0.5, %v2349
          %v2351 = vsub.f32 1.5, %v2350
          %v2352 = vmul.f32 %v2347, %v2351
          %vm2353 = vweird.f32 %v2117
          %vm2354 = vweird.f32 %v2347
          %vm2355 = vmor %vm2353, %vm2354
          %v2356 = vsel %vm2355, %v2347, %v2352
          %v2357 = vrsqrt.pop %v2118
          %v2358 = vmul.f32 %v2357, %v2118
          %v2359 = vmul.f32 %v2358, %v2357
          %v2360 = vmul.f32 0.5, %v2359
          %v2361 = vsub.f32 1.5, %v2360
          %v2362 = vmul.f32 %v2357, %v2361
          %vm2363 = vweird.f32 %v2118
          %vm2364 = vweird.f32 %v2357
          %vm2365 = vmor %vm2363, %vm2364
          %v2366 = vsel %vm2365, %v2357, %v2362
          %v2367 = vrsqrt.pop %v2119
          %v2368 = vmul.f32 %v2367, %v2119
          %v2369 = vmul.f32 %v2368, %v2367
          %v2370 = vmul.f32 0.5, %v2369
          %v2371 = vsub.f32 1.5, %v2370
          %v2372 = vmul.f32 %v2367, %v2371
          %vm2373 = vweird.f32 %v2119
          %vm2374 = vweird.f32 %v2367
          %vm2375 = vmor %vm2373, %vm2374
          %v2376 = vsel %vm2375, %v2367, %v2372
          %v2377 = vrsqrt.pop %v2120
          %v2378 = vmul.f32 %v2377, %v2120
          %v2379 = vmul.f32 %v2378, %v2377
          %v2380 = vmul.f32 0.5, %v2379
          %v2381 = vsub.f32 1.5, %v2380
          %v2382 = vmul.f32 %v2377, %v2381
          %vm2383 = vweird.f32 %v2120
          %vm2384 = vweird.f32 %v2377
          %vm2385 = vmor %vm2383, %vm2384
          %v2386 = vsel %vm2385, %v2377, %v2382
          %v2387 = vrsqrt.pop %v2121
          %v2388 = vmul.f32 %v2387, %v2121
          %v2389 = vmul.f32 %v2388, %v2387
          %v2390 = vmul.f32 0.5, %v2389
          %v2391 = vsub.f32 1.5, %v2390
          %v2392 = vmul.f32 %v2387, %v2391
          %vm2393 = vweird.f32 %v2121
          %vm2394 = vweird.f32 %v2387
          %vm2395 = vmor %vm2393, %vm2394
          %v2396 = vsel %vm2395, %v2387, %v2392
          %v2397 = vrsqrt.pop %v2122
          %v2398 = vmul.f32 %v2397, %v2122
          %v2399 = vmul.f32 %v2398, %v2397
          %v2400 = vmul.f32 0.5, %v2399
          %v2401 = vsub.f32 1.5, %v2400
          %v2402 = vmul.f32 %v2397, %v2401
          %vm2403 = vweird.f32 %v2122
          %vm2404 = vweird.f32 %v2397
          %vm2405 = vmor %vm2403, %vm2404
          %v2406 = vsel %vm2405, %v2397, %v2402
          %v2407 = vrsqrt.pop %v2123
          %v2408 = vmul.f32 %v2407, %v2123
          %v2409 = vmul.f32 %v2408, %v2407
          %v2410 = vmul.f32 0.5, %v2409
          %v2411 = vsub.f32 1.5, %v2410
          %v2412 = vmul.f32 %v2407, %v2411
          %vm2413 = vweird.f32 %v2123
          %vm2414 = vweird.f32 %v2407
          %vm2415 = vmor %vm2413, %vm2414
          %v2416 = vsel %vm2415, %v2407, %v2412
          %v2417 = vrsqrt.pop %v2124
          %v2418 = vmul.f32 %v2417, %v2124
          %v2419 = vmul.f32 %v2418, %v2417
          %v2420 = vmul.f32 0.5, %v2419
          %v2421 = vsub.f32 1.5, %v2420
          %v2422 = vmul.f32 %v2417, %v2421
          %vm2423 = vweird.f32 %v2124
          %vm2424 = vweird.f32 %v2417
          %vm2425 = vmor %vm2423, %vm2424
          %v2426 = vsel %vm2425, %v2417, %v2422
          %v2427 = vrsqrt.pop %v2125
          %v2428 = vmul.f32 %v2427, %v2125
          %v2429 = vmul.f32 %v2428, %v2427
          %v2430 = vmul.f32 0.5, %v2429
          %v2431 = vsub.f32 1.5, %v2430
          %v2432 = vmul.f32 %v2427, %v2431
          %vm2433 = vweird.f32 %v2125
          %vm2434 = vweird.f32 %v2427
          %vm2435 = vmor %vm2433, %vm2434
          %v2436 = vsel %vm2435, %v2427, %v2432
          %v2437 = vrsqrt.pop %v2126
          %v2438 = vmul.f32 %v2437, %v2126
          %v2439 = vmul.f32 %v2438, %v2437
          %v2440 = vmul.f32 0.5, %v2439
          %v2441 = vsub.f32 1.5, %v2440
          %v2442 = vmul.f32 %v2437, %v2441
          %vm2443 = vweird.f32 %v2126
          %vm2444 = vweird.f32 %v2437
          %vm2445 = vmor %vm2443, %vm2444
          %v2446 = vsel %vm2445, %v2437, %v2442
          %v2447 = vmul.f32 %v1967, %v2136
          %v2448 = vmul.f32 %v1968, %v2146
          %v2449 = vmul.f32 %v1969, %v2156
          %v2450 = vmul.f32 %v1970, %v2166
          %v2451 = vmul.f32 %v1971, %v2176
          %v2452 = vmul.f32 %v1972, %v2186
          %v2453 = vmul.f32 %v1973, %v2196
          %v2454 = vmul.f32 %v1974, %v2206
          %v2455 = vmul.f32 %v1975, %v2216
          %v2456 = vmul.f32 %v1976, %v2226
          %v2457 = vmul.f32 %v1977, %v2236
          %v2458 = vmul.f32 %v1978, %v2246
          %v2459 = vmul.f32 %v1979, %v2256
          %v2460 = vmul.f32 %v1980, %v2266
          %v2461 = vmul.f32 %v1981, %v2276
          %v2462 = vmul.f32 %v1982, %v2286
          %v2463 = vmul.f32 %v1983, %v2296
          %v2464 = vmul.f32 %v1984, %v2306
          %v2465 = vmul.f32 %v1985, %v2316
          %v2466 = vmul.f32 %v1986, %v2326
          %v2467 = vmul.f32 %v1987, %v2336
          %v2468 = vmul.f32 %v1988, %v2346
          %v2469 = vmul.f32 %v1989, %v2356
          %v2470 = vmul.f32 %v1990, %v2366
          %v2471 = vmul.f32 %v1991, %v2376
          %v2472 = vmul.f32 %v1992, %v2386
          %v2473 = vmul.f32 %v1993, %v2396
          %v2474 = vmul.f32 %v1994, %v2406
          %v2475 = vmul.f32 %v1995, %v2416
          %v2476 = vmul.f32 %v1996, %v2426
          %v2477 = vmul.f32 %v1997, %v2436
          %v2478 = vmul.f32 %v1998, %v2446
          %v2479 = vpack.c.bf16 %v2447, %v2447
          %v2480 = vpack.c.bf16 %v2448, %v2448
          %v2481 = vpack.c.bf16 %v2449, %v2449
          %v2482 = vpack.c.bf16 %v2450, %v2450
          %v2483 = vpack.c.bf16 %v2451, %v2451
          %v2484 = vpack.c.bf16 %v2452, %v2452
          %v2485 = vpack.c.bf16 %v2453, %v2453
          %v2486 = vpack.c.bf16 %v2454, %v2454
          %v2487 = vpack.c.bf16 %v2455, %v2455
          %v2488 = vpack.c.bf16 %v2456, %v2456
          %v2489 = vpack.c.bf16 %v2457, %v2457
          %v2490 = vpack.c.bf16 %v2458, %v2458
          %v2491 = vpack.c.bf16 %v2459, %v2459
          %v2492 = vpack.c.bf16 %v2460, %v2460
          %v2493 = vpack.c.bf16 %v2461, %v2461
          %v2494 = vpack.c.bf16 %v2462, %v2462
          %v2495 = vpack.c.bf16 %v2463, %v2463
          %v2496 = vpack.c.bf16 %v2464, %v2464
          %v2497 = vpack.c.bf16 %v2465, %v2465
          %v2498 = vpack.c.bf16 %v2466, %v2466
          %v2499 = vpack.c.bf16 %v2467, %v2467
          %v2500 = vpack.c.bf16 %v2468, %v2468
          %v2501 = vpack.c.bf16 %v2469, %v2469
          %v2502 = vpack.c.bf16 %v2470, %v2470
          %v2503 = vpack.c.bf16 %v2471, %v2471
          %v2504 = vpack.c.bf16 %v2472, %v2472
          %v2505 = vpack.c.bf16 %v2473, %v2473
          %v2506 = vpack.c.bf16 %v2474, %v2474
          %v2507 = vpack.c.bf16 %v2475, %v2475
          %v2508 = vpack.c.bf16 %v2476, %v2476
          %v2509 = vpack.c.bf16 %v2477, %v2477
          %v2510 = vpack.c.bf16 %v2478, %v2478
          %2511 = vst [vmem:[#allocation5] sm:$0xf] %v2479
          %2512 = vst [vmem:[#allocation5 + $0x4] sm:$0xf] %v2480
          %2513 = vst [vmem:[#allocation5 + $0x8] sm:$0xf] %v2481
          %2514 = vst [vmem:[#allocation5 + $0xc] sm:$0xf] %v2482
          %2515 = vst [vmem:[#allocation5 + $0x10] sm:$0xf] %v2483
          %2516 = vst [vmem:[#allocation5 + $0x14] sm:$0xf] %v2484
          %2517 = vst [vmem:[#allocation5 + $0x18] sm:$0xf] %v2485
          %2518 = vst [vmem:[#allocation5 + $0x1c] sm:$0xf] %v2486
          %2519 = vst [vmem:[#allocation5 + $0x20] sm:$0xf] %v2487
          %2520 = vst [vmem:[#allocation5 + $0x24] sm:$0xf] %v2488
          %2521 = vst [vmem:[#allocation5 + $0x28] sm:$0xf] %v2489
          %2522 = vst [vmem:[#allocation5 + $0x2c] sm:$0xf] %v2490
          %2523 = vst [vmem:[#allocation5 + $0x30] sm:$0xf] %v2491
          %2524 = vst [vmem:[#allocation5 + $0x34] sm:$0xf] %v2492
          %2525 = vst [vmem:[#allocation5 + $0x38] sm:$0xf] %v2493
          %2526 = vst [vmem:[#allocation5 + $0x3c] sm:$0xf] %v2494
          %2527 = vst [vmem:[#allocation5 + $0x40] sm:$0xf] %v2495
          %2528 = vst [vmem:[#allocation5 + $0x44] sm:$0xf] %v2496
          %2529 = vst [vmem:[#allocation5 + $0x48] sm:$0xf] %v2497
          %2530 = vst [vmem:[#allocation5 + $0x4c] sm:$0xf] %v2498
          %2531 = vst [vmem:[#allocation5 + $0x50] sm:$0xf] %v2499
          %2532 = vst [vmem:[#allocation5 + $0x54] sm:$0xf] %v2500
          %2533 = vst [vmem:[#allocation5 + $0x58] sm:$0xf] %v2501
          %2534 = vst [vmem:[#allocation5 + $0x5c] sm:$0xf] %v2502
          %2535 = vst [vmem:[#allocation5 + $0x60] sm:$0xf] %v2503
          %2536 = vst [vmem:[#allocation5 + $0x64] sm:$0xf] %v2504
          %2537 = vst [vmem:[#allocation5 + $0x68] sm:$0xf] %v2505
          %2538 = vst [vmem:[#allocation5 + $0x6c] sm:$0xf] %v2506
          %2539 = vst [vmem:[#allocation5 + $0x70] sm:$0xf] %v2507
          %2540 = vst [vmem:[#allocation5 + $0x74] sm:$0xf] %v2508
          %2541 = vst [vmem:[#allocation5 + $0x78] sm:$0xf] %v2509
          %2542 = vst [vmem:[#allocation5 + $0x7c] sm:$0xf] %v2510
        $region56: #{pallas_slip_loss.1} parent=35 // pred_fallthru
          _
        %s2543 = smul.u32 %s19, 128
        %s2544 = sshra.s32 %s2543, 3
        %s2545 = sand.u32 %s2543, 7
        %s2546 = smul.addr %s2544, 4
        %s2547 = scalar_lea.vmem [#allocation2], %s2546
        %v2548 = vld [vmem:[%s2547] sm:$0xf]
        %v2549 = vld [vmem:[%s2547 + $0x4] sm:$0xf]
        %v2550 = vld [vmem:[%s2547 + $0x8] sm:$0xf]
        %v2551 = vld [vmem:[%s2547 + $0xc] sm:$0xf]
        %v2552 = vld [vmem:[%s2547 + $0x10] sm:$0xf]
        %v2553 = vld [vmem:[%s2547 + $0x14] sm:$0xf]
        %v2554 = vld [vmem:[%s2547 + $0x18] sm:$0xf]
        %v2555 = vld [vmem:[%s2547 + $0x1c] sm:$0xf]
        %v2556 = vld [vmem:[%s2547 + $0x20] sm:$0xf]
        %v2557 = vld [vmem:[%s2547 + $0x24] sm:$0xf]
        %v2558 = vld [vmem:[%s2547 + $0x28] sm:$0xf]
        %v2559 = vld [vmem:[%s2547 + $0x2c] sm:$0xf]
        %v2560 = vld [vmem:[%s2547 + $0x30] sm:$0xf]
        %v2561 = vld [vmem:[%s2547 + $0x34] sm:$0xf]
        %v2562 = vld [vmem:[%s2547 + $0x38] sm:$0xf]
        %v2563 = vld [vmem:[%s2547 + $0x3c] sm:$0xf]
        %s2564 = smul.addr %s2544, 4
        %s2565 = scalar_lea.vmem [#allocation3], %s2564
        %v2566 = vld [vmem:[%s2565] sm:$0xf]
        %v2567 = vld [vmem:[%s2565 + $0x4] sm:$0xf]
        %v2568 = vld [vmem:[%s2565 + $0x8] sm:$0xf]
        %v2569 = vld [vmem:[%s2565 + $0xc] sm:$0xf]
        %v2570 = vld [vmem:[%s2565 + $0x10] sm:$0xf]
        %v2571 = vld [vmem:[%s2565 + $0x14] sm:$0xf]
        %v2572 = vld [vmem:[%s2565 + $0x18] sm:$0xf]
        %v2573 = vld [vmem:[%s2565 + $0x1c] sm:$0xf]
        %v2574 = vld [vmem:[%s2565 + $0x20] sm:$0xf]
        %v2575 = vld [vmem:[%s2565 + $0x24] sm:$0xf]
        %v2576 = vld [vmem:[%s2565 + $0x28] sm:$0xf]
        %v2577 = vld [vmem:[%s2565 + $0x2c] sm:$0xf]
        %v2578 = vld [vmem:[%s2565 + $0x30] sm:$0xf]
        %v2579 = vld [vmem:[%s2565 + $0x34] sm:$0xf]
        %v2580 = vld [vmem:[%s2565 + $0x38] sm:$0xf]
        %v2581 = vld [vmem:[%s2565 + $0x3c] sm:$0xf]
        %s2582 = smul.addr %s2544, 4
        %s2583 = scalar_lea.vmem [#allocation4], %s2582
        %v2584 = vld [vmem:[%s2583] sm:$0xf]
        %v2585 = vld [vmem:[%s2583 + $0x4] sm:$0xf]
        %v2586 = vld [vmem:[%s2583 + $0x8] sm:$0xf]
        %v2587 = vld [vmem:[%s2583 + $0xc] sm:$0xf]
        %v2588 = vld [vmem:[%s2583 + $0x10] sm:$0xf]
        %v2589 = vld [vmem:[%s2583 + $0x14] sm:$0xf]
        %v2590 = vld [vmem:[%s2583 + $0x18] sm:$0xf]
        %v2591 = vld [vmem:[%s2583 + $0x1c] sm:$0xf]
        %v2592 = vld [vmem:[%s2583 + $0x20] sm:$0xf]
        %v2593 = vld [vmem:[%s2583 + $0x24] sm:$0xf]
        %v2594 = vld [vmem:[%s2583 + $0x28] sm:$0xf]
        %v2595 = vld [vmem:[%s2583 + $0x2c] sm:$0xf]
        %v2596 = vld [vmem:[%s2583 + $0x30] sm:$0xf]
        %v2597 = vld [vmem:[%s2583 + $0x34] sm:$0xf]
        %v2598 = vld [vmem:[%s2583 + $0x38] sm:$0xf]
        %v2599 = vld [vmem:[%s2583 + $0x3c] sm:$0xf]
        %s2600 = smul.addr %s2544, 4
        %s2601 = scalar_lea.vmem [#allocation5], %s2600
        %v2602 = vld [vmem:[%s2601] sm:$0xf]
        %v2603 = vld [vmem:[%s2601 + $0x4] sm:$0xf]
        %v2604 = vld [vmem:[%s2601 + $0x8] sm:$0xf]
        %v2605 = vld [vmem:[%s2601 + $0xc] sm:$0xf]
        %v2606 = vld [vmem:[%s2601 + $0x10] sm:$0xf]
        %v2607 = vld [vmem:[%s2601 + $0x14] sm:$0xf]
        %v2608 = vld [vmem:[%s2601 + $0x18] sm:$0xf]
        %v2609 = vld [vmem:[%s2601 + $0x1c] sm:$0xf]
        %v2610 = vld [vmem:[%s2601 + $0x20] sm:$0xf]
        %v2611 = vld [vmem:[%s2601 + $0x24] sm:$0xf]
        %v2612 = vld [vmem:[%s2601 + $0x28] sm:$0xf]
        %v2613 = vld [vmem:[%s2601 + $0x2c] sm:$0xf]
        %v2614 = vld [vmem:[%s2601 + $0x30] sm:$0xf]
        %v2615 = vld [vmem:[%s2601 + $0x34] sm:$0xf]
        %v2616 = vld [vmem:[%s2601 + $0x38] sm:$0xf]
        %v2617 = vld [vmem:[%s2601 + $0x3c] sm:$0xf]
        %v2618 = vunpack.c.l.bf16 %v2548
        %v2619 = vunpack.c.l.bf16 %v2549
        %v2620 = vunpack.c.l.bf16 %v2550
        %v2621 = vunpack.c.l.bf16 %v2551
        %v2622 = vunpack.c.l.bf16 %v2552
        %v2623 = vunpack.c.l.bf16 %v2553
        %v2624 = vunpack.c.l.bf16 %v2554
        %v2625 = vunpack.c.l.bf16 %v2555
        %v2626 = vunpack.c.l.bf16 %v2556
        %v2627 = vunpack.c.l.bf16 %v2557
        %v2628 = vunpack.c.l.bf16 %v2558
        %v2629 = vunpack.c.l.bf16 %v2559
        %v2630 = vunpack.c.l.bf16 %v2560
        %v2631 = vunpack.c.l.bf16 %v2561
        %v2632 = vunpack.c.l.bf16 %v2562
        %v2633 = vunpack.c.l.bf16 %v2563
        %v2634 = vmul.f32 %v2618, 10.0
        %v2635 = vmul.f32 %v2619, 10.0
        %v2636 = vmul.f32 %v2620, 10.0
        %v2637 = vmul.f32 %v2621, 10.0
        %v2638 = vmul.f32 %v2622, 10.0
        %v2639 = vmul.f32 %v2623, 10.0
        %v2640 = vmul.f32 %v2624, 10.0
        %v2641 = vmul.f32 %v2625, 10.0
        %v2642 = vmul.f32 %v2626, 10.0
        %v2643 = vmul.f32 %v2627, 10.0
        %v2644 = vmul.f32 %v2628, 10.0
        %v2645 = vmul.f32 %v2629, 10.0
        %v2646 = vmul.f32 %v2630, 10.0
        %v2647 = vmul.f32 %v2631, 10.0
        %v2648 = vmul.f32 %v2632, 10.0
        %v2649 = vmul.f32 %v2633, 10.0
        %v2650 = vunpack.c.l.bf16 %v2566
        %v2651 = vunpack.c.l.bf16 %v2567
        %v2652 = vunpack.c.l.bf16 %v2568
        %v2653 = vunpack.c.l.bf16 %v2569
        %v2654 = vunpack.c.l.bf16 %v2570
        %v2655 = vunpack.c.l.bf16 %v2571
        %v2656 = vunpack.c.l.bf16 %v2572
        %v2657 = vunpack.c.l.bf16 %v2573
        %v2658 = vunpack.c.l.bf16 %v2574
        %v2659 = vunpack.c.l.bf16 %v2575
        %v2660 = vunpack.c.l.bf16 %v2576
        %v2661 = vunpack.c.l.bf16 %v2577
        %v2662 = vunpack.c.l.bf16 %v2578
        %v2663 = vunpack.c.l.bf16 %v2579
        %v2664 = vunpack.c.l.bf16 %v2580
        %v2665 = vunpack.c.l.bf16 %v2581
        %v2666 = vmul.f32 %v2650, 10.0
        %v2667 = vmul.f32 %v2651, 10.0
        %v2668 = vmul.f32 %v2652, 10.0
        %v2669 = vmul.f32 %v2653, 10.0
        %v2670 = vmul.f32 %v2654, 10.0
        %v2671 = vmul.f32 %v2655, 10.0
        %v2672 = vmul.f32 %v2656, 10.0
        %v2673 = vmul.f32 %v2657, 10.0
        %v2674 = vmul.f32 %v2658, 10.0
        %v2675 = vmul.f32 %v2659, 10.0
        %v2676 = vmul.f32 %v2660, 10.0
        %v2677 = vmul.f32 %v2661, 10.0
        %v2678 = vmul.f32 %v2662, 10.0
        %v2679 = vmul.f32 %v2663, 10.0
        %v2680 = vmul.f32 %v2664, 10.0
        %v2681 = vmul.f32 %v2665, 10.0
        %v2682 = vunpack.c.l.bf16 %v2584
        %v2683 = vunpack.c.l.bf16 %v2585
        %v2684 = vunpack.c.l.bf16 %v2586
        %v2685 = vunpack.c.l.bf16 %v2587
        %v2686 = vunpack.c.l.bf16 %v2588
        %v2687 = vunpack.c.l.bf16 %v2589
        %v2688 = vunpack.c.l.bf16 %v2590
        %v2689 = vunpack.c.l.bf16 %v2591
        %v2690 = vunpack.c.l.bf16 %v2592
        %v2691 = vunpack.c.l.bf16 %v2593
        %v2692 = vunpack.c.l.bf16 %v2594
        %v2693 = vunpack.c.l.bf16 %v2595
        %v2694 = vunpack.c.l.bf16 %v2596
        %v2695 = vunpack.c.l.bf16 %v2597
        %v2696 = vunpack.c.l.bf16 %v2598
        %v2697 = vunpack.c.l.bf16 %v2599
        %v2698 = vmul.f32 %v2682, 1.3498588
        %v2699 = vmul.f32 %v2683, 1.3498588
        %v2700 = vmul.f32 %v2684, 1.3498588
        %v2701 = vmul.f32 %v2685, 1.3498588
        %v2702 = vmul.f32 %v2686, 1.3498588
        %v2703 = vmul.f32 %v2687, 1.3498588
        %v2704 = vmul.f32 %v2688, 1.3498588
        %v2705 = vmul.f32 %v2689, 1.3498588
        %v2706 = vmul.f32 %v2690, 1.3498588
        %v2707 = vmul.f32 %v2691, 1.3498588
        %v2708 = vmul.f32 %v2692, 1.3498588
        %v2709 = vmul.f32 %v2693, 1.3498588
        %v2710 = vmul.f32 %v2694, 1.3498588
        %v2711 = vmul.f32 %v2695, 1.3498588
        %v2712 = vmul.f32 %v2696, 1.3498588
        %v2713 = vmul.f32 %v2697, 1.3498588
        %v2714 = vunpack.c.l.bf16 %v2602
        %v2715 = vunpack.c.l.bf16 %v2603
        %v2716 = vunpack.c.l.bf16 %v2604
        %v2717 = vunpack.c.l.bf16 %v2605
        %v2718 = vunpack.c.l.bf16 %v2606
        %v2719 = vunpack.c.l.bf16 %v2607
        %v2720 = vunpack.c.l.bf16 %v2608
        %v2721 = vunpack.c.l.bf16 %v2609
        %v2722 = vunpack.c.l.bf16 %v2610
        %v2723 = vunpack.c.l.bf16 %v2611
        %v2724 = vunpack.c.l.bf16 %v2612
        %v2725 = vunpack.c.l.bf16 %v2613
        %v2726 = vunpack.c.l.bf16 %v2614
        %v2727 = vunpack.c.l.bf16 %v2615
        %v2728 = vunpack.c.l.bf16 %v2616
        %v2729 = vunpack.c.l.bf16 %v2617
        %v2730 = vmul.f32 %v2714, 1.3498588
        %v2731 = vmul.f32 %v2715, 1.3498588
        %v2732 = vmul.f32 %v2716, 1.3498588
        %v2733 = vmul.f32 %v2717, 1.3498588
        %v2734 = vmul.f32 %v2718, 1.3498588
        %v2735 = vmul.f32 %v2719, 1.3498588
        %v2736 = vmul.f32 %v2720, 1.3498588
        %v2737 = vmul.f32 %v2721, 1.3498588
        %v2738 = vmul.f32 %v2722, 1.3498588
        %v2739 = vmul.f32 %v2723, 1.3498588
        %v2740 = vmul.f32 %v2724, 1.3498588
        %v2741 = vmul.f32 %v2725, 1.3498588
        %v2742 = vmul.f32 %v2726, 1.3498588
        %v2743 = vmul.f32 %v2727, 1.3498588
        %v2744 = vmul.f32 %v2728, 1.3498588
        %v2745 = vmul.f32 %v2729, 1.3498588
        %v2746 = vmul.f32 %v2634, %v2650
        %v2747 = vmul.f32 %v2635, %v2651
        %v2748 = vmul.f32 %v2636, %v2652
        %v2749 = vmul.f32 %v2637, %v2653
        %v2750 = vmul.f32 %v2638, %v2654
        %v2751 = vmul.f32 %v2639, %v2655
        %v2752 = vmul.f32 %v2640, %v2656
        %v2753 = vmul.f32 %v2641, %v2657
        %v2754 = vmul.f32 %v2642, %v2658
        %v2755 = vmul.f32 %v2643, %v2659
        %v2756 = vmul.f32 %v2644, %v2660
        %v2757 = vmul.f32 %v2645, %v2661
        %v2758 = vmul.f32 %v2646, %v2662
        %v2759 = vmul.f32 %v2647, %v2663
        %v2760 = vmul.f32 %v2648, %v2664
        %v2761 = vmul.f32 %v2649, %v2665
        %2762 = vadd.xlane.f32.xlu0 %v2746
        %v2763 = vpop.xlane.xlu0 %2762
        %2764 = vadd.xlane.f32.xlu0 %v2747
        %v2765 = vpop.xlane.xlu0 %2764
        %2766 = vadd.xlane.f32.xlu0 %v2748
        %v2767 = vpop.xlane.xlu0 %2766
        %2768 = vadd.xlane.f32.xlu0 %v2749
        %v2769 = vpop.xlane.xlu0 %2768
        %2770 = vadd.xlane.f32.xlu0 %v2750
        %v2771 = vpop.xlane.xlu0 %2770
        %2772 = vadd.xlane.f32.xlu0 %v2751
        %v2773 = vpop.xlane.xlu0 %2772
        %2774 = vadd.xlane.f32.xlu0 %v2752
        %v2775 = vpop.xlane.xlu0 %2774
        %2776 = vadd.xlane.f32.xlu0 %v2753
        %v2777 = vpop.xlane.xlu0 %2776
        %2778 = vadd.xlane.f32.xlu0 %v2754
        %v2779 = vpop.xlane.xlu0 %2778
        %2780 = vadd.xlane.f32.xlu0 %v2755
        %v2781 = vpop.xlane.xlu0 %2780
        %2782 = vadd.xlane.f32.xlu0 %v2756
        %v2783 = vpop.xlane.xlu0 %2782
        %2784 = vadd.xlane.f32.xlu0 %v2757
        %v2785 = vpop.xlane.xlu0 %2784
        %2786 = vadd.xlane.f32.xlu0 %v2758
        %v2787 = vpop.xlane.xlu0 %2786
        %2788 = vadd.xlane.f32.xlu0 %v2759
        %v2789 = vpop.xlane.xlu0 %2788
        %2790 = vadd.xlane.f32.xlu0 %v2760
        %v2791 = vpop.xlane.xlu0 %2790
        %2792 = vadd.xlane.f32.xlu0 %v2761
        %v2793 = vpop.xlane.xlu0 %2792
        %v2794 = vmul.f32 %v2698, %v2714
        %v2795 = vmul.f32 %v2699, %v2715
        %v2796 = vmul.f32 %v2700, %v2716
        %v2797 = vmul.f32 %v2701, %v2717
        %v2798 = vmul.f32 %v2702, %v2718
        %v2799 = vmul.f32 %v2703, %v2719
        %v2800 = vmul.f32 %v2704, %v2720
        %v2801 = vmul.f32 %v2705, %v2721
        %v2802 = vmul.f32 %v2706, %v2722
        %v2803 = vmul.f32 %v2707, %v2723
        %v2804 = vmul.f32 %v2708, %v2724
        %v2805 = vmul.f32 %v2709, %v2725
        %v2806 = vmul.f32 %v2710, %v2726
        %v2807 = vmul.f32 %v2711, %v2727
        %v2808 = vmul.f32 %v2712, %v2728
        %v2809 = vmul.f32 %v2713, %v2729
        %2810 = vadd.xlane.f32.xlu0 %v2794
        %v2811 = vpop.xlane.xlu0 %2810
        %2812 = vadd.xlane.f32.xlu0 %v2795
        %v2813 = vpop.xlane.xlu0 %2812
        %2814 = vadd.xlane.f32.xlu0 %v2796
        %v2815 = vpop.xlane.xlu0 %2814
        %2816 = vadd.xlane.f32.xlu0 %v2797
        %v2817 = vpop.xlane.xlu0 %2816
        %2818 = vadd.xlane.f32.xlu0 %v2798
        %v2819 = vpop.xlane.xlu0 %2818
        %2820 = vadd.xlane.f32.xlu0 %v2799
        %v2821 = vpop.xlane.xlu0 %2820
        %2822 = vadd.xlane.f32.xlu0 %v2800
        %v2823 = vpop.xlane.xlu0 %2822
        %2824 = vadd.xlane.f32.xlu0 %v2801
        %v2825 = vpop.xlane.xlu0 %2824
        %2826 = vadd.xlane.f32.xlu0 %v2802
        %v2827 = vpop.xlane.xlu0 %2826
        %2828 = vadd.xlane.f32.xlu0 %v2803
        %v2829 = vpop.xlane.xlu0 %2828
        %2830 = vadd.xlane.f32.xlu0 %v2804
        %v2831 = vpop.xlane.xlu0 %2830
        %2832 = vadd.xlane.f32.xlu0 %v2805
        %v2833 = vpop.xlane.xlu0 %2832
        %2834 = vadd.xlane.f32.xlu0 %v2806
        %v2835 = vpop.xlane.xlu0 %2834
        %2836 = vadd.xlane.f32.xlu0 %v2807
        %v2837 = vpop.xlane.xlu0 %2836
        %2838 = vadd.xlane.f32.xlu0 %v2808
        %v2839 = vpop.xlane.xlu0 %2838
        %2840 = vadd.xlane.f32.xlu0 %v2809
        %v2841 = vpop.xlane.xlu0 %2840
        %v2842 = vpack.c.bf16 %v2635, %v2634
        %v2843 = vpack.c.bf16 %v2637, %v2636
        %v2844 = vpack.c.bf16 %v2639, %v2638
        %v2845 = vpack.c.bf16 %v2641, %v2640
        %v2846 = vpack.c.bf16 %v2643, %v2642
        %v2847 = vpack.c.bf16 %v2645, %v2644
        %v2848 = vpack.c.bf16 %v2647, %v2646
        %v2849 = vpack.c.bf16 %v2649, %v2648
        %v2850 = vpack.c.bf16 %v2667, %v2666
        %v2851 = vpack.c.bf16 %v2669, %v2668
        %v2852 = vpack.c.bf16 %v2671, %v2670
        %v2853 = vpack.c.bf16 %v2673, %v2672
        %v2854 = vpack.c.bf16 %v2675, %v2674
        %v2855 = vpack.c.bf16 %v2677, %v2676
        %v2856 = vpack.c.bf16 %v2679, %v2678
        %v2857 = vpack.c.bf16 %v2681, %v2680
        %v2858 = vpack.c.bf16 %v2699, %v2698
        %v2859 = vpack.c.bf16 %v2701, %v2700
        %v2860 = vpack.c.bf16 %v2703, %v2702
        %v2861 = vpack.c.bf16 %v2705, %v2704
        %v2862 = vpack.c.bf16 %v2707, %v2706
        %v2863 = vpack.c.bf16 %v2709, %v2708
        %v2864 = vpack.c.bf16 %v2711, %v2710
        %v2865 = vpack.c.bf16 %v2713, %v2712
        %v2866 = vpack.c.bf16 %v2731, %v2730
        %v2867 = vpack.c.bf16 %v2733, %v2732
        %v2868 = vpack.c.bf16 %v2735, %v2734
        %v2869 = vpack.c.bf16 %v2737, %v2736
        %v2870 = vpack.c.bf16 %v2739, %v2738
        %v2871 = vpack.c.bf16 %v2741, %v2740
        %v2872 = vpack.c.bf16 %v2743, %v2742
        %v2873 = vpack.c.bf16 %v2745, %v2744
        %v2874 = vld [vmem:[#allocation2] sm:$0xf]
        %v2875 = vld [vmem:[#allocation2 + $0x4] sm:$0xf]
        %v2876 = vld [vmem:[#allocation2 + $0x8] sm:$0xf]
        %v2877 = vld [vmem:[#allocation2 + $0xc] sm:$0xf]
        %v2878 = vld [vmem:[#allocation2 + $0x10] sm:$0xf]
        %v2879 = vld [vmem:[#allocation2 + $0x14] sm:$0xf]
        %v2880 = vld [vmem:[#allocation2 + $0x18] sm:$0xf]
        %v2881 = vld [vmem:[#allocation2 + $0x1c] sm:$0xf]
        %v2882 = vld [vmem:[#allocation2 + $0x20] sm:$0xf]
        %v2883 = vld [vmem:[#allocation2 + $0x24] sm:$0xf]
        %v2884 = vld [vmem:[#allocation2 + $0x28] sm:$0xf]
        %v2885 = vld [vmem:[#allocation2 + $0x2c] sm:$0xf]
        %v2886 = vld [vmem:[#allocation2 + $0x30] sm:$0xf]
        %v2887 = vld [vmem:[#allocation2 + $0x34] sm:$0xf]
        %v2888 = vld [vmem:[#allocation2 + $0x38] sm:$0xf]
        %v2889 = vld [vmem:[#allocation2 + $0x3c] sm:$0xf]
        %v2890 = vld [vmem:[#allocation2 + $0x40] sm:$0xf]
        %v2891 = vld [vmem:[#allocation2 + $0x44] sm:$0xf]
        %v2892 = vld [vmem:[#allocation2 + $0x48] sm:$0xf]
        %v2893 = vld [vmem:[#allocation2 + $0x4c] sm:$0xf]
        %v2894 = vld [vmem:[#allocation2 + $0x50] sm:$0xf]
        %v2895 = vld [vmem:[#allocation2 + $0x54] sm:$0xf]
        %v2896 = vld [vmem:[#allocation2 + $0x58] sm:$0xf]
        %v2897 = vld [vmem:[#allocation2 + $0x5c] sm:$0xf]
        %v2898 = vld [vmem:[#allocation2 + $0x60] sm:$0xf]
        %v2899 = vld [vmem:[#allocation2 + $0x64] sm:$0xf]
        %v2900 = vld [vmem:[#allocation2 + $0x68] sm:$0xf]
        %v2901 = vld [vmem:[#allocation2 + $0x6c] sm:$0xf]
        %v2902 = vld [vmem:[#allocation2 + $0x70] sm:$0xf]
        %v2903 = vld [vmem:[#allocation2 + $0x74] sm:$0xf]
        %v2904 = vld [vmem:[#allocation2 + $0x78] sm:$0xf]
        %v2905 = vld [vmem:[#allocation2 + $0x7c] sm:$0xf]
        %v2906 = vld [vmem:[#allocation3] sm:$0xf]
        %v2907 = vld [vmem:[#allocation3 + $0x4] sm:$0xf]
        %v2908 = vld [vmem:[#allocation3 + $0x8] sm:$0xf]
        %v2909 = vld [vmem:[#allocation3 + $0xc] sm:$0xf]
        %v2910 = vld [vmem:[#allocation3 + $0x10] sm:$0xf]
        %v2911 = vld [vmem:[#allocation3 + $0x14] sm:$0xf]
        %v2912 = vld [vmem:[#allocation3 + $0x18] sm:$0xf]
        %v2913 = vld [vmem:[#allocation3 + $0x1c] sm:$0xf]
        %v2914 = vld [vmem:[#allocation3 + $0x20] sm:$0xf]
        %v2915 = vld [vmem:[#allocation3 + $0x24] sm:$0xf]
        %v2916 = vld [vmem:[#allocation3 + $0x28] sm:$0xf]
        %v2917 = vld [vmem:[#allocation3 + $0x2c] sm:$0xf]
        %v2918 = vld [vmem:[#allocation3 + $0x30] sm:$0xf]
        %v2919 = vld [vmem:[#allocation3 + $0x34] sm:$0xf]
        %v2920 = vld [vmem:[#allocation3 + $0x38] sm:$0xf]
        %v2921 = vld [vmem:[#allocation3 + $0x3c] sm:$0xf]
        %v2922 = vld [vmem:[#allocation3 + $0x40] sm:$0xf]
        %v2923 = vld [vmem:[#allocation3 + $0x44] sm:$0xf]
        %v2924 = vld [vmem:[#allocation3 + $0x48] sm:$0xf]
        %v2925 = vld [vmem:[#allocation3 + $0x4c] sm:$0xf]
        %v2926 = vld [vmem:[#allocation3 + $0x50] sm:$0xf]
        %v2927 = vld [vmem:[#allocation3 + $0x54] sm:$0xf]
        %v2928 = vld [vmem:[#allocation3 + $0x58] sm:$0xf]
        %v2929 = vld [vmem:[#allocation3 + $0x5c] sm:$0xf]
        %v2930 = vld [vmem:[#allocation3 + $0x60] sm:$0xf]
        %v2931 = vld [vmem:[#allocation3 + $0x64] sm:$0xf]
        %v2932 = vld [vmem:[#allocation3 + $0x68] sm:$0xf]
        %v2933 = vld [vmem:[#allocation3 + $0x6c] sm:$0xf]
        %v2934 = vld [vmem:[#allocation3 + $0x70] sm:$0xf]
        %v2935 = vld [vmem:[#allocation3 + $0x74] sm:$0xf]
        %v2936 = vld [vmem:[#allocation3 + $0x78] sm:$0xf]
        %v2937 = vld [vmem:[#allocation3 + $0x7c] sm:$0xf]
        %v2938 = vld [vmem:[#allocation4] sm:$0xf]
        %v2939 = vld [vmem:[#allocation4 + $0x4] sm:$0xf]
        %v2940 = vld [vmem:[#allocation4 + $0x8] sm:$0xf]
        %v2941 = vld [vmem:[#allocation4 + $0xc] sm:$0xf]
        %v2942 = vld [vmem:[#allocation4 + $0x10] sm:$0xf]
        %v2943 = vld [vmem:[#allocation4 + $0x14] sm:$0xf]
        %v2944 = vld [vmem:[#allocation4 + $0x18] sm:$0xf]
        %v2945 = vld [vmem:[#allocation4 + $0x1c] sm:$0xf]
        %v2946 = vld [vmem:[#allocation4 + $0x20] sm:$0xf]
        %v2947 = vld [vmem:[#allocation4 + $0x24] sm:$0xf]
        %v2948 = vld [vmem:[#allocation4 + $0x28] sm:$0xf]
        %v2949 = vld [vmem:[#allocation4 + $0x2c] sm:$0xf]
        %v2950 = vld [vmem:[#allocation4 + $0x30] sm:$0xf]
        %v2951 = vld [vmem:[#allocation4 + $0x34] sm:$0xf]
        %v2952 = vld [vmem:[#allocation4 + $0x38] sm:$0xf]
        %v2953 = vld [vmem:[#allocation4 + $0x3c] sm:$0xf]
        %v2954 = vld [vmem:[#allocation4 + $0x40] sm:$0xf]
        %v2955 = vld [vmem:[#allocation4 + $0x44] sm:$0xf]
        %v2956 = vld [vmem:[#allocation4 + $0x48] sm:$0xf]
        %v2957 = vld [vmem:[#allocation4 + $0x4c] sm:$0xf]
        %v2958 = vld [vmem:[#allocation4 + $0x50] sm:$0xf]
        %v2959 = vld [vmem:[#allocation4 + $0x54] sm:$0xf]
        %v2960 = vld [vmem:[#allocation4 + $0x58] sm:$0xf]
        %v2961 = vld [vmem:[#allocation4 + $0x5c] sm:$0xf]
        %v2962 = vld [vmem:[#allocation4 + $0x60] sm:$0xf]
        %v2963 = vld [vmem:[#allocation4 + $0x64] sm:$0xf]
        %v2964 = vld [vmem:[#allocation4 + $0x68] sm:$0xf]
        %v2965 = vld [vmem:[#allocation4 + $0x6c] sm:$0xf]
        %v2966 = vld [vmem:[#allocation4 + $0x70] sm:$0xf]
        %v2967 = vld [vmem:[#allocation4 + $0x74] sm:$0xf]
        %v2968 = vld [vmem:[#allocation4 + $0x78] sm:$0xf]
        %v2969 = vld [vmem:[#allocation4 + $0x7c] sm:$0xf]
        %v2970 = vld [vmem:[#allocation5] sm:$0xf]
        %v2971 = vld [vmem:[#allocation5 + $0x4] sm:$0xf]
        %v2972 = vld [vmem:[#allocation5 + $0x8] sm:$0xf]
        %v2973 = vld [vmem:[#allocation5 + $0xc] sm:$0xf]
        %v2974 = vld [vmem:[#allocation5 + $0x10] sm:$0xf]
        %v2975 = vld [vmem:[#allocation5 + $0x14] sm:$0xf]
        %v2976 = vld [vmem:[#allocation5 + $0x18] sm:$0xf]
        %v2977 = vld [vmem:[#allocation5 + $0x1c] sm:$0xf]
        %v2978 = vld [vmem:[#allocation5 + $0x20] sm:$0xf]
        %v2979 = vld [vmem:[#allocation5 + $0x24] sm:$0xf]
        %v2980 = vld [vmem:[#allocation5 + $0x28] sm:$0xf]
        %v2981 = vld [vmem:[#allocation5 + $0x2c] sm:$0xf]
        %v2982 = vld [vmem:[#allocation5 + $0x30] sm:$0xf]
        %v2983 = vld [vmem:[#allocation5 + $0x34] sm:$0xf]
        %v2984 = vld [vmem:[#allocation5 + $0x38] sm:$0xf]
        %v2985 = vld [vmem:[#allocation5 + $0x3c] sm:$0xf]
        %v2986 = vld [vmem:[#allocation5 + $0x40] sm:$0xf]
        %v2987 = vld [vmem:[#allocation5 + $0x44] sm:$0xf]
        %v2988 = vld [vmem:[#allocation5 + $0x48] sm:$0xf]
        %v2989 = vld [vmem:[#allocation5 + $0x4c] sm:$0xf]
        %v2990 = vld [vmem:[#allocation5 + $0x50] sm:$0xf]
        %v2991 = vld [vmem:[#allocation5 + $0x54] sm:$0xf]
        %v2992 = vld [vmem:[#allocation5 + $0x58] sm:$0xf]
        %v2993 = vld [vmem:[#allocation5 + $0x5c] sm:$0xf]
        %v2994 = vld [vmem:[#allocation5 + $0x60] sm:$0xf]
        %v2995 = vld [vmem:[#allocation5 + $0x64] sm:$0xf]
        %v2996 = vld [vmem:[#allocation5 + $0x68] sm:$0xf]
        %v2997 = vld [vmem:[#allocation5 + $0x6c] sm:$0xf]
        %v2998 = vld [vmem:[#allocation5 + $0x70] sm:$0xf]
        %v2999 = vld [vmem:[#allocation5 + $0x74] sm:$0xf]
        %v3000 = vld [vmem:[#allocation5 + $0x78] sm:$0xf]
        %v3001 = vld [vmem:[#allocation5 + $0x7c] sm:$0xf]
        %v3002 = vlaneseq
        %v3003 = vshrl.u32 %v3002, 7
        %v3004 = vadd.s32 %v3003, 8
        %v3005 = vadd.s32 %v3003, 16
        %v3006 = vadd.s32 %v3003, 24
        %v3007 = vadd.s32 %v3003, 32
        %v3008 = vadd.s32 %v3003, 40
        %v3009 = vadd.s32 %v3003, 48
        %v3010 = vadd.s32 %v3003, 56
        %v3011 = vadd.s32 %v3003, 64
        %v3012 = vadd.s32 %v3003, 72
        %v3013 = vadd.s32 %v3003, 80
        %v3014 = vadd.s32 %v3003, 88
        %v3015 = vadd.s32 %v3003, 96
        %v3016 = vadd.s32 %v3003, 104
        %v3017 = vadd.s32 %v3003, 112
        %v3018 = vadd.s32 %v3003, 120
        %v3019 = vstv %s2543
        %v3020 = vadd.s32 %v3019, %v3003
        %v3021 = vadd.s32 %v3019, %v3004
        %v3022 = vadd.s32 %v3019, %v3005
        %v3023 = vadd.s32 %v3019, %v3006
        %v3024 = vadd.s32 %v3019, %v3007
        %v3025 = vadd.s32 %v3019, %v3008
        %v3026 = vadd.s32 %v3019, %v3009
        %v3027 = vadd.s32 %v3019, %v3010
        %v3028 = vadd.s32 %v3019, %v3011
        %v3029 = vadd.s32 %v3019, %v3012
        %v3030 = vadd.s32 %v3019, %v3013
        %v3031 = vadd.s32 %v3019, %v3014
        %v3032 = vadd.s32 %v3019, %v3015
        %v3033 = vadd.s32 %v3019, %v3016
        %v3034 = vadd.s32 %v3019, %v3017
        %v3035 = vadd.s32 %v3019, %v3018
        %v3036 = vlaneseq
        %v3037 = vand.u32 %v3036, 127
        %v3038 = vadd.s32 %v3037, 128
        %vm3039 = vcmp.eq.s32.totalorder %v3020, %v3037
        %vm3040 = vcmp.eq.s32.totalorder %v3020, %v3038
        %vm3041 = vcmp.eq.s32.totalorder %v3021, %v3037
        %vm3042 = vcmp.eq.s32.totalorder %v3021, %v3038
        %vm3043 = vcmp.eq.s32.totalorder %v3022, %v3037
        %vm3044 = vcmp.eq.s32.totalorder %v3022, %v3038
        %vm3045 = vcmp.eq.s32.totalorder %v3023, %v3037
        %vm3046 = vcmp.eq.s32.totalorder %v3023, %v3038
        %vm3047 = vcmp.eq.s32.totalorder %v3024, %v3037
        %vm3048 = vcmp.eq.s32.totalorder %v3024, %v3038
        %vm3049 = vcmp.eq.s32.totalorder %v3025, %v3037
        %vm3050 = vcmp.eq.s32.totalorder %v3025, %v3038
        %vm3051 = vcmp.eq.s32.totalorder %v3026, %v3037
        %vm3052 = vcmp.eq.s32.totalorder %v3026, %v3038
        %vm3053 = vcmp.eq.s32.totalorder %v3027, %v3037
        %vm3054 = vcmp.eq.s32.totalorder %v3027, %v3038
        %vm3055 = vcmp.eq.s32.totalorder %v3028, %v3037
        %vm3056 = vcmp.eq.s32.totalorder %v3028, %v3038
        %vm3057 = vcmp.eq.s32.totalorder %v3029, %v3037
        %vm3058 = vcmp.eq.s32.totalorder %v3029, %v3038
        %vm3059 = vcmp.eq.s32.totalorder %v3030, %v3037
        %vm3060 = vcmp.eq.s32.totalorder %v3030, %v3038
        %vm3061 = vcmp.eq.s32.totalorder %v3031, %v3037
        %vm3062 = vcmp.eq.s32.totalorder %v3031, %v3038
        %vm3063 = vcmp.eq.s32.totalorder %v3032, %v3037
        %vm3064 = vcmp.eq.s32.totalorder %v3032, %v3038
        %vm3065 = vcmp.eq.s32.totalorder %v3033, %v3037
        %vm3066 = vcmp.eq.s32.totalorder %v3033, %v3038
        %vm3067 = vcmp.eq.s32.totalorder %v3034, %v3037
        %vm3068 = vcmp.eq.s32.totalorder %v3034, %v3038
        %vm3069 = vcmp.eq.s32.totalorder %v3035, %v3037
        %vm3070 = vcmp.eq.s32.totalorder %v3035, %v3038
        %v3103 = vunpack.c.l.b16 %v2906
        %v3104 = vunpack.c.l.b16 %v2907
        %v3105 = vunpack.c.l.b16 %v2908
        %v3106 = vunpack.c.l.b16 %v2909
        %v3107 = vunpack.c.l.b16 %v2910
        %v3108 = vunpack.c.l.b16 %v2911
        %v3109 = vunpack.c.l.b16 %v2912
        %v3110 = vunpack.c.l.b16 %v2913
        %v3111 = vunpack.c.l.b16 %v2914
        %v3112 = vunpack.c.l.b16 %v2915
        %v3113 = vunpack.c.l.b16 %v2916
        %v3114 = vunpack.c.l.b16 %v2917
        %v3115 = vunpack.c.l.b16 %v2918
        %v3116 = vunpack.c.l.b16 %v2919
        %v3117 = vunpack.c.l.b16 %v2920
        %v3118 = vunpack.c.l.b16 %v2921
        %v3119 = vunpack.c.l.b16 %v2922
        %v3120 = vunpack.c.l.b16 %v2923
        %v3121 = vunpack.c.l.b16 %v2924
        %v3122 = vunpack.c.l.b16 %v2925
        %v3123 = vunpack.c.l.b16 %v2926
        %v3124 = vunpack.c.l.b16 %v2927
        %v3125 = vunpack.c.l.b16 %v2928
        %v3126 = vunpack.c.l.b16 %v2929
        %v3127 = vunpack.c.l.b16 %v2930
        %v3128 = vunpack.c.l.b16 %v2931
        %v3129 = vunpack.c.l.b16 %v2932
        %v3130 = vunpack.c.l.b16 %v2933
        %v3131 = vunpack.c.l.b16 %v2934
        %v3132 = vunpack.c.l.b16 %v2935
        %v3133 = vunpack.c.l.b16 %v2936
        %v3134 = vunpack.c.l.b16 %v2937
        %v3135 = vpack.c.b16 %v3104, %v3103
        %v3136 = vpack.c.b16 %v3106, %v3105
        %v3137 = vpack.c.b16 %v3108, %v3107
        %v3138 = vpack.c.b16 %v3110, %v3109
        %v3139 = vpack.c.b16 %v3112, %v3111
        %v3140 = vpack.c.b16 %v3114, %v3113
        %v3141 = vpack.c.b16 %v3116, %v3115
        %v3142 = vpack.c.b16 %v3118, %v3117
        %v3143 = vpack.c.b16 %v3120, %v3119
        %v3144 = vpack.c.b16 %v3122, %v3121
        %v3145 = vpack.c.b16 %v3124, %v3123
        %v3146 = vpack.c.b16 %v3126, %v3125
        %v3147 = vpack.c.b16 %v3128, %v3127
        %v3148 = vpack.c.b16 %v3130, %v3129
        %v3149 = vpack.c.b16 %v3132, %v3131
        %v3150 = vpack.c.b16 %v3134, %v3133
        %3167 = vmatpush.bf16.xpose.msra.mxu0 %v3142
        %3168 = vmatpush.bf16.xpose.msra.mxu0 %v3141
        %3169 = vmatpush.bf16.xpose.msra.mxu0 %v3140
        %3170 = vmatpush.bf16.xpose.msra.mxu0 %v3139
        %3171 = vmatpush.bf16.xpose.msra.mxu0 %v3138
        %3172 = vmatpush.bf16.xpose.msra.mxu0 %v3137
        %3173 = vmatpush.bf16.xpose.msra.mxu0 %v3136
        %3174 = vmatpush.bf16.xpose.msra.mxu0 %v3135
        %3175 = vmatmul.bf16.gmra.mxu0 %v2842
        %v3176 = vpop.f32.mrf.mxu0
        %v3177 = vadd.f32 0.0, %v3176
        %v3178 = vpop.f32.mrf.mxu0
        %v3179 = vadd.f32 0.0, %v3178
        %3180 = vmatmul.bf16.gmra.mxu0 %v2843
        %v3181 = vpop.f32.mrf.mxu0
        %v3182 = vadd.f32 0.0, %v3181
        %v3183 = vpop.f32.mrf.mxu0
        %v3184 = vadd.f32 0.0, %v3183
        %3185 = vmatmul.bf16.gmra.mxu0 %v2844
        %v3186 = vpop.f32.mrf.mxu0
        %v3187 = vadd.f32 0.0, %v3186
        %v3188 = vpop.f32.mrf.mxu0
        %v3189 = vadd.f32 0.0, %v3188
        %3190 = vmatmul.bf16.gmra.mxu0 %v2845
        %v3191 = vpop.f32.mrf.mxu0
        %v3192 = vadd.f32 0.0, %v3191
        %v3193 = vpop.f32.mrf.mxu0
        %v3194 = vadd.f32 0.0, %v3193
        %3195 = vmatmul.bf16.gmra.mxu0 %v2846
        %v3196 = vpop.f32.mrf.mxu0
        %v3197 = vadd.f32 0.0, %v3196
        %v3198 = vpop.f32.mrf.mxu0
        %v3199 = vadd.f32 0.0, %v3198
        %3200 = vmatmul.bf16.gmra.mxu0 %v2847
        %v3201 = vpop.f32.mrf.mxu0
        %v3202 = vadd.f32 0.0, %v3201
        %v3203 = vpop.f32.mrf.mxu0
        %v3204 = vadd.f32 0.0, %v3203
        %3205 = vmatmul.bf16.gmra.mxu0 %v2848
        %v3206 = vpop.f32.mrf.mxu0
        %v3207 = vadd.f32 0.0, %v3206
        %v3208 = vpop.f32.mrf.mxu0
        %v3209 = vadd.f32 0.0, %v3208
        %3210 = vmatmul.bf16.gmra.mxu0 %v2849
        %v3211 = vpop.f32.mrf.mxu0
        %v3212 = vadd.f32 0.0, %v3211
        %v3213 = vpop.f32.mrf.mxu0
        %v3214 = vadd.f32 0.0, %v3213
        %3215 = vdwg.mxu0
        %3216 = vmatpush.bf16.xpose.msra.mxu0 %v3150
        %3217 = vmatpush.bf16.xpose.msra.mxu0 %v3149
        %3218 = vmatpush.bf16.xpose.msra.mxu0 %v3148
        %3219 = vmatpush.bf16.xpose.msra.mxu0 %v3147
        %3220 = vmatpush.bf16.xpose.msra.mxu0 %v3146
        %3221 = vmatpush.bf16.xpose.msra.mxu0 %v3145
        %3222 = vmatpush.bf16.xpose.msra.mxu0 %v3144
        %3223 = vmatpush.bf16.xpose.msra.mxu0 %v3143
        %3224 = vmatmul.bf16.gmra.mxu0 %v2842
        %v3225 = vpop.f32.mrf.mxu0
        %v3226 = vadd.f32 0.0, %v3225
        %v3227 = vpop.f32.mrf.mxu0
        %v3228 = vadd.f32 0.0, %v3227
        %3229 = vmatmul.bf16.gmra.mxu0 %v2843
        %v3230 = vpop.f32.mrf.mxu0
        %v3231 = vadd.f32 0.0, %v3230
        %v3232 = vpop.f32.mrf.mxu0
        %v3233 = vadd.f32 0.0, %v3232
        %3234 = vmatmul.bf16.gmra.mxu0 %v2844
        %v3235 = vpop.f32.mrf.mxu0
        %v3236 = vadd.f32 0.0, %v3235
        %v3237 = vpop.f32.mrf.mxu0
        %v3238 = vadd.f32 0.0, %v3237
        %3239 = vmatmul.bf16.gmra.mxu0 %v2845
        %v3240 = vpop.f32.mrf.mxu0
        %v3241 = vadd.f32 0.0, %v3240
        %v3242 = vpop.f32.mrf.mxu0
        %v3243 = vadd.f32 0.0, %v3242
        %3244 = vmatmul.bf16.gmra.mxu0 %v2846
        %v3245 = vpop.f32.mrf.mxu0
        %v3246 = vadd.f32 0.0, %v3245
        %v3247 = vpop.f32.mrf.mxu0
        %v3248 = vadd.f32 0.0, %v3247
        %3249 = vmatmul.bf16.gmra.mxu0 %v2847
        %v3250 = vpop.f32.mrf.mxu0
        %v3251 = vadd.f32 0.0, %v3250
        %v3252 = vpop.f32.mrf.mxu0
        %v3253 = vadd.f32 0.0, %v3252
        %3254 = vmatmul.bf16.gmra.mxu0 %v2848
        %v3255 = vpop.f32.mrf.mxu0
        %v3256 = vadd.f32 0.0, %v3255
        %v3257 = vpop.f32.mrf.mxu0
        %v3258 = vadd.f32 0.0, %v3257
        %3259 = vmatmul.bf16.gmra.mxu0 %v2849
        %v3260 = vpop.f32.mrf.mxu0
        %v3261 = vadd.f32 0.0, %v3260
        %v3262 = vpop.f32.mrf.mxu0
        %v3263 = vadd.f32 0.0, %v3262
        %3264 = vdwg.mxu0
        %v3297 = vunpack.c.l.b16 %v2874
        %v3298 = vunpack.c.l.b16 %v2875
        %v3299 = vunpack.c.l.b16 %v2876
        %v3300 = vunpack.c.l.b16 %v2877
        %v3301 = vunpack.c.l.b16 %v2878
        %v3302 = vunpack.c.l.b16 %v2879
        %v3303 = vunpack.c.l.b16 %v2880
        %v3304 = vunpack.c.l.b16 %v2881
        %v3305 = vunpack.c.l.b16 %v2882
        %v3306 = vunpack.c.l.b16 %v2883
        %v3307 = vunpack.c.l.b16 %v2884
        %v3308 = vunpack.c.l.b16 %v2885
        %v3309 = vunpack.c.l.b16 %v2886
        %v3310 = vunpack.c.l.b16 %v2887
        %v3311 = vunpack.c.l.b16 %v2888
        %v3312 = vunpack.c.l.b16 %v2889
        %v3313 = vunpack.c.l.b16 %v2890
        %v3314 = vunpack.c.l.b16 %v2891
        %v3315 = vunpack.c.l.b16 %v2892
        %v3316 = vunpack.c.l.b16 %v2893
        %v3317 = vunpack.c.l.b16 %v2894
        %v3318 = vunpack.c.l.b16 %v2895
        %v3319 = vunpack.c.l.b16 %v2896
        %v3320 = vunpack.c.l.b16 %v2897
        %v3321 = vunpack.c.l.b16 %v2898
        %v3322 = vunpack.c.l.b16 %v2899
        %v3323 = vunpack.c.l.b16 %v2900
        %v3324 = vunpack.c.l.b16 %v2901
        %v3325 = vunpack.c.l.b16 %v2902
        %v3326 = vunpack.c.l.b16 %v2903
        %v3327 = vunpack.c.l.b16 %v2904
        %v3328 = vunpack.c.l.b16 %v2905
        %v3329 = vpack.c.b16 %v3298, %v3297
        %v3330 = vpack.c.b16 %v3300, %v3299
        %v3331 = vpack.c.b16 %v3302, %v3301
        %v3332 = vpack.c.b16 %v3304, %v3303
        %v3333 = vpack.c.b16 %v3306, %v3305
        %v3334 = vpack.c.b16 %v3308, %v3307
        %v3335 = vpack.c.b16 %v3310, %v3309
        %v3336 = vpack.c.b16 %v3312, %v3311
        %v3337 = vpack.c.b16 %v3314, %v3313
        %v3338 = vpack.c.b16 %v3316, %v3315
        %v3339 = vpack.c.b16 %v3318, %v3317
        %v3340 = vpack.c.b16 %v3320, %v3319
        %v3341 = vpack.c.b16 %v3322, %v3321
        %v3342 = vpack.c.b16 %v3324, %v3323
        %v3343 = vpack.c.b16 %v3326, %v3325
        %v3344 = vpack.c.b16 %v3328, %v3327
        %3361 = vmatpush.bf16.xpose.msra.mxu0 %v3336
        %3362 = vmatpush.bf16.xpose.msra.mxu0 %v3335
        %3363 = vmatpush.bf16.xpose.msra.mxu0 %v3334
        %3364 = vmatpush.bf16.xpose.msra.mxu0 %v3333
        %3365 = vmatpush.bf16.xpose.msra.mxu0 %v3332
        %3366 = vmatpush.bf16.xpose.msra.mxu0 %v3331
        %3367 = vmatpush.bf16.xpose.msra.mxu0 %v3330
        %3368 = vmatpush.bf16.xpose.msra.mxu0 %v3329
        %3369 = vmatmul.bf16.gmra.mxu0 %v2842
        %v3370 = vpop.f32.mrf.mxu0
        %v3371 = vadd.f32 0.0, %v3370
        %v3372 = vpop.f32.mrf.mxu0
        %v3373 = vadd.f32 0.0, %v3372
        %3374 = vmatmul.bf16.gmra.mxu0 %v2843
        %v3375 = vpop.f32.mrf.mxu0
        %v3376 = vadd.f32 0.0, %v3375
        %v3377 = vpop.f32.mrf.mxu0
        %v3378 = vadd.f32 0.0, %v3377
        %3379 = vmatmul.bf16.gmra.mxu0 %v2844
        %v3380 = vpop.f32.mrf.mxu0
        %v3381 = vadd.f32 0.0, %v3380
        %v3382 = vpop.f32.mrf.mxu0
        %v3383 = vadd.f32 0.0, %v3382
        %3384 = vmatmul.bf16.gmra.mxu0 %v2845
        %v3385 = vpop.f32.mrf.mxu0
        %v3386 = vadd.f32 0.0, %v3385
        %v3387 = vpop.f32.mrf.mxu0
        %v3388 = vadd.f32 0.0, %v3387
        %3389 = vmatmul.bf16.gmra.mxu0 %v2846
        %v3390 = vpop.f32.mrf.mxu0
        %v3391 = vadd.f32 0.0, %v3390
        %v3392 = vpop.f32.mrf.mxu0
        %v3393 = vadd.f32 0.0, %v3392
        %3394 = vmatmul.bf16.gmra.mxu0 %v2847
        %v3395 = vpop.f32.mrf.mxu0
        %v3396 = vadd.f32 0.0, %v3395
        %v3397 = vpop.f32.mrf.mxu0
        %v3398 = vadd.f32 0.0, %v3397
        %3399 = vmatmul.bf16.gmra.mxu0 %v2848
        %v3400 = vpop.f32.mrf.mxu0
        %v3401 = vadd.f32 0.0, %v3400
        %v3402 = vpop.f32.mrf.mxu0
        %v3403 = vadd.f32 0.0, %v3402
        %3404 = vmatmul.bf16.gmra.mxu0 %v2849
        %v3405 = vpop.f32.mrf.mxu0
        %v3406 = vadd.f32 0.0, %v3405
        %v3407 = vpop.f32.mrf.mxu0
        %v3408 = vadd.f32 0.0, %v3407
        %3409 = vdwg.mxu0
        %3410 = vmatpush.bf16.xpose.msra.mxu0 %v3344
        %3411 = vmatpush.bf16.xpose.msra.mxu0 %v3343
        %3412 = vmatpush.bf16.xpose.msra.mxu0 %v3342
        %3413 = vmatpush.bf16.xpose.msra.mxu0 %v3341
        %3414 = vmatpush.bf16.xpose.msra.mxu0 %v3340
        %3415 = vmatpush.bf16.xpose.msra.mxu0 %v3339
        %3416 = vmatpush.bf16.xpose.msra.mxu0 %v3338
        %3417 = vmatpush.bf16.xpose.msra.mxu0 %v3337
        %3418 = vmatmul.bf16.gmra.mxu0 %v2842
        %v3419 = vpop.f32.mrf.mxu0
        %v3420 = vadd.f32 0.0, %v3419
        %v3421 = vpop.f32.mrf.mxu0
        %v3422 = vadd.f32 0.0, %v3421
        %3423 = vmatmul.bf16.gmra.mxu0 %v2843
        %v3424 = vpop.f32.mrf.mxu0
        %v3425 = vadd.f32 0.0, %v3424
        %v3426 = vpop.f32.mrf.mxu0
        %v3427 = vadd.f32 0.0, %v3426
        %3428 = vmatmul.bf16.gmra.mxu0 %v2844
        %v3429 = vpop.f32.mrf.mxu0
        %v3430 = vadd.f32 0.0, %v3429
        %v3431 = vpop.f32.mrf.mxu0
        %v3432 = vadd.f32 0.0, %v3431
        %3433 = vmatmul.bf16.gmra.mxu0 %v2845
        %v3434 = vpop.f32.mrf.mxu0
        %v3435 = vadd.f32 0.0, %v3434
        %v3436 = vpop.f32.mrf.mxu0
        %v3437 = vadd.f32 0.0, %v3436
        %3438 = vmatmul.bf16.gmra.mxu0 %v2846
        %v3439 = vpop.f32.mrf.mxu0
        %v3440 = vadd.f32 0.0, %v3439
        %v3441 = vpop.f32.mrf.mxu0
        %v3442 = vadd.f32 0.0, %v3441
        %3443 = vmatmul.bf16.gmra.mxu0 %v2847
        %v3444 = vpop.f32.mrf.mxu0
        %v3445 = vadd.f32 0.0, %v3444
        %v3446 = vpop.f32.mrf.mxu0
        %v3447 = vadd.f32 0.0, %v3446
        %3448 = vmatmul.bf16.gmra.mxu0 %v2848
        %v3449 = vpop.f32.mrf.mxu0
        %v3450 = vadd.f32 0.0, %v3449
        %v3451 = vpop.f32.mrf.mxu0
        %v3452 = vadd.f32 0.0, %v3451
        %3453 = vmatmul.bf16.gmra.mxu0 %v2849
        %v3454 = vpop.f32.mrf.mxu0
        %v3455 = vadd.f32 0.0, %v3454
        %v3456 = vpop.f32.mrf.mxu0
        %v3457 = vadd.f32 0.0, %v3456
        %3458 = vdwg.mxu0
        %v3459 = vsel %vm3039, -1e+09, %v3371
        %v3460 = vsel %vm3040, -1e+09, %v3420
        %v3461 = vsel %vm3041, -1e+09, %v3373
        %v3462 = vsel %vm3042, -1e+09, %v3422
        %v3463 = vsel %vm3043, -1e+09, %v3376
        %v3464 = vsel %vm3044, -1e+09, %v3425
        %v3465 = vsel %vm3045, -1e+09, %v3378
        %v3466 = vsel %vm3046, -1e+09, %v3427
        %v3467 = vsel %vm3047, -1e+09, %v3381
        %v3468 = vsel %vm3048, -1e+09, %v3430
        %v3469 = vsel %vm3049, -1e+09, %v3383
        %v3470 = vsel %vm3050, -1e+09, %v3432
        %v3471 = vsel %vm3051, -1e+09, %v3386
        %v3472 = vsel %vm3052, -1e+09, %v3435
        %v3473 = vsel %vm3053, -1e+09, %v3388
        %v3474 = vsel %vm3054, -1e+09, %v3437
        %v3475 = vsel %vm3055, -1e+09, %v3391
        %v3476 = vsel %vm3056, -1e+09, %v3440
        %v3477 = vsel %vm3057, -1e+09, %v3393
        %v3478 = vsel %vm3058, -1e+09, %v3442
        %v3479 = vsel %vm3059, -1e+09, %v3396
        %v3480 = vsel %vm3060, -1e+09, %v3445
        %v3481 = vsel %vm3061, -1e+09, %v3398
        %v3482 = vsel %vm3062, -1e+09, %v3447
        %v3483 = vsel %vm3063, -1e+09, %v3401
        %v3484 = vsel %vm3064, -1e+09, %v3450
        %v3485 = vsel %vm3065, -1e+09, %v3403
        %v3486 = vsel %vm3066, -1e+09, %v3452
        %v3487 = vsel %vm3067, -1e+09, %v3406
        %v3488 = vsel %vm3068, -1e+09, %v3455
        %v3489 = vsel %vm3069, -1e+09, %v3408
        %v3490 = vsel %vm3070, -1e+09, %v3457
        %v3491 = vmax.f32 %v3177, %v3226
        %3492 = vmax.xlane.f32.xlu0 %v3491
        %v3493 = vpop.xlane.xlu0 %3492
        %v3494 = vmax.f32 %v3179, %v3228
        %3495 = vmax.xlane.f32.xlu0 %v3494
        %v3496 = vpop.xlane.xlu0 %3495
        %v3497 = vmax.f32 %v3182, %v3231
        %3498 = vmax.xlane.f32.xlu0 %v3497
        %v3499 = vpop.xlane.xlu0 %3498
        %v3500 = vmax.f32 %v3184, %v3233
        %3501 = vmax.xlane.f32.xlu0 %v3500
        %v3502 = vpop.xlane.xlu0 %3501
        %v3503 = vmax.f32 %v3187, %v3236
        %3504 = vmax.xlane.f32.xlu0 %v3503
        %v3505 = vpop.xlane.xlu0 %3504
        %v3506 = vmax.f32 %v3189, %v3238
        %3507 = vmax.xlane.f32.xlu0 %v3506
        %v3508 = vpop.xlane.xlu0 %3507
        %v3509 = vmax.f32 %v3192, %v3241
        %3510 = vmax.xlane.f32.xlu0 %v3509
        %v3511 = vpop.xlane.xlu0 %3510
        %v3512 = vmax.f32 %v3194, %v3243
        %3513 = vmax.xlane.f32.xlu0 %v3512
        %v3514 = vpop.xlane.xlu0 %3513
        %v3515 = vmax.f32 %v3197, %v3246
        %3516 = vmax.xlane.f32.xlu0 %v3515
        %v3517 = vpop.xlane.xlu0 %3516
        %v3518 = vmax.f32 %v3199, %v3248
        %3519 = vmax.xlane.f32.xlu0 %v3518
        %v3520 = vpop.xlane.xlu0 %3519
        %v3521 = vmax.f32 %v3202, %v3251
        %3522 = vmax.xlane.f32.xlu0 %v3521
        %v3523 = vpop.xlane.xlu0 %3522
        %v3524 = vmax.f32 %v3204, %v3253
        %3525 = vmax.xlane.f32.xlu0 %v3524
        %v3526 = vpop.xlane.xlu0 %3525
        %v3527 = vmax.f32 %v3207, %v3256
        %3528 = vmax.xlane.f32.xlu0 %v3527
        %v3529 = vpop.xlane.xlu0 %3528
        %v3530 = vmax.f32 %v3209, %v3258
        %3531 = vmax.xlane.f32.xlu0 %v3530
        %v3532 = vpop.xlane.xlu0 %3531
        %v3533 = vmax.f32 %v3212, %v3261
        %3534 = vmax.xlane.f32.xlu0 %v3533
        %v3535 = vpop.xlane.xlu0 %3534
        %v3536 = vmax.f32 %v3214, %v3263
        %3537 = vmax.xlane.f32.xlu0 %v3536
        %v3538 = vpop.xlane.xlu0 %3537
        %v3539 = vmax.f32 %v3459, %v3460
        %3540 = vmax.xlane.f32.xlu0 %v3539
        %v3541 = vpop.xlane.xlu0 %3540
        %v3542 = vmax.f32 %v3461, %v3462
        %3543 = vmax.xlane.f32.xlu0 %v3542
        %v3544 = vpop.xlane.xlu0 %3543
        %v3545 = vmax.f32 %v3463, %v3464
        %3546 = vmax.xlane.f32.xlu0 %v3545
        %v3547 = vpop.xlane.xlu0 %3546
        %v3548 = vmax.f32 %v3465, %v3466
        %3549 = vmax.xlane.f32.xlu0 %v3548
        %v3550 = vpop.xlane.xlu0 %3549
        %v3551 = vmax.f32 %v3467, %v3468
        %3552 = vmax.xlane.f32.xlu0 %v3551
        %v3553 = vpop.xlane.xlu0 %3552
        %v3554 = vmax.f32 %v3469, %v3470
        %3555 = vmax.xlane.f32.xlu0 %v3554
        %v3556 = vpop.xlane.xlu0 %3555
        %v3557 = vmax.f32 %v3471, %v3472
        %3558 = vmax.xlane.f32.xlu0 %v3557
        %v3559 = vpop.xlane.xlu0 %3558
        %v3560 = vmax.f32 %v3473, %v3474
        %3561 = vmax.xlane.f32.xlu0 %v3560
        %v3562 = vpop.xlane.xlu0 %3561
        %v3563 = vmax.f32 %v3475, %v3476
        %3564 = vmax.xlane.f32.xlu0 %v3563
        %v3565 = vpop.xlane.xlu0 %3564
        %v3566 = vmax.f32 %v3477, %v3478
        %3567 = vmax.xlane.f32.xlu0 %v3566
        %v3568 = vpop.xlane.xlu0 %3567
        %v3569 = vmax.f32 %v3479, %v3480
        %3570 = vmax.xlane.f32.xlu0 %v3569
        %v3571 = vpop.xlane.xlu0 %3570
        %v3572 = vmax.f32 %v3481, %v3482
        %3573 = vmax.xlane.f32.xlu0 %v3572
        %v3574 = vpop.xlane.xlu0 %3573
        %v3575 = vmax.f32 %v3483, %v3484
        %3576 = vmax.xlane.f32.xlu0 %v3575
        %v3577 = vpop.xlane.xlu0 %3576
        %v3578 = vmax.f32 %v3485, %v3486
        %3579 = vmax.xlane.f32.xlu0 %v3578
        %v3580 = vpop.xlane.xlu0 %3579
        %v3581 = vmax.f32 %v3487, %v3488
        %3582 = vmax.xlane.f32.xlu0 %v3581
        %v3583 = vpop.xlane.xlu0 %3582
        %v3584 = vmax.f32 %v3489, %v3490
        %3585 = vmax.xlane.f32.xlu0 %v3584
        %v3586 = vpop.xlane.xlu0 %3585
        %v3587 = vmax.f32 %v3493, %v3541
        %v3588 = vmax.f32 %v3496, %v3544
        %v3589 = vmax.f32 %v3499, %v3547
        %v3590 = vmax.f32 %v3502, %v3550
        %v3591 = vmax.f32 %v3505, %v3553
        %v3592 = vmax.f32 %v3508, %v3556
        %v3593 = vmax.f32 %v3511, %v3559
        %v3594 = vmax.f32 %v3514, %v3562
        %v3595 = vmax.f32 %v3517, %v3565
        %v3596 = vmax.f32 %v3520, %v3568
        %v3597 = vmax.f32 %v3523, %v3571
        %v3598 = vmax.f32 %v3526, %v3574
        %v3599 = vmax.f32 %v3529, %v3577
        %v3600 = vmax.f32 %v3532, %v3580
        %v3601 = vmax.f32 %v3535, %v3583
        %v3602 = vmax.f32 %v3538, %v3586
        %v3603 = vsub.f32 %v3177, %v3587
        %v3604 = vsub.f32 %v3226, %v3587
        %v3605 = vsub.f32 %v3179, %v3588
        %v3606 = vsub.f32 %v3228, %v3588
        %v3607 = vsub.f32 %v3182, %v3589
        %v3608 = vsub.f32 %v3231, %v3589
        %v3609 = vsub.f32 %v3184, %v3590
        %v3610 = vsub.f32 %v3233, %v3590
        %v3611 = vsub.f32 %v3187, %v3591
        %v3612 = vsub.f32 %v3236, %v3591
        %v3613 = vsub.f32 %v3189, %v3592
        %v3614 = vsub.f32 %v3238, %v3592
        %v3615 = vsub.f32 %v3192, %v3593
        %v3616 = vsub.f32 %v3241, %v3593
        %v3617 = vsub.f32 %v3194, %v3594
        %v3618 = vsub.f32 %v3243, %v3594
        %v3619 = vsub.f32 %v3197, %v3595
        %v3620 = vsub.f32 %v3246, %v3595
        %v3621 = vsub.f32 %v3199, %v3596
        %v3622 = vsub.f32 %v3248, %v3596
        %v3623 = vsub.f32 %v3202, %v3597
        %v3624 = vsub.f32 %v3251, %v3597
        %v3625 = vsub.f32 %v3204, %v3598
        %v3626 = vsub.f32 %v3253, %v3598
        %v3627 = vsub.f32 %v3207, %v3599
        %v3628 = vsub.f32 %v3256, %v3599
        %v3629 = vsub.f32 %v3209, %v3600
        %v3630 = vsub.f32 %v3258, %v3600
        %v3631 = vsub.f32 %v3212, %v3601
        %v3632 = vsub.f32 %v3261, %v3601
        %v3633 = vsub.f32 %v3214, %v3602
        %v3634 = vsub.f32 %v3263, %v3602
        %v3635 = vmul.f32 %v3603, 1.442695
        %v3636 = vpow.pop %v3635
        %v3637 = vmul.f32 %v3604, 1.442695
        %v3638 = vpow.pop %v3637
        %v3639 = vmul.f32 %v3605, 1.442695
        %v3640 = vpow.pop %v3639
        %v3641 = vmul.f32 %v3606, 1.442695
        %v3642 = vpow.pop %v3641
        %v3643 = vmul.f32 %v3607, 1.442695
        %v3644 = vpow.pop %v3643
        %v3645 = vmul.f32 %v3608, 1.442695
        %v3646 = vpow.pop %v3645
        %v3647 = vmul.f32 %v3609, 1.442695
        %v3648 = vpow.pop %v3647
        %v3649 = vmul.f32 %v3610, 1.442695
        %v3650 = vpow.pop %v3649
        %v3651 = vmul.f32 %v3611, 1.442695
        %v3652 = vpow.pop %v3651
        %v3653 = vmul.f32 %v3612, 1.442695
        %v3654 = vpow.pop %v3653
        %v3655 = vmul.f32 %v3613, 1.442695
        %v3656 = vpow.pop %v3655
        %v3657 = vmul.f32 %v3614, 1.442695
        %v3658 = vpow.pop %v3657
        %v3659 = vmul.f32 %v3615, 1.442695
        %v3660 = vpow.pop %v3659
        %v3661 = vmul.f32 %v3616, 1.442695
        %v3662 = vpow.pop %v3661
        %v3663 = vmul.f32 %v3617, 1.442695
        %v3664 = vpow.pop %v3663
        %v3665 = vmul.f32 %v3618, 1.442695
        %v3666 = vpow.pop %v3665
        %v3667 = vmul.f32 %v3619, 1.442695
        %v3668 = vpow.pop %v3667
        %v3669 = vmul.f32 %v3620, 1.442695
        %v3670 = vpow.pop %v3669
        %v3671 = vmul.f32 %v3621, 1.442695
        %v3672 = vpow.pop %v3671
        %v3673 = vmul.f32 %v3622, 1.442695
        %v3674 = vpow.pop %v3673
        %v3675 = vmul.f32 %v3623, 1.442695
        %v3676 = vpow.pop %v3675
        %v3677 = vmul.f32 %v3624, 1.442695
        %v3678 = vpow.pop %v3677
        %v3679 = vmul.f32 %v3625, 1.442695
        %v3680 = vpow.pop %v3679
        %v3681 = vmul.f32 %v3626, 1.442695
        %v3682 = vpow.pop %v3681
        %v3683 = vmul.f32 %v3627, 1.442695
        %v3684 = vpow.pop %v3683
        %v3685 = vmul.f32 %v3628, 1.442695
        %v3686 = vpow.pop %v3685
        %v3687 = vmul.f32 %v3629, 1.442695
        %v3688 = vpow.pop %v3687
        %v3689 = vmul.f32 %v3630, 1.442695
        %v3690 = vpow.pop %v3689
        %v3691 = vmul.f32 %v3631, 1.442695
        %v3692 = vpow.pop %v3691
        %v3693 = vmul.f32 %v3632, 1.442695
        %v3694 = vpow.pop %v3693
        %v3695 = vmul.f32 %v3633, 1.442695
        %v3696 = vpow.pop %v3695
        %v3697 = vmul.f32 %v3634, 1.442695
        %v3698 = vpow.pop %v3697
        %v3699 = vadd.f32 %v3636, %v3638
        %3700 = vadd.xlane.f32.xlu0 %v3699
        %v3701 = vpop.xlane.xlu0 %3700
        %v3702 = vadd.f32 %v3640, %v3642
        %3703 = vadd.xlane.f32.xlu0 %v3702
        %v3704 = vpop.xlane.xlu0 %3703
        %v3705 = vadd.f32 %v3644, %v3646
        %3706 = vadd.xlane.f32.xlu0 %v3705
        %v3707 = vpop.xlane.xlu0 %3706
        %v3708 = vadd.f32 %v3648, %v3650
        %3709 = vadd.xlane.f32.xlu0 %v3708
        %v3710 = vpop.xlane.xlu0 %3709
        %v3711 = vadd.f32 %v3652, %v3654
        %3712 = vadd.xlane.f32.xlu0 %v3711
        %v3713 = vpop.xlane.xlu0 %3712
        %v3714 = vadd.f32 %v3656, %v3658
        %3715 = vadd.xlane.f32.xlu0 %v3714
        %v3716 = vpop.xlane.xlu0 %3715
        %v3717 = vadd.f32 %v3660, %v3662
        %3718 = vadd.xlane.f32.xlu0 %v3717
        %v3719 = vpop.xlane.xlu0 %3718
        %v3720 = vadd.f32 %v3664, %v3666
        %3721 = vadd.xlane.f32.xlu0 %v3720
        %v3722 = vpop.xlane.xlu0 %3721
        %v3723 = vadd.f32 %v3668, %v3670
        %3724 = vadd.xlane.f32.xlu0 %v3723
        %v3725 = vpop.xlane.xlu0 %3724
        %v3726 = vadd.f32 %v3672, %v3674
        %3727 = vadd.xlane.f32.xlu0 %v3726
        %v3728 = vpop.xlane.xlu0 %3727
        %v3729 = vadd.f32 %v3676, %v3678
        %3730 = vadd.xlane.f32.xlu0 %v3729
        %v3731 = vpop.xlane.xlu0 %3730
        %v3732 = vadd.f32 %v3680, %v3682
        %3733 = vadd.xlane.f32.xlu0 %v3732
        %v3734 = vpop.xlane.xlu0 %3733
        %v3735 = vadd.f32 %v3684, %v3686
        %3736 = vadd.xlane.f32.xlu0 %v3735
        %v3737 = vpop.xlane.xlu0 %3736
        %v3738 = vadd.f32 %v3688, %v3690
        %3739 = vadd.xlane.f32.xlu0 %v3738
        %v3740 = vpop.xlane.xlu0 %3739
        %v3741 = vadd.f32 %v3692, %v3694
        %3742 = vadd.xlane.f32.xlu0 %v3741
        %v3743 = vpop.xlane.xlu0 %3742
        %v3744 = vadd.f32 %v3696, %v3698
        %3745 = vadd.xlane.f32.xlu0 %v3744
        %v3746 = vpop.xlane.xlu0 %3745
        %v3747 = vsub.f32 %v3459, %v3587
        %v3748 = vsub.f32 %v3460, %v3587
        %v3749 = vsub.f32 %v3461, %v3588
        %v3750 = vsub.f32 %v3462, %v3588
        %v3751 = vsub.f32 %v3463, %v3589
        %v3752 = vsub.f32 %v3464, %v3589
        %v3753 = vsub.f32 %v3465, %v3590
        %v3754 = vsub.f32 %v3466, %v3590
        %v3755 = vsub.f32 %v3467, %v3591
        %v3756 = vsub.f32 %v3468, %v3591
        %v3757 = vsub.f32 %v3469, %v3592
        %v3758 = vsub.f32 %v3470, %v3592
        %v3759 = vsub.f32 %v3471, %v3593
        %v3760 = vsub.f32 %v3472, %v3593
        %v3761 = vsub.f32 %v3473, %v3594
        %v3762 = vsub.f32 %v3474, %v3594
        %v3763 = vsub.f32 %v3475, %v3595
        %v3764 = vsub.f32 %v3476, %v3595
        %v3765 = vsub.f32 %v3477, %v3596
        %v3766 = vsub.f32 %v3478, %v3596
        %v3767 = vsub.f32 %v3479, %v3597
        %v3768 = vsub.f32 %v3480, %v3597
        %v3769 = vsub.f32 %v3481, %v3598
        %v3770 = vsub.f32 %v3482, %v3598
        %v3771 = vsub.f32 %v3483, %v3599
        %v3772 = vsub.f32 %v3484, %v3599
        %v3773 = vsub.f32 %v3485, %v3600
        %v3774 = vsub.f32 %v3486, %v3600
        %v3775 = vsub.f32 %v3487, %v3601
        %v3776 = vsub.f32 %v3488, %v3601
        %v3777 = vsub.f32 %v3489, %v3602
        %v3778 = vsub.f32 %v3490, %v3602
        %v3779 = vmul.f32 %v3747, 1.442695
        %v3780 = vpow.pop %v3779
        %v3781 = vmul.f32 %v3748, 1.442695
        %v3782 = vpow.pop %v3781
        %v3783 = vmul.f32 %v3749, 1.442695
        %v3784 = vpow.pop %v3783
        %v3785 = vmul.f32 %v3750, 1.442695
        %v3786 = vpow.pop %v3785
        %v3787 = vmul.f32 %v3751, 1.442695
        %v3788 = vpow.pop %v3787
        %v3789 = vmul.f32 %v3752, 1.442695
        %v3790 = vpow.pop %v3789
        %v3791 = vmul.f32 %v3753, 1.442695
        %v3792 = vpow.pop %v3791
        %v3793 = vmul.f32 %v3754, 1.442695
        %v3794 = vpow.pop %v3793
        %v3795 = vmul.f32 %v3755, 1.442695
        %v3796 = vpow.pop %v3795
        %v3797 = vmul.f32 %v3756, 1.442695
        %v3798 = vpow.pop %v3797
        %v3799 = vmul.f32 %v3757, 1.442695
        %v3800 = vpow.pop %v3799
        %v3801 = vmul.f32 %v3758, 1.442695
        %v3802 = vpow.pop %v3801
        %v3803 = vmul.f32 %v3759, 1.442695
        %v3804 = vpow.pop %v3803
        %v3805 = vmul.f32 %v3760, 1.442695
        %v3806 = vpow.pop %v3805
        %v3807 = vmul.f32 %v3761, 1.442695
        %v3808 = vpow.pop %v3807
        %v3809 = vmul.f32 %v3762, 1.442695
        %v3810 = vpow.pop %v3809
        %v3811 = vmul.f32 %v3763, 1.442695
        %v3812 = vpow.pop %v3811
        %v3813 = vmul.f32 %v3764, 1.442695
        %v3814 = vpow.pop %v3813
        %v3815 = vmul.f32 %v3765, 1.442695
        %v3816 = vpow.pop %v3815
        %v3817 = vmul.f32 %v3766, 1.442695
        %v3818 = vpow.pop %v3817
        %v3819 = vmul.f32 %v3767, 1.442695
        %v3820 = vpow.pop %v3819
        %v3821 = vmul.f32 %v3768, 1.442695
        %v3822 = vpow.pop %v3821
        %v3823 = vmul.f32 %v3769, 1.442695
        %v3824 = vpow.pop %v3823
        %v3825 = vmul.f32 %v3770, 1.442695
        %v3826 = vpow.pop %v3825
        %v3827 = vmul.f32 %v3771, 1.442695
        %v3828 = vpow.pop %v3827
        %v3829 = vmul.f32 %v3772, 1.442695
        %v3830 = vpow.pop %v3829
        %v3831 = vmul.f32 %v3773, 1.442695
        %v3832 = vpow.pop %v3831
        %v3833 = vmul.f32 %v3774, 1.442695
        %v3834 = vpow.pop %v3833
        %v3835 = vmul.f32 %v3775, 1.442695
        %v3836 = vpow.pop %v3835
        %v3837 = vmul.f32 %v3776, 1.442695
        %v3838 = vpow.pop %v3837
        %v3839 = vmul.f32 %v3777, 1.442695
        %v3840 = vpow.pop %v3839
        %v3841 = vmul.f32 %v3778, 1.442695
        %v3842 = vpow.pop %v3841
        %v3843 = vadd.f32 %v3780, %v3782
        %3844 = vadd.xlane.f32.xlu0 %v3843
        %v3845 = vpop.xlane.xlu0 %3844
        %v3846 = vadd.f32 %v3784, %v3786
        %3847 = vadd.xlane.f32.xlu0 %v3846
        %v3848 = vpop.xlane.xlu0 %3847
        %v3849 = vadd.f32 %v3788, %v3790
        %3850 = vadd.xlane.f32.xlu0 %v3849
        %v3851 = vpop.xlane.xlu0 %3850
        %v3852 = vadd.f32 %v3792, %v3794
        %3853 = vadd.xlane.f32.xlu0 %v3852
        %v3854 = vpop.xlane.xlu0 %3853
        %v3855 = vadd.f32 %v3796, %v3798
        %3856 = vadd.xlane.f32.xlu0 %v3855
        %v3857 = vpop.xlane.xlu0 %3856
        %v3858 = vadd.f32 %v3800, %v3802
        %3859 = vadd.xlane.f32.xlu0 %v3858
        %v3860 = vpop.xlane.xlu0 %3859
        %v3861 = vadd.f32 %v3804, %v3806
        %3862 = vadd.xlane.f32.xlu0 %v3861
        %v3863 = vpop.xlane.xlu0 %3862
        %v3864 = vadd.f32 %v3808, %v3810
        %3865 = vadd.xlane.f32.xlu0 %v3864
        %v3866 = vpop.xlane.xlu0 %3865
        %v3867 = vadd.f32 %v3812, %v3814
        %3868 = vadd.xlane.f32.xlu0 %v3867
        %v3869 = vpop.xlane.xlu0 %3868
        %v3870 = vadd.f32 %v3816, %v3818
        %3871 = vadd.xlane.f32.xlu0 %v3870
        %v3872 = vpop.xlane.xlu0 %3871
        %v3873 = vadd.f32 %v3820, %v3822
        %3874 = vadd.xlane.f32.xlu0 %v3873
        %v3875 = vpop.xlane.xlu0 %3874
        %v3876 = vadd.f32 %v3824, %v3826
        %3877 = vadd.xlane.f32.xlu0 %v3876
        %v3878 = vpop.xlane.xlu0 %3877
        %v3879 = vadd.f32 %v3828, %v3830
        %3880 = vadd.xlane.f32.xlu0 %v3879
        %v3881 = vpop.xlane.xlu0 %3880
        %v3882 = vadd.f32 %v3832, %v3834
        %3883 = vadd.xlane.f32.xlu0 %v3882
        %v3884 = vpop.xlane.xlu0 %3883
        %v3885 = vadd.f32 %v3836, %v3838
        %3886 = vadd.xlane.f32.xlu0 %v3885
        %v3887 = vpop.xlane.xlu0 %3886
        %v3888 = vadd.f32 %v3840, %v3842
        %3889 = vadd.xlane.f32.xlu0 %v3888
        %v3890 = vpop.xlane.xlu0 %3889
        %v3891 = vadd.f32 %v3701, %v3845
        %v3892 = vadd.f32 %v3704, %v3848
        %v3893 = vadd.f32 %v3707, %v3851
        %v3894 = vadd.f32 %v3710, %v3854
        %v3895 = vadd.f32 %v3713, %v3857
        %v3896 = vadd.f32 %v3716, %v3860
        %v3897 = vadd.f32 %v3719, %v3863
        %v3898 = vadd.f32 %v3722, %v3866
        %v3899 = vadd.f32 %v3725, %v3869
        %v3900 = vadd.f32 %v3728, %v3872
        %v3901 = vadd.f32 %v3731, %v3875
        %v3902 = vadd.f32 %v3734, %v3878
        %v3903 = vadd.f32 %v3737, %v3881
        %v3904 = vadd.f32 %v3740, %v3884
        %v3905 = vadd.f32 %v3743, %v3887
        %v3906 = vadd.f32 %v3746, %v3890
        %v3907 = vlog2.pop %v3891
        %v3908 = vmul.f32 %v3907, 0.6931472
        %v3909 = vlog2.pop %v3892
        %v3910 = vmul.f32 %v3909, 0.6931472
        %v3911 = vlog2.pop %v3893
        %v3912 = vmul.f32 %v3911, 0.6931472
        %v3913 = vlog2.pop %v3894
        %v3914 = vmul.f32 %v3913, 0.6931472
        %v3915 = vlog2.pop %v3895
        %v3916 = vmul.f32 %v3915, 0.6931472
        %v3917 = vlog2.pop %v3896
        %v3918 = vmul.f32 %v3917, 0.6931472
        %v3919 = vlog2.pop %v3897
        %v3920 = vmul.f32 %v3919, 0.6931472
        %v3921 = vlog2.pop %v3898
        %v3922 = vmul.f32 %v3921, 0.6931472
        %v3923 = vlog2.pop %v3899
        %v3924 = vmul.f32 %v3923, 0.6931472
        %v3925 = vlog2.pop %v3900
        %v3926 = vmul.f32 %v3925, 0.6931472
        %v3927 = vlog2.pop %v3901
        %v3928 = vmul.f32 %v3927, 0.6931472
        %v3929 = vlog2.pop %v3902
        %v3930 = vmul.f32 %v3929, 0.6931472
        %v3931 = vlog2.pop %v3903
        %v3932 = vmul.f32 %v3931, 0.6931472
        %v3933 = vlog2.pop %v3904
        %v3934 = vmul.f32 %v3933, 0.6931472
        %v3935 = vlog2.pop %v3905
        %v3936 = vmul.f32 %v3935, 0.6931472
        %v3937 = vlog2.pop %v3906
        %v3938 = vmul.f32 %v3937, 0.6931472
        %v3939 = vadd.f32 %v3587, %v3908
        %v3940 = vadd.f32 %v3588, %v3910
        %v3941 = vadd.f32 %v3589, %v3912
        %v3942 = vadd.f32 %v3590, %v3914
        %v3943 = vadd.f32 %v3591, %v3916
        %v3944 = vadd.f32 %v3592, %v3918
        %v3945 = vadd.f32 %v3593, %v3920
        %v3946 = vadd.f32 %v3594, %v3922
        %v3947 = vadd.f32 %v3595, %v3924
        %v3948 = vadd.f32 %v3596, %v3926
        %v3949 = vadd.f32 %v3597, %v3928
        %v3950 = vadd.f32 %v3598, %v3930
        %v3951 = vadd.f32 %v3599, %v3932
        %v3952 = vadd.f32 %v3600, %v3934
        %v3953 = vadd.f32 %v3601, %v3936
        %v3954 = vadd.f32 %v3602, %v3938
        %v3955 = vsub.f32 %v3939, %v2763
        %v3956 = vsub.f32 %v3940, %v2765
        %v3957 = vsub.f32 %v3941, %v2767
        %v3958 = vsub.f32 %v3942, %v2769
        %v3959 = vsub.f32 %v3943, %v2771
        %v3960 = vsub.f32 %v3944, %v2773
        %v3961 = vsub.f32 %v3945, %v2775
        %v3962 = vsub.f32 %v3946, %v2777
        %v3963 = vsub.f32 %v3947, %v2779
        %v3964 = vsub.f32 %v3948, %v2781
        %v3965 = vsub.f32 %v3949, %v2783
        %v3966 = vsub.f32 %v3950, %v2785
        %v3967 = vsub.f32 %v3951, %v2787
        %v3968 = vsub.f32 %v3952, %v2789
        %v3969 = vsub.f32 %v3953, %v2791
        %v3970 = vsub.f32 %v3954, %v2793
        %3971 = vmatpush.bf16.xpose.msra.mxu0 %v3336
        %3972 = vmatpush.bf16.xpose.msra.mxu0 %v3335
        %3973 = vmatpush.bf16.xpose.msra.mxu0 %v3334
        %3974 = vmatpush.bf16.xpose.msra.mxu0 %v3333
        %3975 = vmatpush.bf16.xpose.msra.mxu0 %v3332
        %3976 = vmatpush.bf16.xpose.msra.mxu0 %v3331
        %3977 = vmatpush.bf16.xpose.msra.mxu0 %v3330
        %3978 = vmatpush.bf16.xpose.msra.mxu0 %v3329
        %3979 = vmatmul.bf16.gmra.mxu0 %v2850
        %v3980 = vpop.f32.mrf.mxu0
        %v3981 = vadd.f32 0.0, %v3980
        %v3982 = vpop.f32.mrf.mxu0
        %v3983 = vadd.f32 0.0, %v3982
        %3984 = vmatmul.bf16.gmra.mxu0 %v2851
        %v3985 = vpop.f32.mrf.mxu0
        %v3986 = vadd.f32 0.0, %v3985
        %v3987 = vpop.f32.mrf.mxu0
        %v3988 = vadd.f32 0.0, %v3987
        %3989 = vmatmul.bf16.gmra.mxu0 %v2852
        %v3990 = vpop.f32.mrf.mxu0
        %v3991 = vadd.f32 0.0, %v3990
        %v3992 = vpop.f32.mrf.mxu0
        %v3993 = vadd.f32 0.0, %v3992
        %3994 = vmatmul.bf16.gmra.mxu0 %v2853
        %v3995 = vpop.f32.mrf.mxu0
        %v3996 = vadd.f32 0.0, %v3995
        %v3997 = vpop.f32.mrf.mxu0
        %v3998 = vadd.f32 0.0, %v3997
        %3999 = vmatmul.bf16.gmra.mxu0 %v2854
        %v4000 = vpop.f32.mrf.mxu0
        %v4001 = vadd.f32 0.0, %v4000
        %v4002 = vpop.f32.mrf.mxu0
        %v4003 = vadd.f32 0.0, %v4002
        %4004 = vmatmul.bf16.gmra.mxu0 %v2855
        %v4005 = vpop.f32.mrf.mxu0
        %v4006 = vadd.f32 0.0, %v4005
        %v4007 = vpop.f32.mrf.mxu0
        %v4008 = vadd.f32 0.0, %v4007
        %4009 = vmatmul.bf16.gmra.mxu0 %v2856
        %v4010 = vpop.f32.mrf.mxu0
        %v4011 = vadd.f32 0.0, %v4010
        %v4012 = vpop.f32.mrf.mxu0
        %v4013 = vadd.f32 0.0, %v4012
        %4014 = vmatmul.bf16.gmra.mxu0 %v2857
        %v4015 = vpop.f32.mrf.mxu0
        %v4016 = vadd.f32 0.0, %v4015
        %v4017 = vpop.f32.mrf.mxu0
        %v4018 = vadd.f32 0.0, %v4017
        %4019 = vdwg.mxu0
        %4020 = vmatpush.bf16.xpose.msra.mxu0 %v3344
        %4021 = vmatpush.bf16.xpose.msra.mxu0 %v3343
        %4022 = vmatpush.bf16.xpose.msra.mxu0 %v3342
        %4023 = vmatpush.bf16.xpose.msra.mxu0 %v3341
        %4024 = vmatpush.bf16.xpose.msra.mxu0 %v3340
        %4025 = vmatpush.bf16.xpose.msra.mxu0 %v3339
        %4026 = vmatpush.bf16.xpose.msra.mxu0 %v3338
        %4027 = vmatpush.bf16.xpose.msra.mxu0 %v3337
        %4028 = vmatmul.bf16.gmra.mxu0 %v2850
        %v4029 = vpop.f32.mrf.mxu0
        %v4030 = vadd.f32 0.0, %v4029
        %v4031 = vpop.f32.mrf.mxu0
        %v4032 = vadd.f32 0.0, %v4031
        %4033 = vmatmul.bf16.gmra.mxu0 %v2851
        %v4034 = vpop.f32.mrf.mxu0
        %v4035 = vadd.f32 0.0, %v4034
        %v4036 = vpop.f32.mrf.mxu0
        %v4037 = vadd.f32 0.0, %v4036
        %4038 = vmatmul.bf16.gmra.mxu0 %v2852
        %v4039 = vpop.f32.mrf.mxu0
        %v4040 = vadd.f32 0.0, %v4039
        %v4041 = vpop.f32.mrf.mxu0
        %v4042 = vadd.f32 0.0, %v4041
        %4043 = vmatmul.bf16.gmra.mxu0 %v2853
        %v4044 = vpop.f32.mrf.mxu0
        %v4045 = vadd.f32 0.0, %v4044
        %v4046 = vpop.f32.mrf.mxu0
        %v4047 = vadd.f32 0.0, %v4046
        %4048 = vmatmul.bf16.gmra.mxu0 %v2854
        %v4049 = vpop.f32.mrf.mxu0
        %v4050 = vadd.f32 0.0, %v4049
        %v4051 = vpop.f32.mrf.mxu0
        %v4052 = vadd.f32 0.0, %v4051
        %4053 = vmatmul.bf16.gmra.mxu0 %v2855
        %v4054 = vpop.f32.mrf.mxu0
        %v4055 = vadd.f32 0.0, %v4054
        %v4056 = vpop.f32.mrf.mxu0
        %v4057 = vadd.f32 0.0, %v4056
        %4058 = vmatmul.bf16.gmra.mxu0 %v2856
        %v4059 = vpop.f32.mrf.mxu0
        %v4060 = vadd.f32 0.0, %v4059
        %v4061 = vpop.f32.mrf.mxu0
        %v4062 = vadd.f32 0.0, %v4061
        %4063 = vmatmul.bf16.gmra.mxu0 %v2857
        %v4064 = vpop.f32.mrf.mxu0
        %v4065 = vadd.f32 0.0, %v4064
        %v4066 = vpop.f32.mrf.mxu0
        %v4067 = vadd.f32 0.0, %v4066
        %4068 = vdwg.mxu0
        %4069 = vmatpush.bf16.xpose.msra.mxu0 %v3142
        %4070 = vmatpush.bf16.xpose.msra.mxu0 %v3141
        %4071 = vmatpush.bf16.xpose.msra.mxu0 %v3140
        %4072 = vmatpush.bf16.xpose.msra.mxu0 %v3139
        %4073 = vmatpush.bf16.xpose.msra.mxu0 %v3138
        %4074 = vmatpush.bf16.xpose.msra.mxu0 %v3137
        %4075 = vmatpush.bf16.xpose.msra.mxu0 %v3136
        %4076 = vmatpush.bf16.xpose.msra.mxu0 %v3135
        %4077 = vmatmul.bf16.gmra.mxu0 %v2850
        %v4078 = vpop.f32.mrf.mxu0
        %v4079 = vadd.f32 0.0, %v4078
        %v4080 = vpop.f32.mrf.mxu0
        %v4081 = vadd.f32 0.0, %v4080
        %4082 = vmatmul.bf16.gmra.mxu0 %v2851
        %v4083 = vpop.f32.mrf.mxu0
        %v4084 = vadd.f32 0.0, %v4083
        %v4085 = vpop.f32.mrf.mxu0
        %v4086 = vadd.f32 0.0, %v4085
        %4087 = vmatmul.bf16.gmra.mxu0 %v2852
        %v4088 = vpop.f32.mrf.mxu0
        %v4089 = vadd.f32 0.0, %v4088
        %v4090 = vpop.f32.mrf.mxu0
        %v4091 = vadd.f32 0.0, %v4090
        %4092 = vmatmul.bf16.gmra.mxu0 %v2853
        %v4093 = vpop.f32.mrf.mxu0
        %v4094 = vadd.f32 0.0, %v4093
        %v4095 = vpop.f32.mrf.mxu0
        %v4096 = vadd.f32 0.0, %v4095
        %4097 = vmatmul.bf16.gmra.mxu0 %v2854
        %v4098 = vpop.f32.mrf.mxu0
        %v4099 = vadd.f32 0.0, %v4098
        %v4100 = vpop.f32.mrf.mxu0
        %v4101 = vadd.f32 0.0, %v4100
        %4102 = vmatmul.bf16.gmra.mxu0 %v2855
        %v4103 = vpop.f32.mrf.mxu0
        %v4104 = vadd.f32 0.0, %v4103
        %v4105 = vpop.f32.mrf.mxu0
        %v4106 = vadd.f32 0.0, %v4105
        %4107 = vmatmul.bf16.gmra.mxu0 %v2856
        %v4108 = vpop.f32.mrf.mxu0
        %v4109 = vadd.f32 0.0, %v4108
        %v4110 = vpop.f32.mrf.mxu0
        %v4111 = vadd.f32 0.0, %v4110
        %4112 = vmatmul.bf16.gmra.mxu0 %v2857
        %v4113 = vpop.f32.mrf.mxu0
        %v4114 = vadd.f32 0.0, %v4113
        %v4115 = vpop.f32.mrf.mxu0
        %v4116 = vadd.f32 0.0, %v4115
        %4117 = vdwg.mxu0
        %4118 = vmatpush.bf16.xpose.msra.mxu0 %v3150
        %4119 = vmatpush.bf16.xpose.msra.mxu0 %v3149
        %4120 = vmatpush.bf16.xpose.msra.mxu0 %v3148
        %4121 = vmatpush.bf16.xpose.msra.mxu0 %v3147
        %4122 = vmatpush.bf16.xpose.msra.mxu0 %v3146
        %4123 = vmatpush.bf16.xpose.msra.mxu0 %v3145
        %4124 = vmatpush.bf16.xpose.msra.mxu0 %v3144
        %4125 = vmatpush.bf16.xpose.msra.mxu0 %v3143
        %4126 = vmatmul.bf16.gmra.mxu0 %v2850
        %v4127 = vpop.f32.mrf.mxu0
        %v4128 = vadd.f32 0.0, %v4127
        %v4129 = vpop.f32.mrf.mxu0
        %v4130 = vadd.f32 0.0, %v4129
        %4131 = vmatmul.bf16.gmra.mxu0 %v2851
        %v4132 = vpop.f32.mrf.mxu0
        %v4133 = vadd.f32 0.0, %v4132
        %v4134 = vpop.f32.mrf.mxu0
        %v4135 = vadd.f32 0.0, %v4134
        %4136 = vmatmul.bf16.gmra.mxu0 %v2852
        %v4137 = vpop.f32.mrf.mxu0
        %v4138 = vadd.f32 0.0, %v4137
        %v4139 = vpop.f32.mrf.mxu0
        %v4140 = vadd.f32 0.0, %v4139
        %4141 = vmatmul.bf16.gmra.mxu0 %v2853
        %v4142 = vpop.f32.mrf.mxu0
        %v4143 = vadd.f32 0.0, %v4142
        %v4144 = vpop.f32.mrf.mxu0
        %v4145 = vadd.f32 0.0, %v4144
        %4146 = vmatmul.bf16.gmra.mxu0 %v2854
        %v4147 = vpop.f32.mrf.mxu0
        %v4148 = vadd.f32 0.0, %v4147
        %v4149 = vpop.f32.mrf.mxu0
        %v4150 = vadd.f32 0.0, %v4149
        %4151 = vmatmul.bf16.gmra.mxu0 %v2855
        %v4152 = vpop.f32.mrf.mxu0
        %v4153 = vadd.f32 0.0, %v4152
        %v4154 = vpop.f32.mrf.mxu0
        %v4155 = vadd.f32 0.0, %v4154
        %4156 = vmatmul.bf16.gmra.mxu0 %v2856
        %v4157 = vpop.f32.mrf.mxu0
        %v4158 = vadd.f32 0.0, %v4157
        %v4159 = vpop.f32.mrf.mxu0
        %v4160 = vadd.f32 0.0, %v4159
        %4161 = vmatmul.bf16.gmra.mxu0 %v2857
        %v4162 = vpop.f32.mrf.mxu0
        %v4163 = vadd.f32 0.0, %v4162
        %v4164 = vpop.f32.mrf.mxu0
        %v4165 = vadd.f32 0.0, %v4164
        %4166 = vdwg.mxu0
        %v4167 = vsel %vm3039, -1e+09, %v4079
        %v4168 = vsel %vm3040, -1e+09, %v4128
        %v4169 = vsel %vm3041, -1e+09, %v4081
        %v4170 = vsel %vm3042, -1e+09, %v4130
        %v4171 = vsel %vm3043, -1e+09, %v4084
        %v4172 = vsel %vm3044, -1e+09, %v4133
        %v4173 = vsel %vm3045, -1e+09, %v4086
        %v4174 = vsel %vm3046, -1e+09, %v4135
        %v4175 = vsel %vm3047, -1e+09, %v4089
        %v4176 = vsel %vm3048, -1e+09, %v4138
        %v4177 = vsel %vm3049, -1e+09, %v4091
        %v4178 = vsel %vm3050, -1e+09, %v4140
        %v4179 = vsel %vm3051, -1e+09, %v4094
        %v4180 = vsel %vm3052, -1e+09, %v4143
        %v4181 = vsel %vm3053, -1e+09, %v4096
        %v4182 = vsel %vm3054, -1e+09, %v4145
        %v4183 = vsel %vm3055, -1e+09, %v4099
        %v4184 = vsel %vm3056, -1e+09, %v4148
        %v4185 = vsel %vm3057, -1e+09, %v4101
        %v4186 = vsel %vm3058, -1e+09, %v4150
        %v4187 = vsel %vm3059, -1e+09, %v4104
        %v4188 = vsel %vm3060, -1e+09, %v4153
        %v4189 = vsel %vm3061, -1e+09, %v4106
        %v4190 = vsel %vm3062, -1e+09, %v4155
        %v4191 = vsel %vm3063, -1e+09, %v4109
        %v4192 = vsel %vm3064, -1e+09, %v4158
        %v4193 = vsel %vm3065, -1e+09, %v4111
        %v4194 = vsel %vm3066, -1e+09, %v4160
        %v4195 = vsel %vm3067, -1e+09, %v4114
        %v4196 = vsel %vm3068, -1e+09, %v4163
        %v4197 = vsel %vm3069, -1e+09, %v4116
        %v4198 = vsel %vm3070, -1e+09, %v4165
        %v4199 = vmax.f32 %v3981, %v4030
        %4200 = vmax.xlane.f32.xlu0 %v4199
        %v4201 = vpop.xlane.xlu0 %4200
        %v4202 = vmax.f32 %v3983, %v4032
        %4203 = vmax.xlane.f32.xlu0 %v4202
        %v4204 = vpop.xlane.xlu0 %4203
        %v4205 = vmax.f32 %v3986, %v4035
        %4206 = vmax.xlane.f32.xlu0 %v4205
        %v4207 = vpop.xlane.xlu0 %4206
        %v4208 = vmax.f32 %v3988, %v4037
        %4209 = vmax.xlane.f32.xlu0 %v4208
        %v4210 = vpop.xlane.xlu0 %4209
        %v4211 = vmax.f32 %v3991, %v4040
        %4212 = vmax.xlane.f32.xlu0 %v4211
        %v4213 = vpop.xlane.xlu0 %4212
        %v4214 = vmax.f32 %v3993, %v4042
        %4215 = vmax.xlane.f32.xlu0 %v4214
        %v4216 = vpop.xlane.xlu0 %4215
        %v4217 = vmax.f32 %v3996, %v4045
        %4218 = vmax.xlane.f32.xlu0 %v4217
        %v4219 = vpop.xlane.xlu0 %4218
        %v4220 = vmax.f32 %v3998, %v4047
        %4221 = vmax.xlane.f32.xlu0 %v4220
        %v4222 = vpop.xlane.xlu0 %4221
        %v4223 = vmax.f32 %v4001, %v4050
        %4224 = vmax.xlane.f32.xlu0 %v4223
        %v4225 = vpop.xlane.xlu0 %4224
        %v4226 = vmax.f32 %v4003, %v4052
        %4227 = vmax.xlane.f32.xlu0 %v4226
        %v4228 = vpop.xlane.xlu0 %4227
        %v4229 = vmax.f32 %v4006, %v4055
        %4230 = vmax.xlane.f32.xlu0 %v4229
        %v4231 = vpop.xlane.xlu0 %4230
        %v4232 = vmax.f32 %v4008, %v4057
        %4233 = vmax.xlane.f32.xlu0 %v4232
        %v4234 = vpop.xlane.xlu0 %4233
        %v4235 = vmax.f32 %v4011, %v4060
        %4236 = vmax.xlane.f32.xlu0 %v4235
        %v4237 = vpop.xlane.xlu0 %4236
        %v4238 = vmax.f32 %v4013, %v4062
        %4239 = vmax.xlane.f32.xlu0 %v4238
        %v4240 = vpop.xlane.xlu0 %4239
        %v4241 = vmax.f32 %v4016, %v4065
        %4242 = vmax.xlane.f32.xlu0 %v4241
        %v4243 = vpop.xlane.xlu0 %4242
        %v4244 = vmax.f32 %v4018, %v4067
        %4245 = vmax.xlane.f32.xlu0 %v4244
        %v4246 = vpop.xlane.xlu0 %4245
        %v4247 = vmax.f32 %v4167, %v4168
        %4248 = vmax.xlane.f32.xlu0 %v4247
        %v4249 = vpop.xlane.xlu0 %4248
        %v4250 = vmax.f32 %v4169, %v4170
        %4251 = vmax.xlane.f32.xlu0 %v4250
        %v4252 = vpop.xlane.xlu0 %4251
        %v4253 = vmax.f32 %v4171, %v4172
        %4254 = vmax.xlane.f32.xlu0 %v4253
        %v4255 = vpop.xlane.xlu0 %4254
        %v4256 = vmax.f32 %v4173, %v4174
        %4257 = vmax.xlane.f32.xlu0 %v4256
        %v4258 = vpop.xlane.xlu0 %4257
        %v4259 = vmax.f32 %v4175, %v4176
        %4260 = vmax.xlane.f32.xlu0 %v4259
        %v4261 = vpop.xlane.xlu0 %4260
        %v4262 = vmax.f32 %v4177, %v4178
        %4263 = vmax.xlane.f32.xlu0 %v4262
        %v4264 = vpop.xlane.xlu0 %4263
        %v4265 = vmax.f32 %v4179, %v4180
        %4266 = vmax.xlane.f32.xlu0 %v4265
        %v4267 = vpop.xlane.xlu0 %4266
        %v4268 = vmax.f32 %v4181, %v4182
        %4269 = vmax.xlane.f32.xlu0 %v4268
        %v4270 = vpop.xlane.xlu0 %4269
        %v4271 = vmax.f32 %v4183, %v4184
        %4272 = vmax.xlane.f32.xlu0 %v4271
        %v4273 = vpop.xlane.xlu0 %4272
        %v4274 = vmax.f32 %v4185, %v4186
        %4275 = vmax.xlane.f32.xlu0 %v4274
        %v4276 = vpop.xlane.xlu0 %4275
        %v4277 = vmax.f32 %v4187, %v4188
        %4278 = vmax.xlane.f32.xlu0 %v4277
        %v4279 = vpop.xlane.xlu0 %4278
        %v4280 = vmax.f32 %v4189, %v4190
        %4281 = vmax.xlane.f32.xlu0 %v4280
        %v4282 = vpop.xlane.xlu0 %4281
        %v4283 = vmax.f32 %v4191, %v4192
        %4284 = vmax.xlane.f32.xlu0 %v4283
        %v4285 = vpop.xlane.xlu0 %4284
        %v4286 = vmax.f32 %v4193, %v4194
        %4287 = vmax.xlane.f32.xlu0 %v4286
        %v4288 = vpop.xlane.xlu0 %4287
        %v4289 = vmax.f32 %v4195, %v4196
        %4290 = vmax.xlane.f32.xlu0 %v4289
        %v4291 = vpop.xlane.xlu0 %4290
        %v4292 = vmax.f32 %v4197, %v4198
        %4293 = vmax.xlane.f32.xlu0 %v4292
        %v4294 = vpop.xlane.xlu0 %4293
        %v4295 = vmax.f32 %v4201, %v4249
        %v4296 = vmax.f32 %v4204, %v4252
        %v4297 = vmax.f32 %v4207, %v4255
        %v4298 = vmax.f32 %v4210, %v4258
        %v4299 = vmax.f32 %v4213, %v4261
        %v4300 = vmax.f32 %v4216, %v4264
        %v4301 = vmax.f32 %v4219, %v4267
        %v4302 = vmax.f32 %v4222, %v4270
        %v4303 = vmax.f32 %v4225, %v4273
        %v4304 = vmax.f32 %v4228, %v4276
        %v4305 = vmax.f32 %v4231, %v4279
        %v4306 = vmax.f32 %v4234, %v4282
        %v4307 = vmax.f32 %v4237, %v4285
        %v4308 = vmax.f32 %v4240, %v4288
        %v4309 = vmax.f32 %v4243, %v4291
        %v4310 = vmax.f32 %v4246, %v4294
        %v4311 = vsub.f32 %v3981, %v4295
        %v4312 = vsub.f32 %v4030, %v4295
        %v4313 = vsub.f32 %v3983, %v4296
        %v4314 = vsub.f32 %v4032, %v4296
        %v4315 = vsub.f32 %v3986, %v4297
        %v4316 = vsub.f32 %v4035, %v4297
        %v4317 = vsub.f32 %v3988, %v4298
        %v4318 = vsub.f32 %v4037, %v4298
        %v4319 = vsub.f32 %v3991, %v4299
        %v4320 = vsub.f32 %v4040, %v4299
        %v4321 = vsub.f32 %v3993, %v4300
        %v4322 = vsub.f32 %v4042, %v4300
        %v4323 = vsub.f32 %v3996, %v4301
        %v4324 = vsub.f32 %v4045, %v4301
        %v4325 = vsub.f32 %v3998, %v4302
        %v4326 = vsub.f32 %v4047, %v4302
        %v4327 = vsub.f32 %v4001, %v4303
        %v4328 = vsub.f32 %v4050, %v4303
        %v4329 = vsub.f32 %v4003, %v4304
        %v4330 = vsub.f32 %v4052, %v4304
        %v4331 = vsub.f32 %v4006, %v4305
        %v4332 = vsub.f32 %v4055, %v4305
        %v4333 = vsub.f32 %v4008, %v4306
        %v4334 = vsub.f32 %v4057, %v4306
        %v4335 = vsub.f32 %v4011, %v4307
        %v4336 = vsub.f32 %v4060, %v4307
        %v4337 = vsub.f32 %v4013, %v4308
        %v4338 = vsub.f32 %v4062, %v4308
        %v4339 = vsub.f32 %v4016, %v4309
        %v4340 = vsub.f32 %v4065, %v4309
        %v4341 = vsub.f32 %v4018, %v4310
        %v4342 = vsub.f32 %v4067, %v4310
        %v4343 = vmul.f32 %v4311, 1.442695
        %v4344 = vpow.pop %v4343
        %v4345 = vmul.f32 %v4312, 1.442695
        %v4346 = vpow.pop %v4345
        %v4347 = vmul.f32 %v4313, 1.442695
        %v4348 = vpow.pop %v4347
        %v4349 = vmul.f32 %v4314, 1.442695
        %v4350 = vpow.pop %v4349
        %v4351 = vmul.f32 %v4315, 1.442695
        %v4352 = vpow.pop %v4351
        %v4353 = vmul.f32 %v4316, 1.442695
        %v4354 = vpow.pop %v4353
        %v4355 = vmul.f32 %v4317, 1.442695
        %v4356 = vpow.pop %v4355
        %v4357 = vmul.f32 %v4318, 1.442695
        %v4358 = vpow.pop %v4357
        %v4359 = vmul.f32 %v4319, 1.442695
        %v4360 = vpow.pop %v4359
        %v4361 = vmul.f32 %v4320, 1.442695
        %v4362 = vpow.pop %v4361
        %v4363 = vmul.f32 %v4321, 1.442695
        %v4364 = vpow.pop %v4363
        %v4365 = vmul.f32 %v4322, 1.442695
        %v4366 = vpow.pop %v4365
        %v4367 = vmul.f32 %v4323, 1.442695
        %v4368 = vpow.pop %v4367
        %v4369 = vmul.f32 %v4324, 1.442695
        %v4370 = vpow.pop %v4369
        %v4371 = vmul.f32 %v4325, 1.442695
        %v4372 = vpow.pop %v4371
        %v4373 = vmul.f32 %v4326, 1.442695
        %v4374 = vpow.pop %v4373
        %v4375 = vmul.f32 %v4327, 1.442695
        %v4376 = vpow.pop %v4375
        %v4377 = vmul.f32 %v4328, 1.442695
        %v4378 = vpow.pop %v4377
        %v4379 = vmul.f32 %v4329, 1.442695
        %v4380 = vpow.pop %v4379
        %v4381 = vmul.f32 %v4330, 1.442695
        %v4382 = vpow.pop %v4381
        %v4383 = vmul.f32 %v4331, 1.442695
        %v4384 = vpow.pop %v4383
        %v4385 = vmul.f32 %v4332, 1.442695
        %v4386 = vpow.pop %v4385
        %v4387 = vmul.f32 %v4333, 1.442695
        %v4388 = vpow.pop %v4387
        %v4389 = vmul.f32 %v4334, 1.442695
        %v4390 = vpow.pop %v4389
        %v4391 = vmul.f32 %v4335, 1.442695
        %v4392 = vpow.pop %v4391
        %v4393 = vmul.f32 %v4336, 1.442695
        %v4394 = vpow.pop %v4393
        %v4395 = vmul.f32 %v4337, 1.442695
        %v4396 = vpow.pop %v4395
        %v4397 = vmul.f32 %v4338, 1.442695
        %v4398 = vpow.pop %v4397
        %v4399 = vmul.f32 %v4339, 1.442695
        %v4400 = vpow.pop %v4399
        %v4401 = vmul.f32 %v4340, 1.442695
        %v4402 = vpow.pop %v4401
        %v4403 = vmul.f32 %v4341, 1.442695
        %v4404 = vpow.pop %v4403
        %v4405 = vmul.f32 %v4342, 1.442695
        %v4406 = vpow.pop %v4405
        %v4407 = vadd.f32 %v4344, %v4346
        %4408 = vadd.xlane.f32.xlu0 %v4407
        %v4409 = vpop.xlane.xlu0 %4408
        %v4410 = vadd.f32 %v4348, %v4350
        %4411 = vadd.xlane.f32.xlu0 %v4410
        %v4412 = vpop.xlane.xlu0 %4411
        %v4413 = vadd.f32 %v4352, %v4354
        %4414 = vadd.xlane.f32.xlu0 %v4413
        %v4415 = vpop.xlane.xlu0 %4414
        %v4416 = vadd.f32 %v4356, %v4358
        %4417 = vadd.xlane.f32.xlu0 %v4416
        %v4418 = vpop.xlane.xlu0 %4417
        %v4419 = vadd.f32 %v4360, %v4362
        %4420 = vadd.xlane.f32.xlu0 %v4419
        %v4421 = vpop.xlane.xlu0 %4420
        %v4422 = vadd.f32 %v4364, %v4366
        %4423 = vadd.xlane.f32.xlu0 %v4422
        %v4424 = vpop.xlane.xlu0 %4423
        %v4425 = vadd.f32 %v4368, %v4370
        %4426 = vadd.xlane.f32.xlu0 %v4425
        %v4427 = vpop.xlane.xlu0 %4426
        %v4428 = vadd.f32 %v4372, %v4374
        %4429 = vadd.xlane.f32.xlu0 %v4428
        %v4430 = vpop.xlane.xlu0 %4429
        %v4431 = vadd.f32 %v4376, %v4378
        %4432 = vadd.xlane.f32.xlu0 %v4431
        %v4433 = vpop.xlane.xlu0 %4432
        %v4434 = vadd.f32 %v4380, %v4382
        %4435 = vadd.xlane.f32.xlu0 %v4434
        %v4436 = vpop.xlane.xlu0 %4435
        %v4437 = vadd.f32 %v4384, %v4386
        %4438 = vadd.xlane.f32.xlu0 %v4437
        %v4439 = vpop.xlane.xlu0 %4438
        %v4440 = vadd.f32 %v4388, %v4390
        %4441 = vadd.xlane.f32.xlu0 %v4440
        %v4442 = vpop.xlane.xlu0 %4441
        %v4443 = vadd.f32 %v4392, %v4394
        %4444 = vadd.xlane.f32.xlu0 %v4443
        %v4445 = vpop.xlane.xlu0 %4444
        %v4446 = vadd.f32 %v4396, %v4398
        %4447 = vadd.xlane.f32.xlu0 %v4446
        %v4448 = vpop.xlane.xlu0 %4447
        %v4449 = vadd.f32 %v4400, %v4402
        %4450 = vadd.xlane.f32.xlu0 %v4449
        %v4451 = vpop.xlane.xlu0 %4450
        %v4452 = vadd.f32 %v4404, %v4406
        %4453 = vadd.xlane.f32.xlu0 %v4452
        %v4454 = vpop.xlane.xlu0 %4453
        %v4455 = vsub.f32 %v4167, %v4295
        %v4456 = vsub.f32 %v4168, %v4295
        %v4457 = vsub.f32 %v4169, %v4296
        %v4458 = vsub.f32 %v4170, %v4296
        %v4459 = vsub.f32 %v4171, %v4297
        %v4460 = vsub.f32 %v4172, %v4297
        %v4461 = vsub.f32 %v4173, %v4298
        %v4462 = vsub.f32 %v4174, %v4298
        %v4463 = vsub.f32 %v4175, %v4299
        %v4464 = vsub.f32 %v4176, %v4299
        %v4465 = vsub.f32 %v4177, %v4300
        %v4466 = vsub.f32 %v4178, %v4300
        %v4467 = vsub.f32 %v4179, %v4301
        %v4468 = vsub.f32 %v4180, %v4301
        %v4469 = vsub.f32 %v4181, %v4302
        %v4470 = vsub.f32 %v4182, %v4302
        %v4471 = vsub.f32 %v4183, %v4303
        %v4472 = vsub.f32 %v4184, %v4303
        %v4473 = vsub.f32 %v4185, %v4304
        %v4474 = vsub.f32 %v4186, %v4304
        %v4475 = vsub.f32 %v4187, %v4305
        %v4476 = vsub.f32 %v4188, %v4305
        %v4477 = vsub.f32 %v4189, %v4306
        %v4478 = vsub.f32 %v4190, %v4306
        %v4479 = vsub.f32 %v4191, %v4307
        %v4480 = vsub.f32 %v4192, %v4307
        %v4481 = vsub.f32 %v4193, %v4308
        %v4482 = vsub.f32 %v4194, %v4308
        %v4483 = vsub.f32 %v4195, %v4309
        %v4484 = vsub.f32 %v4196, %v4309
        %v4485 = vsub.f32 %v4197, %v4310
        %v4486 = vsub.f32 %v4198, %v4310
        %v4487 = vmul.f32 %v4455, 1.442695
        %v4488 = vpow.pop %v4487
        %v4489 = vmul.f32 %v4456, 1.442695
        %v4490 = vpow.pop %v4489
        %v4491 = vmul.f32 %v4457, 1.442695
        %v4492 = vpow.pop %v4491
        %v4493 = vmul.f32 %v4458, 1.442695
        %v4494 = vpow.pop %v4493
        %v4495 = vmul.f32 %v4459, 1.442695
        %v4496 = vpow.pop %v4495
        %v4497 = vmul.f32 %v4460, 1.442695
        %v4498 = vpow.pop %v4497
        %v4499 = vmul.f32 %v4461, 1.442695
        %v4500 = vpow.pop %v4499
        %v4501 = vmul.f32 %v4462, 1.442695
        %v4502 = vpow.pop %v4501
        %v4503 = vmul.f32 %v4463, 1.442695
        %v4504 = vpow.pop %v4503
        %v4505 = vmul.f32 %v4464, 1.442695
        %v4506 = vpow.pop %v4505
        %v4507 = vmul.f32 %v4465, 1.442695
        %v4508 = vpow.pop %v4507
        %v4509 = vmul.f32 %v4466, 1.442695
        %v4510 = vpow.pop %v4509
        %v4511 = vmul.f32 %v4467, 1.442695
        %v4512 = vpow.pop %v4511
        %v4513 = vmul.f32 %v4468, 1.442695
        %v4514 = vpow.pop %v4513
        %v4515 = vmul.f32 %v4469, 1.442695
        %v4516 = vpow.pop %v4515
        %v4517 = vmul.f32 %v4470, 1.442695
        %v4518 = vpow.pop %v4517
        %v4519 = vmul.f32 %v4471, 1.442695
        %v4520 = vpow.pop %v4519
        %v4521 = vmul.f32 %v4472, 1.442695
        %v4522 = vpow.pop %v4521
        %v4523 = vmul.f32 %v4473, 1.442695
        %v4524 = vpow.pop %v4523
        %v4525 = vmul.f32 %v4474, 1.442695
        %v4526 = vpow.pop %v4525
        %v4527 = vmul.f32 %v4475, 1.442695
        %v4528 = vpow.pop %v4527
        %v4529 = vmul.f32 %v4476, 1.442695
        %v4530 = vpow.pop %v4529
        %v4531 = vmul.f32 %v4477, 1.442695
        %v4532 = vpow.pop %v4531
        %v4533 = vmul.f32 %v4478, 1.442695
        %v4534 = vpow.pop %v4533
        %v4535 = vmul.f32 %v4479, 1.442695
        %v4536 = vpow.pop %v4535
        %v4537 = vmul.f32 %v4480, 1.442695
        %v4538 = vpow.pop %v4537
        %v4539 = vmul.f32 %v4481, 1.442695
        %v4540 = vpow.pop %v4539
        %v4541 = vmul.f32 %v4482, 1.442695
        %v4542 = vpow.pop %v4541
        %v4543 = vmul.f32 %v4483, 1.442695
        %v4544 = vpow.pop %v4543
        %v4545 = vmul.f32 %v4484, 1.442695
        %v4546 = vpow.pop %v4545
        %v4547 = vmul.f32 %v4485, 1.442695
        %v4548 = vpow.pop %v4547
        %v4549 = vmul.f32 %v4486, 1.442695
        %v4550 = vpow.pop %v4549
        %v4551 = vadd.f32 %v4488, %v4490
        %4552 = vadd.xlane.f32.xlu0 %v4551
        %v4553 = vpop.xlane.xlu0 %4552
        %v4554 = vadd.f32 %v4492, %v4494
        %4555 = vadd.xlane.f32.xlu0 %v4554
        %v4556 = vpop.xlane.xlu0 %4555
        %v4557 = vadd.f32 %v4496, %v4498
        %4558 = vadd.xlane.f32.xlu0 %v4557
        %v4559 = vpop.xlane.xlu0 %4558
        %v4560 = vadd.f32 %v4500, %v4502
        %4561 = vadd.xlane.f32.xlu0 %v4560
        %v4562 = vpop.xlane.xlu0 %4561
        %v4563 = vadd.f32 %v4504, %v4506
        %4564 = vadd.xlane.f32.xlu0 %v4563
        %v4565 = vpop.xlane.xlu0 %4564
        %v4566 = vadd.f32 %v4508, %v4510
        %4567 = vadd.xlane.f32.xlu0 %v4566
        %v4568 = vpop.xlane.xlu0 %4567
        %v4569 = vadd.f32 %v4512, %v4514
        %4570 = vadd.xlane.f32.xlu0 %v4569
        %v4571 = vpop.xlane.xlu0 %4570
        %v4572 = vadd.f32 %v4516, %v4518
        %4573 = vadd.xlane.f32.xlu0 %v4572
        %v4574 = vpop.xlane.xlu0 %4573
        %v4575 = vadd.f32 %v4520, %v4522
        %4576 = vadd.xlane.f32.xlu0 %v4575
        %v4577 = vpop.xlane.xlu0 %4576
        %v4578 = vadd.f32 %v4524, %v4526
        %4579 = vadd.xlane.f32.xlu0 %v4578
        %v4580 = vpop.xlane.xlu0 %4579
        %v4581 = vadd.f32 %v4528, %v4530
        %4582 = vadd.xlane.f32.xlu0 %v4581
        %v4583 = vpop.xlane.xlu0 %4582
        %v4584 = vadd.f32 %v4532, %v4534
        %4585 = vadd.xlane.f32.xlu0 %v4584
        %v4586 = vpop.xlane.xlu0 %4585
        %v4587 = vadd.f32 %v4536, %v4538
        %4588 = vadd.xlane.f32.xlu0 %v4587
        %v4589 = vpop.xlane.xlu0 %4588
        %v4590 = vadd.f32 %v4540, %v4542
        %4591 = vadd.xlane.f32.xlu0 %v4590
        %v4592 = vpop.xlane.xlu0 %4591
        %v4593 = vadd.f32 %v4544, %v4546
        %4594 = vadd.xlane.f32.xlu0 %v4593
        %v4595 = vpop.xlane.xlu0 %4594
        %v4596 = vadd.f32 %v4548, %v4550
        %4597 = vadd.xlane.f32.xlu0 %v4596
        %v4598 = vpop.xlane.xlu0 %4597
        %v4599 = vadd.f32 %v4409, %v4553
        %v4600 = vadd.f32 %v4412, %v4556
        %v4601 = vadd.f32 %v4415, %v4559
        %v4602 = vadd.f32 %v4418, %v4562
        %v4603 = vadd.f32 %v4421, %v4565
        %v4604 = vadd.f32 %v4424, %v4568
        %v4605 = vadd.f32 %v4427, %v4571
        %v4606 = vadd.f32 %v4430, %v4574
        %v4607 = vadd.f32 %v4433, %v4577
        %v4608 = vadd.f32 %v4436, %v4580
        %v4609 = vadd.f32 %v4439, %v4583
        %v4610 = vadd.f32 %v4442, %v4586
        %v4611 = vadd.f32 %v4445, %v4589
        %v4612 = vadd.f32 %v4448, %v4592
        %v4613 = vadd.f32 %v4451, %v4595
        %v4614 = vadd.f32 %v4454, %v4598
        %v4615 = vlog2.pop %v4599
        %v4616 = vmul.f32 %v4615, 0.6931472
        %v4617 = vlog2.pop %v4600
        %v4618 = vmul.f32 %v4617, 0.6931472
        %v4619 = vlog2.pop %v4601
        %v4620 = vmul.f32 %v4619, 0.6931472
        %v4621 = vlog2.pop %v4602
        %v4622 = vmul.f32 %v4621, 0.6931472
        %v4623 = vlog2.pop %v4603
        %v4624 = vmul.f32 %v4623, 0.6931472
        %v4625 = vlog2.pop %v4604
        %v4626 = vmul.f32 %v4625, 0.6931472
        %v4627 = vlog2.pop %v4605
        %v4628 = vmul.f32 %v4627, 0.6931472
        %v4629 = vlog2.pop %v4606
        %v4630 = vmul.f32 %v4629, 0.6931472
        %v4631 = vlog2.pop %v4607
        %v4632 = vmul.f32 %v4631, 0.6931472
        %v4633 = vlog2.pop %v4608
        %v4634 = vmul.f32 %v4633, 0.6931472
        %v4635 = vlog2.pop %v4609
        %v4636 = vmul.f32 %v4635, 0.6931472
        %v4637 = vlog2.pop %v4610
        %v4638 = vmul.f32 %v4637, 0.6931472
        %v4639 = vlog2.pop %v4611
        %v4640 = vmul.f32 %v4639, 0.6931472
        %v4641 = vlog2.pop %v4612
        %v4642 = vmul.f32 %v4641, 0.6931472
        %v4643 = vlog2.pop %v4613
        %v4644 = vmul.f32 %v4643, 0.6931472
        %v4645 = vlog2.pop %v4614
        %v4646 = vmul.f32 %v4645, 0.6931472
        %v4647 = vadd.f32 %v4295, %v4616
        %v4648 = vadd.f32 %v4296, %v4618
        %v4649 = vadd.f32 %v4297, %v4620
        %v4650 = vadd.f32 %v4298, %v4622
        %v4651 = vadd.f32 %v4299, %v4624
        %v4652 = vadd.f32 %v4300, %v4626
        %v4653 = vadd.f32 %v4301, %v4628
        %v4654 = vadd.f32 %v4302, %v4630
        %v4655 = vadd.f32 %v4303, %v4632
        %v4656 = vadd.f32 %v4304, %v4634
        %v4657 = vadd.f32 %v4305, %v4636
        %v4658 = vadd.f32 %v4306, %v4638
        %v4659 = vadd.f32 %v4307, %v4640
        %v4660 = vadd.f32 %v4308, %v4642
        %v4661 = vadd.f32 %v4309, %v4644
        %v4662 = vadd.f32 %v4310, %v4646
        %v4663 = vsub.f32 %v4647, %v2763
        %v4664 = vsub.f32 %v4648, %v2765
        %v4665 = vsub.f32 %v4649, %v2767
        %v4666 = vsub.f32 %v4650, %v2769
        %v4667 = vsub.f32 %v4651, %v2771
        %v4668 = vsub.f32 %v4652, %v2773
        %v4669 = vsub.f32 %v4653, %v2775
        %v4670 = vsub.f32 %v4654, %v2777
        %v4671 = vsub.f32 %v4655, %v2779
        %v4672 = vsub.f32 %v4656, %v2781
        %v4673 = vsub.f32 %v4657, %v2783
        %v4674 = vsub.f32 %v4658, %v2785
        %v4675 = vsub.f32 %v4659, %v2787
        %v4676 = vsub.f32 %v4660, %v2789
        %v4677 = vsub.f32 %v4661, %v2791
        %v4678 = vsub.f32 %v4662, %v2793
        %v4711 = vunpack.c.l.b16 %v2970
        %v4712 = vunpack.c.l.b16 %v2971
        %v4713 = vunpack.c.l.b16 %v2972
        %v4714 = vunpack.c.l.b16 %v2973
        %v4715 = vunpack.c.l.b16 %v2974
        %v4716 = vunpack.c.l.b16 %v2975
        %v4717 = vunpack.c.l.b16 %v2976
        %v4718 = vunpack.c.l.b16 %v2977
        %v4719 = vunpack.c.l.b16 %v2978
        %v4720 = vunpack.c.l.b16 %v2979
        %v4721 = vunpack.c.l.b16 %v2980
        %v4722 = vunpack.c.l.b16 %v2981
        %v4723 = vunpack.c.l.b16 %v2982
        %v4724 = vunpack.c.l.b16 %v2983
        %v4725 = vunpack.c.l.b16 %v2984
        %v4726 = vunpack.c.l.b16 %v2985
        %v4727 = vunpack.c.l.b16 %v2986
        %v4728 = vunpack.c.l.b16 %v2987
        %v4729 = vunpack.c.l.b16 %v2988
        %v4730 = vunpack.c.l.b16 %v2989
        %v4731 = vunpack.c.l.b16 %v2990
        %v4732 = vunpack.c.l.b16 %v2991
        %v4733 = vunpack.c.l.b16 %v2992
        %v4734 = vunpack.c.l.b16 %v2993
        %v4735 = vunpack.c.l.b16 %v2994
        %v4736 = vunpack.c.l.b16 %v2995
        %v4737 = vunpack.c.l.b16 %v2996
        %v4738 = vunpack.c.l.b16 %v2997
        %v4739 = vunpack.c.l.b16 %v2998
        %v4740 = vunpack.c.l.b16 %v2999
        %v4741 = vunpack.c.l.b16 %v3000
        %v4742 = vunpack.c.l.b16 %v3001
        %v4743 = vpack.c.b16 %v4712, %v4711
        %v4744 = vpack.c.b16 %v4714, %v4713
        %v4745 = vpack.c.b16 %v4716, %v4715
        %v4746 = vpack.c.b16 %v4718, %v4717
        %v4747 = vpack.c.b16 %v4720, %v4719
        %v4748 = vpack.c.b16 %v4722, %v4721
        %v4749 = vpack.c.b16 %v4724, %v4723
        %v4750 = vpack.c.b16 %v4726, %v4725
        %v4751 = vpack.c.b16 %v4728, %v4727
        %v4752 = vpack.c.b16 %v4730, %v4729
        %v4753 = vpack.c.b16 %v4732, %v4731
        %v4754 = vpack.c.b16 %v4734, %v4733
        %v4755 = vpack.c.b16 %v4736, %v4735
        %v4756 = vpack.c.b16 %v4738, %v4737
        %v4757 = vpack.c.b16 %v4740, %v4739
        %v4758 = vpack.c.b16 %v4742, %v4741
        %4775 = vmatpush.bf16.xpose.msra.mxu0 %v4750
        %4776 = vmatpush.bf16.xpose.msra.mxu0 %v4749
        %4777 = vmatpush.bf16.xpose.msra.mxu0 %v4748
        %4778 = vmatpush.bf16.xpose.msra.mxu0 %v4747
        %4779 = vmatpush.bf16.xpose.msra.mxu0 %v4746
        %4780 = vmatpush.bf16.xpose.msra.mxu0 %v4745
        %4781 = vmatpush.bf16.xpose.msra.mxu0 %v4744
        %4782 = vmatpush.bf16.xpose.msra.mxu0 %v4743
        %4783 = vmatmul.bf16.gmra.mxu0 %v2858
        %v4784 = vpop.f32.mrf.mxu0
        %v4785 = vadd.f32 0.0, %v4784
        %v4786 = vpop.f32.mrf.mxu0
        %v4787 = vadd.f32 0.0, %v4786
        %4788 = vmatmul.bf16.gmra.mxu0 %v2859
        %v4789 = vpop.f32.mrf.mxu0
        %v4790 = vadd.f32 0.0, %v4789
        %v4791 = vpop.f32.mrf.mxu0
        %v4792 = vadd.f32 0.0, %v4791
        %4793 = vmatmul.bf16.gmra.mxu0 %v2860
        %v4794 = vpop.f32.mrf.mxu0
        %v4795 = vadd.f32 0.0, %v4794
        %v4796 = vpop.f32.mrf.mxu0
        %v4797 = vadd.f32 0.0, %v4796
        %4798 = vmatmul.bf16.gmra.mxu0 %v2861
        %v4799 = vpop.f32.mrf.mxu0
        %v4800 = vadd.f32 0.0, %v4799
        %v4801 = vpop.f32.mrf.mxu0
        %v4802 = vadd.f32 0.0, %v4801
        %4803 = vmatmul.bf16.gmra.mxu0 %v2862
        %v4804 = vpop.f32.mrf.mxu0
        %v4805 = vadd.f32 0.0, %v4804
        %v4806 = vpop.f32.mrf.mxu0
        %v4807 = vadd.f32 0.0, %v4806
        %4808 = vmatmul.bf16.gmra.mxu0 %v2863
        %v4809 = vpop.f32.mrf.mxu0
        %v4810 = vadd.f32 0.0, %v4809
        %v4811 = vpop.f32.mrf.mxu0
        %v4812 = vadd.f32 0.0, %v4811
        %4813 = vmatmul.bf16.gmra.mxu0 %v2864
        %v4814 = vpop.f32.mrf.mxu0
        %v4815 = vadd.f32 0.0, %v4814
        %v4816 = vpop.f32.mrf.mxu0
        %v4817 = vadd.f32 0.0, %v4816
        %4818 = vmatmul.bf16.gmra.mxu0 %v2865
        %v4819 = vpop.f32.mrf.mxu0
        %v4820 = vadd.f32 0.0, %v4819
        %v4821 = vpop.f32.mrf.mxu0
        %v4822 = vadd.f32 0.0, %v4821
        %4823 = vdwg.mxu0
        %4824 = vmatpush.bf16.xpose.msra.mxu0 %v4758
        %4825 = vmatpush.bf16.xpose.msra.mxu0 %v4757
        %4826 = vmatpush.bf16.xpose.msra.mxu0 %v4756
        %4827 = vmatpush.bf16.xpose.msra.mxu0 %v4755
        %4828 = vmatpush.bf16.xpose.msra.mxu0 %v4754
        %4829 = vmatpush.bf16.xpose.msra.mxu0 %v4753
        %4830 = vmatpush.bf16.xpose.msra.mxu0 %v4752
        %4831 = vmatpush.bf16.xpose.msra.mxu0 %v4751
        %4832 = vmatmul.bf16.gmra.mxu0 %v2858
        %v4833 = vpop.f32.mrf.mxu0
        %v4834 = vadd.f32 0.0, %v4833
        %v4835 = vpop.f32.mrf.mxu0
        %v4836 = vadd.f32 0.0, %v4835
        %4837 = vmatmul.bf16.gmra.mxu0 %v2859
        %v4838 = vpop.f32.mrf.mxu0
        %v4839 = vadd.f32 0.0, %v4838
        %v4840 = vpop.f32.mrf.mxu0
        %v4841 = vadd.f32 0.0, %v4840
        %4842 = vmatmul.bf16.gmra.mxu0 %v2860
        %v4843 = vpop.f32.mrf.mxu0
        %v4844 = vadd.f32 0.0, %v4843
        %v4845 = vpop.f32.mrf.mxu0
        %v4846 = vadd.f32 0.0, %v4845
        %4847 = vmatmul.bf16.gmra.mxu0 %v2861
        %v4848 = vpop.f32.mrf.mxu0
        %v4849 = vadd.f32 0.0, %v4848
        %v4850 = vpop.f32.mrf.mxu0
        %v4851 = vadd.f32 0.0, %v4850
        %4852 = vmatmul.bf16.gmra.mxu0 %v2862
        %v4853 = vpop.f32.mrf.mxu0
        %v4854 = vadd.f32 0.0, %v4853
        %v4855 = vpop.f32.mrf.mxu0
        %v4856 = vadd.f32 0.0, %v4855
        %4857 = vmatmul.bf16.gmra.mxu0 %v2863
        %v4858 = vpop.f32.mrf.mxu0
        %v4859 = vadd.f32 0.0, %v4858
        %v4860 = vpop.f32.mrf.mxu0
        %v4861 = vadd.f32 0.0, %v4860
        %4862 = vmatmul.bf16.gmra.mxu0 %v2864
        %v4863 = vpop.f32.mrf.mxu0
        %v4864 = vadd.f32 0.0, %v4863
        %v4865 = vpop.f32.mrf.mxu0
        %v4866 = vadd.f32 0.0, %v4865
        %4867 = vmatmul.bf16.gmra.mxu0 %v2865
        %v4868 = vpop.f32.mrf.mxu0
        %v4869 = vadd.f32 0.0, %v4868
        %v4870 = vpop.f32.mrf.mxu0
        %v4871 = vadd.f32 0.0, %v4870
        %4872 = vdwg.mxu0
        %v4873 = vmax.f32 %v4785, %v4834
        %4874 = vmax.xlane.f32.xlu0 %v4873
        %v4875 = vpop.xlane.xlu0 %4874
        %v4876 = vmax.f32 %v4787, %v4836
        %4877 = vmax.xlane.f32.xlu0 %v4876
        %v4878 = vpop.xlane.xlu0 %4877
        %v4879 = vmax.f32 %v4790, %v4839
        %4880 = vmax.xlane.f32.xlu0 %v4879
        %v4881 = vpop.xlane.xlu0 %4880
        %v4882 = vmax.f32 %v4792, %v4841
        %4883 = vmax.xlane.f32.xlu0 %v4882
        %v4884 = vpop.xlane.xlu0 %4883
        %v4885 = vmax.f32 %v4795, %v4844
        %4886 = vmax.xlane.f32.xlu0 %v4885
        %v4887 = vpop.xlane.xlu0 %4886
        %v4888 = vmax.f32 %v4797, %v4846
        %4889 = vmax.xlane.f32.xlu0 %v4888
        %v4890 = vpop.xlane.xlu0 %4889
        %v4891 = vmax.f32 %v4800, %v4849
        %4892 = vmax.xlane.f32.xlu0 %v4891
        %v4893 = vpop.xlane.xlu0 %4892
        %v4894 = vmax.f32 %v4802, %v4851
        %4895 = vmax.xlane.f32.xlu0 %v4894
        %v4896 = vpop.xlane.xlu0 %4895
        %v4897 = vmax.f32 %v4805, %v4854
        %4898 = vmax.xlane.f32.xlu0 %v4897
        %v4899 = vpop.xlane.xlu0 %4898
        %v4900 = vmax.f32 %v4807, %v4856
        %4901 = vmax.xlane.f32.xlu0 %v4900
        %v4902 = vpop.xlane.xlu0 %4901
        %v4903 = vmax.f32 %v4810, %v4859
        %4904 = vmax.xlane.f32.xlu0 %v4903
        %v4905 = vpop.xlane.xlu0 %4904
        %v4906 = vmax.f32 %v4812, %v4861
        %4907 = vmax.xlane.f32.xlu0 %v4906
        %v4908 = vpop.xlane.xlu0 %4907
        %v4909 = vmax.f32 %v4815, %v4864
        %4910 = vmax.xlane.f32.xlu0 %v4909
        %v4911 = vpop.xlane.xlu0 %4910
        %v4912 = vmax.f32 %v4817, %v4866
        %4913 = vmax.xlane.f32.xlu0 %v4912
        %v4914 = vpop.xlane.xlu0 %4913
        %v4915 = vmax.f32 %v4820, %v4869
        %4916 = vmax.xlane.f32.xlu0 %v4915
        %v4917 = vpop.xlane.xlu0 %4916
        %v4918 = vmax.f32 %v4822, %v4871
        %4919 = vmax.xlane.f32.xlu0 %v4918
        %v4920 = vpop.xlane.xlu0 %4919
        %v4921 = vsub.f32 %v4785, %v4875
        %v4922 = vsub.f32 %v4834, %v4875
        %v4923 = vsub.f32 %v4787, %v4878
        %v4924 = vsub.f32 %v4836, %v4878
        %v4925 = vsub.f32 %v4790, %v4881
        %v4926 = vsub.f32 %v4839, %v4881
        %v4927 = vsub.f32 %v4792, %v4884
        %v4928 = vsub.f32 %v4841, %v4884
        %v4929 = vsub.f32 %v4795, %v4887
        %v4930 = vsub.f32 %v4844, %v4887
        %v4931 = vsub.f32 %v4797, %v4890
        %v4932 = vsub.f32 %v4846, %v4890
        %v4933 = vsub.f32 %v4800, %v4893
        %v4934 = vsub.f32 %v4849, %v4893
        %v4935 = vsub.f32 %v4802, %v4896
        %v4936 = vsub.f32 %v4851, %v4896
        %v4937 = vsub.f32 %v4805, %v4899
        %v4938 = vsub.f32 %v4854, %v4899
        %v4939 = vsub.f32 %v4807, %v4902
        %v4940 = vsub.f32 %v4856, %v4902
        %v4941 = vsub.f32 %v4810, %v4905
        %v4942 = vsub.f32 %v4859, %v4905
        %v4943 = vsub.f32 %v4812, %v4908
        %v4944 = vsub.f32 %v4861, %v4908
        %v4945 = vsub.f32 %v4815, %v4911
        %v4946 = vsub.f32 %v4864, %v4911
        %v4947 = vsub.f32 %v4817, %v4914
        %v4948 = vsub.f32 %v4866, %v4914
        %v4949 = vsub.f32 %v4820, %v4917
        %v4950 = vsub.f32 %v4869, %v4917
        %v4951 = vsub.f32 %v4822, %v4920
        %v4952 = vsub.f32 %v4871, %v4920
        %v4953 = vmul.f32 %v4921, 1.442695
        %v4954 = vpow.pop %v4953
        %v4955 = vmul.f32 %v4922, 1.442695
        %v4956 = vpow.pop %v4955
        %v4957 = vmul.f32 %v4923, 1.442695
        %v4958 = vpow.pop %v4957
        %v4959 = vmul.f32 %v4924, 1.442695
        %v4960 = vpow.pop %v4959
        %v4961 = vmul.f32 %v4925, 1.442695
        %v4962 = vpow.pop %v4961
        %v4963 = vmul.f32 %v4926, 1.442695
        %v4964 = vpow.pop %v4963
        %v4965 = vmul.f32 %v4927, 1.442695
        %v4966 = vpow.pop %v4965
        %v4967 = vmul.f32 %v4928, 1.442695
        %v4968 = vpow.pop %v4967
        %v4969 = vmul.f32 %v4929, 1.442695
        %v4970 = vpow.pop %v4969
        %v4971 = vmul.f32 %v4930, 1.442695
        %v4972 = vpow.pop %v4971
        %v4973 = vmul.f32 %v4931, 1.442695
        %v4974 = vpow.pop %v4973
        %v4975 = vmul.f32 %v4932, 1.442695
        %v4976 = vpow.pop %v4975
        %v4977 = vmul.f32 %v4933, 1.442695
        %v4978 = vpow.pop %v4977
        %v4979 = vmul.f32 %v4934, 1.442695
        %v4980 = vpow.pop %v4979
        %v4981 = vmul.f32 %v4935, 1.442695
        %v4982 = vpow.pop %v4981
        %v4983 = vmul.f32 %v4936, 1.442695
        %v4984 = vpow.pop %v4983
        %v4985 = vmul.f32 %v4937, 1.442695
        %v4986 = vpow.pop %v4985
        %v4987 = vmul.f32 %v4938, 1.442695
        %v4988 = vpow.pop %v4987
        %v4989 = vmul.f32 %v4939, 1.442695
        %v4990 = vpow.pop %v4989
        %v4991 = vmul.f32 %v4940, 1.442695
        %v4992 = vpow.pop %v4991
        %v4993 = vmul.f32 %v4941, 1.442695
        %v4994 = vpow.pop %v4993
        %v4995 = vmul.f32 %v4942, 1.442695
        %v4996 = vpow.pop %v4995
        %v4997 = vmul.f32 %v4943, 1.442695
        %v4998 = vpow.pop %v4997
        %v4999 = vmul.f32 %v4944, 1.442695
        %v5000 = vpow.pop %v4999
        %v5001 = vmul.f32 %v4945, 1.442695
        %v5002 = vpow.pop %v5001
        %v5003 = vmul.f32 %v4946, 1.442695
        %v5004 = vpow.pop %v5003
        %v5005 = vmul.f32 %v4947, 1.442695
        %v5006 = vpow.pop %v5005
        %v5007 = vmul.f32 %v4948, 1.442695
        %v5008 = vpow.pop %v5007
        %v5009 = vmul.f32 %v4949, 1.442695
        %v5010 = vpow.pop %v5009
        %v5011 = vmul.f32 %v4950, 1.442695
        %v5012 = vpow.pop %v5011
        %v5013 = vmul.f32 %v4951, 1.442695
        %v5014 = vpow.pop %v5013
        %v5015 = vmul.f32 %v4952, 1.442695
        %v5016 = vpow.pop %v5015
        %v5017 = vadd.f32 %v4954, %v4956
        %5018 = vadd.xlane.f32.xlu0 %v5017
        %v5019 = vpop.xlane.xlu0 %5018
        %v5020 = vadd.f32 %v4958, %v4960
        %5021 = vadd.xlane.f32.xlu0 %v5020
        %v5022 = vpop.xlane.xlu0 %5021
        %v5023 = vadd.f32 %v4962, %v4964
        %5024 = vadd.xlane.f32.xlu0 %v5023
        %v5025 = vpop.xlane.xlu0 %5024
        %v5026 = vadd.f32 %v4966, %v4968
        %5027 = vadd.xlane.f32.xlu0 %v5026
        %v5028 = vpop.xlane.xlu0 %5027
        %v5029 = vadd.f32 %v4970, %v4972
        %5030 = vadd.xlane.f32.xlu0 %v5029
        %v5031 = vpop.xlane.xlu0 %5030
        %v5032 = vadd.f32 %v4974, %v4976
        %5033 = vadd.xlane.f32.xlu0 %v5032
        %v5034 = vpop.xlane.xlu0 %5033
        %v5035 = vadd.f32 %v4978, %v4980
        %5036 = vadd.xlane.f32.xlu0 %v5035
        %v5037 = vpop.xlane.xlu0 %5036
        %v5038 = vadd.f32 %v4982, %v4984
        %5039 = vadd.xlane.f32.xlu0 %v5038
        %v5040 = vpop.xlane.xlu0 %5039
        %v5041 = vadd.f32 %v4986, %v4988
        %5042 = vadd.xlane.f32.xlu0 %v5041
        %v5043 = vpop.xlane.xlu0 %5042
        %v5044 = vadd.f32 %v4990, %v4992
        %5045 = vadd.xlane.f32.xlu0 %v5044
        %v5046 = vpop.xlane.xlu0 %5045
        %v5047 = vadd.f32 %v4994, %v4996
        %5048 = vadd.xlane.f32.xlu0 %v5047
        %v5049 = vpop.xlane.xlu0 %5048
        %v5050 = vadd.f32 %v4998, %v5000
        %5051 = vadd.xlane.f32.xlu0 %v5050
        %v5052 = vpop.xlane.xlu0 %5051
        %v5053 = vadd.f32 %v5002, %v5004
        %5054 = vadd.xlane.f32.xlu0 %v5053
        %v5055 = vpop.xlane.xlu0 %5054
        %v5056 = vadd.f32 %v5006, %v5008
        %5057 = vadd.xlane.f32.xlu0 %v5056
        %v5058 = vpop.xlane.xlu0 %5057
        %v5059 = vadd.f32 %v5010, %v5012
        %5060 = vadd.xlane.f32.xlu0 %v5059
        %v5061 = vpop.xlane.xlu0 %5060
        %v5062 = vadd.f32 %v5014, %v5016
        %5063 = vadd.xlane.f32.xlu0 %v5062
        %v5064 = vpop.xlane.xlu0 %5063
        %v5065 = vlog2.pop %v5019
        %v5066 = vmul.f32 %v5065, 0.6931472
        %v5067 = vlog2.pop %v5022
        %v5068 = vmul.f32 %v5067, 0.6931472
        %v5069 = vlog2.pop %v5025
        %v5070 = vmul.f32 %v5069, 0.6931472
        %v5071 = vlog2.pop %v5028
        %v5072 = vmul.f32 %v5071, 0.6931472
        %v5073 = vlog2.pop %v5031
        %v5074 = vmul.f32 %v5073, 0.6931472
        %v5075 = vlog2.pop %v5034
        %v5076 = vmul.f32 %v5075, 0.6931472
        %v5077 = vlog2.pop %v5037
        %v5078 = vmul.f32 %v5077, 0.6931472
        %v5079 = vlog2.pop %v5040
        %v5080 = vmul.f32 %v5079, 0.6931472
        %v5081 = vlog2.pop %v5043
        %v5082 = vmul.f32 %v5081, 0.6931472
        %v5083 = vlog2.pop %v5046
        %v5084 = vmul.f32 %v5083, 0.6931472
        %v5085 = vlog2.pop %v5049
        %v5086 = vmul.f32 %v5085, 0.6931472
        %v5087 = vlog2.pop %v5052
        %v5088 = vmul.f32 %v5087, 0.6931472
        %v5089 = vlog2.pop %v5055
        %v5090 = vmul.f32 %v5089, 0.6931472
        %v5091 = vlog2.pop %v5058
        %v5092 = vmul.f32 %v5091, 0.6931472
        %v5093 = vlog2.pop %v5061
        %v5094 = vmul.f32 %v5093, 0.6931472
        %v5095 = vlog2.pop %v5064
        %v5096 = vmul.f32 %v5095, 0.6931472
        %v5097 = vadd.f32 %v4875, %v5066
        %v5098 = vadd.f32 %v4878, %v5068
        %v5099 = vadd.f32 %v4881, %v5070
        %v5100 = vadd.f32 %v4884, %v5072
        %v5101 = vadd.f32 %v4887, %v5074
        %v5102 = vadd.f32 %v4890, %v5076
        %v5103 = vadd.f32 %v4893, %v5078
        %v5104 = vadd.f32 %v4896, %v5080
        %v5105 = vadd.f32 %v4899, %v5082
        %v5106 = vadd.f32 %v4902, %v5084
        %v5107 = vadd.f32 %v4905, %v5086
        %v5108 = vadd.f32 %v4908, %v5088
        %v5109 = vadd.f32 %v4911, %v5090
        %v5110 = vadd.f32 %v4914, %v5092
        %v5111 = vadd.f32 %v4917, %v5094
        %v5112 = vadd.f32 %v4920, %v5096
        %v5113 = vsub.f32 %v5097, %v2811
        %v5114 = vsub.f32 %v5098, %v2813
        %v5115 = vsub.f32 %v5099, %v2815
        %v5116 = vsub.f32 %v5100, %v2817
        %v5117 = vsub.f32 %v5101, %v2819
        %v5118 = vsub.f32 %v5102, %v2821
        %v5119 = vsub.f32 %v5103, %v2823
        %v5120 = vsub.f32 %v5104, %v2825
        %v5121 = vsub.f32 %v5105, %v2827
        %v5122 = vsub.f32 %v5106, %v2829
        %v5123 = vsub.f32 %v5107, %v2831
        %v5124 = vsub.f32 %v5108, %v2833
        %v5125 = vsub.f32 %v5109, %v2835
        %v5126 = vsub.f32 %v5110, %v2837
        %v5127 = vsub.f32 %v5111, %v2839
        %v5128 = vsub.f32 %v5112, %v2841
        %v5161 = vunpack.c.l.b16 %v2938
        %v5162 = vunpack.c.l.b16 %v2939
        %v5163 = vunpack.c.l.b16 %v2940
        %v5164 = vunpack.c.l.b16 %v2941
        %v5165 = vunpack.c.l.b16 %v2942
        %v5166 = vunpack.c.l.b16 %v2943
        %v5167 = vunpack.c.l.b16 %v2944
        %v5168 = vunpack.c.l.b16 %v2945
        %v5169 = vunpack.c.l.b16 %v2946
        %v5170 = vunpack.c.l.b16 %v2947
        %v5171 = vunpack.c.l.b16 %v2948
        %v5172 = vunpack.c.l.b16 %v2949
        %v5173 = vunpack.c.l.b16 %v2950
        %v5174 = vunpack.c.l.b16 %v2951
        %v5175 = vunpack.c.l.b16 %v2952
        %v5176 = vunpack.c.l.b16 %v2953
        %v5177 = vunpack.c.l.b16 %v2954
        %v5178 = vunpack.c.l.b16 %v2955
        %v5179 = vunpack.c.l.b16 %v2956
        %v5180 = vunpack.c.l.b16 %v2957
        %v5181 = vunpack.c.l.b16 %v2958
        %v5182 = vunpack.c.l.b16 %v2959
        %v5183 = vunpack.c.l.b16 %v2960
        %v5184 = vunpack.c.l.b16 %v2961
        %v5185 = vunpack.c.l.b16 %v2962
        %v5186 = vunpack.c.l.b16 %v2963
        %v5187 = vunpack.c.l.b16 %v2964
        %v5188 = vunpack.c.l.b16 %v2965
        %v5189 = vunpack.c.l.b16 %v2966
        %v5190 = vunpack.c.l.b16 %v2967
        %v5191 = vunpack.c.l.b16 %v2968
        %v5192 = vunpack.c.l.b16 %v2969
        %v5193 = vpack.c.b16 %v5162, %v5161
        %v5194 = vpack.c.b16 %v5164, %v5163
        %v5195 = vpack.c.b16 %v5166, %v5165
        %v5196 = vpack.c.b16 %v5168, %v5167
        %v5197 = vpack.c.b16 %v5170, %v5169
        %v5198 = vpack.c.b16 %v5172, %v5171
        %v5199 = vpack.c.b16 %v5174, %v5173
        %v5200 = vpack.c.b16 %v5176, %v5175
        %v5201 = vpack.c.b16 %v5178, %v5177
        %v5202 = vpack.c.b16 %v5180, %v5179
        %v5203 = vpack.c.b16 %v5182, %v5181
        %v5204 = vpack.c.b16 %v5184, %v5183
        %v5205 = vpack.c.b16 %v5186, %v5185
        %v5206 = vpack.c.b16 %v5188, %v5187
        %v5207 = vpack.c.b16 %v5190, %v5189
        %v5208 = vpack.c.b16 %v5192, %v5191
        %5225 = vmatpush.bf16.xpose.msra.mxu0 %v5200
        %5226 = vmatpush.bf16.xpose.msra.mxu0 %v5199
        %5227 = vmatpush.bf16.xpose.msra.mxu0 %v5198
        %5228 = vmatpush.bf16.xpose.msra.mxu0 %v5197
        %5229 = vmatpush.bf16.xpose.msra.mxu0 %v5196
        %5230 = vmatpush.bf16.xpose.msra.mxu0 %v5195
        %5231 = vmatpush.bf16.xpose.msra.mxu0 %v5194
        %5232 = vmatpush.bf16.xpose.msra.mxu0 %v5193
        %5233 = vmatmul.bf16.gmra.mxu0 %v2866
        %v5234 = vpop.f32.mrf.mxu0
        %v5235 = vadd.f32 0.0, %v5234
        %v5236 = vpop.f32.mrf.mxu0
        %v5237 = vadd.f32 0.0, %v5236
        %5238 = vmatmul.bf16.gmra.mxu0 %v2867
        %v5239 = vpop.f32.mrf.mxu0
        %v5240 = vadd.f32 0.0, %v5239
        %v5241 = vpop.f32.mrf.mxu0
        %v5242 = vadd.f32 0.0, %v5241
        %5243 = vmatmul.bf16.gmra.mxu0 %v2868
        %v5244 = vpop.f32.mrf.mxu0
        %v5245 = vadd.f32 0.0, %v5244
        %v5246 = vpop.f32.mrf.mxu0
        %v5247 = vadd.f32 0.0, %v5246
        %5248 = vmatmul.bf16.gmra.mxu0 %v2869
        %v5249 = vpop.f32.mrf.mxu0
        %v5250 = vadd.f32 0.0, %v5249
        %v5251 = vpop.f32.mrf.mxu0
        %v5252 = vadd.f32 0.0, %v5251
        %5253 = vmatmul.bf16.gmra.mxu0 %v2870
        %v5254 = vpop.f32.mrf.mxu0
        %v5255 = vadd.f32 0.0, %v5254
        %v5256 = vpop.f32.mrf.mxu0
        %v5257 = vadd.f32 0.0, %v5256
        %5258 = vmatmul.bf16.gmra.mxu0 %v2871
        %v5259 = vpop.f32.mrf.mxu0
        %v5260 = vadd.f32 0.0, %v5259
        %v5261 = vpop.f32.mrf.mxu0
        %v5262 = vadd.f32 0.0, %v5261
        %5263 = vmatmul.bf16.gmra.mxu0 %v2872
        %v5264 = vpop.f32.mrf.mxu0
        %v5265 = vadd.f32 0.0, %v5264
        %v5266 = vpop.f32.mrf.mxu0
        %v5267 = vadd.f32 0.0, %v5266
        %5268 = vmatmul.bf16.gmra.mxu0 %v2873
        %v5269 = vpop.f32.mrf.mxu0
        %v5270 = vadd.f32 0.0, %v5269
        %v5271 = vpop.f32.mrf.mxu0
        %v5272 = vadd.f32 0.0, %v5271
        %5273 = vdwg.mxu0
        %5274 = vmatpush.bf16.xpose.msra.mxu0 %v5208
        %5275 = vmatpush.bf16.xpose.msra.mxu0 %v5207
        %5276 = vmatpush.bf16.xpose.msra.mxu0 %v5206
        %5277 = vmatpush.bf16.xpose.msra.mxu0 %v5205
        %5278 = vmatpush.bf16.xpose.msra.mxu0 %v5204
        %5279 = vmatpush.bf16.xpose.msra.mxu0 %v5203
        %5280 = vmatpush.bf16.xpose.msra.mxu0 %v5202
        %5281 = vmatpush.bf16.xpose.msra.mxu0 %v5201
        %5282 = vmatmul.bf16.gmra.mxu0 %v2866
        %v5283 = vpop.f32.mrf.mxu0
        %v5284 = vadd.f32 0.0, %v5283
        %v5285 = vpop.f32.mrf.mxu0
        %v5286 = vadd.f32 0.0, %v5285
        %5287 = vmatmul.bf16.gmra.mxu0 %v2867
        %v5288 = vpop.f32.mrf.mxu0
        %v5289 = vadd.f32 0.0, %v5288
        %v5290 = vpop.f32.mrf.mxu0
        %v5291 = vadd.f32 0.0, %v5290
        %5292 = vmatmul.bf16.gmra.mxu0 %v2868
        %v5293 = vpop.f32.mrf.mxu0
        %v5294 = vadd.f32 0.0, %v5293
        %v5295 = vpop.f32.mrf.mxu0
        %v5296 = vadd.f32 0.0, %v5295
        %5297 = vmatmul.bf16.gmra.mxu0 %v2869
        %v5298 = vpop.f32.mrf.mxu0
        %v5299 = vadd.f32 0.0, %v5298
        %v5300 = vpop.f32.mrf.mxu0
        %v5301 = vadd.f32 0.0, %v5300
        %5302 = vmatmul.bf16.gmra.mxu0 %v2870
        %v5303 = vpop.f32.mrf.mxu0
        %v5304 = vadd.f32 0.0, %v5303
        %v5305 = vpop.f32.mrf.mxu0
        %v5306 = vadd.f32 0.0, %v5305
        %5307 = vmatmul.bf16.gmra.mxu0 %v2871
        %v5308 = vpop.f32.mrf.mxu0
        %v5309 = vadd.f32 0.0, %v5308
        %v5310 = vpop.f32.mrf.mxu0
        %v5311 = vadd.f32 0.0, %v5310
        %5312 = vmatmul.bf16.gmra.mxu0 %v2872
        %v5313 = vpop.f32.mrf.mxu0
        %v5314 = vadd.f32 0.0, %v5313
        %v5315 = vpop.f32.mrf.mxu0
        %v5316 = vadd.f32 0.0, %v5315
        %5317 = vmatmul.bf16.gmra.mxu0 %v2873
        %v5318 = vpop.f32.mrf.mxu0
        %v5319 = vadd.f32 0.0, %v5318
        %v5320 = vpop.f32.mrf.mxu0
        %v5321 = vadd.f32 0.0, %v5320
        %5322 = vdwg.mxu0
        %v5323 = vmax.f32 %v5235, %v5284
        %5324 = vmax.xlane.f32.xlu0 %v5323
        %v5325 = vpop.xlane.xlu0 %5324
        %v5326 = vmax.f32 %v5237, %v5286
        %5327 = vmax.xlane.f32.xlu0 %v5326
        %v5328 = vpop.xlane.xlu0 %5327
        %v5329 = vmax.f32 %v5240, %v5289
        %5330 = vmax.xlane.f32.xlu0 %v5329
        %v5331 = vpop.xlane.xlu0 %5330
        %v5332 = vmax.f32 %v5242, %v5291
        %5333 = vmax.xlane.f32.xlu0 %v5332
        %v5334 = vpop.xlane.xlu0 %5333
        %v5335 = vmax.f32 %v5245, %v5294
        %5336 = vmax.xlane.f32.xlu0 %v5335
        %v5337 = vpop.xlane.xlu0 %5336
        %v5338 = vmax.f32 %v5247, %v5296
        %5339 = vmax.xlane.f32.xlu0 %v5338
        %v5340 = vpop.xlane.xlu0 %5339
        %v5341 = vmax.f32 %v5250, %v5299
        %5342 = vmax.xlane.f32.xlu0 %v5341
        %v5343 = vpop.xlane.xlu0 %5342
        %v5344 = vmax.f32 %v5252, %v5301
        %5345 = vmax.xlane.f32.xlu0 %v5344
        %v5346 = vpop.xlane.xlu0 %5345
        %v5347 = vmax.f32 %v5255, %v5304
        %5348 = vmax.xlane.f32.xlu0 %v5347
        %v5349 = vpop.xlane.xlu0 %5348
        %v5350 = vmax.f32 %v5257, %v5306
        %5351 = vmax.xlane.f32.xlu0 %v5350
        %v5352 = vpop.xlane.xlu0 %5351
        %v5353 = vmax.f32 %v5260, %v5309
        %5354 = vmax.xlane.f32.xlu0 %v5353
        %v5355 = vpop.xlane.xlu0 %5354
        %v5356 = vmax.f32 %v5262, %v5311
        %5357 = vmax.xlane.f32.xlu0 %v5356
        %v5358 = vpop.xlane.xlu0 %5357
        %v5359 = vmax.f32 %v5265, %v5314
        %5360 = vmax.xlane.f32.xlu0 %v5359
        %v5361 = vpop.xlane.xlu0 %5360
        %v5362 = vmax.f32 %v5267, %v5316
        %5363 = vmax.xlane.f32.xlu0 %v5362
        %v5364 = vpop.xlane.xlu0 %5363
        %v5365 = vmax.f32 %v5270, %v5319
        %5366 = vmax.xlane.f32.xlu0 %v5365
        %v5367 = vpop.xlane.xlu0 %5366
        %v5368 = vmax.f32 %v5272, %v5321
        %5369 = vmax.xlane.f32.xlu0 %v5368
        %v5370 = vpop.xlane.xlu0 %5369
        %v5371 = vsub.f32 %v5235, %v5325
        %v5372 = vsub.f32 %v5284, %v5325
        %v5373 = vsub.f32 %v5237, %v5328
        %v5374 = vsub.f32 %v5286, %v5328
        %v5375 = vsub.f32 %v5240, %v5331
        %v5376 = vsub.f32 %v5289, %v5331
        %v5377 = vsub.f32 %v5242, %v5334
        %v5378 = vsub.f32 %v5291, %v5334
        %v5379 = vsub.f32 %v5245, %v5337
        %v5380 = vsub.f32 %v5294, %v5337
        %v5381 = vsub.f32 %v5247, %v5340
        %v5382 = vsub.f32 %v5296, %v5340
        %v5383 = vsub.f32 %v5250, %v5343
        %v5384 = vsub.f32 %v5299, %v5343
        %v5385 = vsub.f32 %v5252, %v5346
        %v5386 = vsub.f32 %v5301, %v5346
        %v5387 = vsub.f32 %v5255, %v5349
        %v5388 = vsub.f32 %v5304, %v5349
        %v5389 = vsub.f32 %v5257, %v5352
        %v5390 = vsub.f32 %v5306, %v5352
        %v5391 = vsub.f32 %v5260, %v5355
        %v5392 = vsub.f32 %v5309, %v5355
        %v5393 = vsub.f32 %v5262, %v5358
        %v5394 = vsub.f32 %v5311, %v5358
        %v5395 = vsub.f32 %v5265, %v5361
        %v5396 = vsub.f32 %v5314, %v5361
        %v5397 = vsub.f32 %v5267, %v5364
        %v5398 = vsub.f32 %v5316, %v5364
        %v5399 = vsub.f32 %v5270, %v5367
        %v5400 = vsub.f32 %v5319, %v5367
        %v5401 = vsub.f32 %v5272, %v5370
        %v5402 = vsub.f32 %v5321, %v5370
        %v5403 = vmul.f32 %v5371, 1.442695
        %v5404 = vpow.pop %v5403
        %v5405 = vmul.f32 %v5372, 1.442695
        %v5406 = vpow.pop %v5405
        %v5407 = vmul.f32 %v5373, 1.442695
        %v5408 = vpow.pop %v5407
        %v5409 = vmul.f32 %v5374, 1.442695
        %v5410 = vpow.pop %v5409
        %v5411 = vmul.f32 %v5375, 1.442695
        %v5412 = vpow.pop %v5411
        %v5413 = vmul.f32 %v5376, 1.442695
        %v5414 = vpow.pop %v5413
        %v5415 = vmul.f32 %v5377, 1.442695
        %v5416 = vpow.pop %v5415
        %v5417 = vmul.f32 %v5378, 1.442695
        %v5418 = vpow.pop %v5417
        %v5419 = vmul.f32 %v5379, 1.442695
        %v5420 = vpow.pop %v5419
        %v5421 = vmul.f32 %v5380, 1.442695
        %v5422 = vpow.pop %v5421
        %v5423 = vmul.f32 %v5381, 1.442695
        %v5424 = vpow.pop %v5423
        %v5425 = vmul.f32 %v5382, 1.442695
        %v5426 = vpow.pop %v5425
        %v5427 = vmul.f32 %v5383, 1.442695
        %v5428 = vpow.pop %v5427
        %v5429 = vmul.f32 %v5384, 1.442695
        %v5430 = vpow.pop %v5429
        %v5431 = vmul.f32 %v5385, 1.442695
        %v5432 = vpow.pop %v5431
        %v5433 = vmul.f32 %v5386, 1.442695
        %v5434 = vpow.pop %v5433
        %v5435 = vmul.f32 %v5387, 1.442695
        %v5436 = vpow.pop %v5435
        %v5437 = vmul.f32 %v5388, 1.442695
        %v5438 = vpow.pop %v5437
        %v5439 = vmul.f32 %v5389, 1.442695
        %v5440 = vpow.pop %v5439
        %v5441 = vmul.f32 %v5390, 1.442695
        %v5442 = vpow.pop %v5441
        %v5443 = vmul.f32 %v5391, 1.442695
        %v5444 = vpow.pop %v5443
        %v5445 = vmul.f32 %v5392, 1.442695
        %v5446 = vpow.pop %v5445
        %v5447 = vmul.f32 %v5393, 1.442695
        %v5448 = vpow.pop %v5447
        %v5449 = vmul.f32 %v5394, 1.442695
        %v5450 = vpow.pop %v5449
        %v5451 = vmul.f32 %v5395, 1.442695
        %v5452 = vpow.pop %v5451
        %v5453 = vmul.f32 %v5396, 1.442695
        %v5454 = vpow.pop %v5453
        %v5455 = vmul.f32 %v5397, 1.442695
        %v5456 = vpow.pop %v5455
        %v5457 = vmul.f32 %v5398, 1.442695
        %v5458 = vpow.pop %v5457
        %v5459 = vmul.f32 %v5399, 1.442695
        %v5460 = vpow.pop %v5459
        %v5461 = vmul.f32 %v5400, 1.442695
        %v5462 = vpow.pop %v5461
        %v5463 = vmul.f32 %v5401, 1.442695
        %v5464 = vpow.pop %v5463
        %v5465 = vmul.f32 %v5402, 1.442695
        %v5466 = vpow.pop %v5465
        %v5467 = vadd.f32 %v5404, %v5406
        %5468 = vadd.xlane.f32.xlu0 %v5467
        %v5469 = vpop.xlane.xlu0 %5468
        %v5470 = vadd.f32 %v5408, %v5410
        %5471 = vadd.xlane.f32.xlu0 %v5470
        %v5472 = vpop.xlane.xlu0 %5471
        %v5473 = vadd.f32 %v5412, %v5414
        %5474 = vadd.xlane.f32.xlu0 %v5473
        %v5475 = vpop.xlane.xlu0 %5474
        %v5476 = vadd.f32 %v5416, %v5418
        %5477 = vadd.xlane.f32.xlu0 %v5476
        %v5478 = vpop.xlane.xlu0 %5477
        %v5479 = vadd.f32 %v5420, %v5422
        %5480 = vadd.xlane.f32.xlu0 %v5479
        %v5481 = vpop.xlane.xlu0 %5480
        %v5482 = vadd.f32 %v5424, %v5426
        %5483 = vadd.xlane.f32.xlu0 %v5482
        %v5484 = vpop.xlane.xlu0 %5483
        %v5485 = vadd.f32 %v5428, %v5430
        %5486 = vadd.xlane.f32.xlu0 %v5485
        %v5487 = vpop.xlane.xlu0 %5486
        %v5488 = vadd.f32 %v5432, %v5434
        %5489 = vadd.xlane.f32.xlu0 %v5488
        %v5490 = vpop.xlane.xlu0 %5489
        %v5491 = vadd.f32 %v5436, %v5438
        %5492 = vadd.xlane.f32.xlu0 %v5491
        %v5493 = vpop.xlane.xlu0 %5492
        %v5494 = vadd.f32 %v5440, %v5442
        %5495 = vadd.xlane.f32.xlu0 %v5494
        %v5496 = vpop.xlane.xlu0 %5495
        %v5497 = vadd.f32 %v5444, %v5446
        %5498 = vadd.xlane.f32.xlu0 %v5497
        %v5499 = vpop.xlane.xlu0 %5498
        %v5500 = vadd.f32 %v5448, %v5450
        %5501 = vadd.xlane.f32.xlu0 %v5500
        %v5502 = vpop.xlane.xlu0 %5501
        %v5503 = vadd.f32 %v5452, %v5454
        %5504 = vadd.xlane.f32.xlu0 %v5503
        %v5505 = vpop.xlane.xlu0 %5504
        %v5506 = vadd.f32 %v5456, %v5458
        %5507 = vadd.xlane.f32.xlu0 %v5506
        %v5508 = vpop.xlane.xlu0 %5507
        %v5509 = vadd.f32 %v5460, %v5462
        %5510 = vadd.xlane.f32.xlu0 %v5509
        %v5511 = vpop.xlane.xlu0 %5510
        %v5512 = vadd.f32 %v5464, %v5466
        %5513 = vadd.xlane.f32.xlu0 %v5512
        %v5514 = vpop.xlane.xlu0 %5513
        %v5515 = vlog2.pop %v5469
        %v5516 = vmul.f32 %v5515, 0.6931472
        %v5517 = vlog2.pop %v5472
        %v5518 = vmul.f32 %v5517, 0.6931472
        %v5519 = vlog2.pop %v5475
        %v5520 = vmul.f32 %v5519, 0.6931472
        %v5521 = vlog2.pop %v5478
        %v5522 = vmul.f32 %v5521, 0.6931472
        %v5523 = vlog2.pop %v5481
        %v5524 = vmul.f32 %v5523, 0.6931472
        %v5525 = vlog2.pop %v5484
        %v5526 = vmul.f32 %v5525, 0.6931472
        %v5527 = vlog2.pop %v5487
        %v5528 = vmul.f32 %v5527, 0.6931472
        %v5529 = vlog2.pop %v5490
        %v5530 = vmul.f32 %v5529, 0.6931472
        %v5531 = vlog2.pop %v5493
        %v5532 = vmul.f32 %v5531, 0.6931472
        %v5533 = vlog2.pop %v5496
        %v5534 = vmul.f32 %v5533, 0.6931472
        %v5535 = vlog2.pop %v5499
        %v5536 = vmul.f32 %v5535, 0.6931472
        %v5537 = vlog2.pop %v5502
        %v5538 = vmul.f32 %v5537, 0.6931472
        %v5539 = vlog2.pop %v5505
        %v5540 = vmul.f32 %v5539, 0.6931472
        %v5541 = vlog2.pop %v5508
        %v5542 = vmul.f32 %v5541, 0.6931472
        %v5543 = vlog2.pop %v5511
        %v5544 = vmul.f32 %v5543, 0.6931472
        %v5545 = vlog2.pop %v5514
        %v5546 = vmul.f32 %v5545, 0.6931472
        %v5547 = vadd.f32 %v5325, %v5516
        %v5548 = vadd.f32 %v5328, %v5518
        %v5549 = vadd.f32 %v5331, %v5520
        %v5550 = vadd.f32 %v5334, %v5522
        %v5551 = vadd.f32 %v5337, %v5524
        %v5552 = vadd.f32 %v5340, %v5526
        %v5553 = vadd.f32 %v5343, %v5528
        %v5554 = vadd.f32 %v5346, %v5530
        %v5555 = vadd.f32 %v5349, %v5532
        %v5556 = vadd.f32 %v5352, %v5534
        %v5557 = vadd.f32 %v5355, %v5536
        %v5558 = vadd.f32 %v5358, %v5538
        %v5559 = vadd.f32 %v5361, %v5540
        %v5560 = vadd.f32 %v5364, %v5542
        %v5561 = vadd.f32 %v5367, %v5544
        %v5562 = vadd.f32 %v5370, %v5546
        %v5563 = vsub.f32 %v5547, %v2811
        %v5564 = vsub.f32 %v5548, %v2813
        %v5565 = vsub.f32 %v5549, %v2815
        %v5566 = vsub.f32 %v5550, %v2817
        %v5567 = vsub.f32 %v5551, %v2819
        %v5568 = vsub.f32 %v5552, %v2821
        %v5569 = vsub.f32 %v5553, %v2823
        %v5570 = vsub.f32 %v5554, %v2825
        %v5571 = vsub.f32 %v5555, %v2827
        %v5572 = vsub.f32 %v5556, %v2829
        %v5573 = vsub.f32 %v5557, %v2831
        %v5574 = vsub.f32 %v5558, %v2833
        %v5575 = vsub.f32 %v5559, %v2835
        %v5576 = vsub.f32 %v5560, %v2837
        %v5577 = vsub.f32 %v5561, %v2839
        %v5578 = vsub.f32 %v5562, %v2841
        %s5579 = sld [smem:[#allocation6]]
        %v5580 = vadd.f32 %v3955, %v4663
        %v5581 = vadd.f32 %v3956, %v4664
        %v5582 = vadd.f32 %v3957, %v4665
        %v5583 = vadd.f32 %v3958, %v4666
        %v5584 = vadd.f32 %v3959, %v4667
        %v5585 = vadd.f32 %v3960, %v4668
        %v5586 = vadd.f32 %v3961, %v4669
        %v5587 = vadd.f32 %v3962, %v4670
        %v5588 = vadd.f32 %v3963, %v4671
        %v5589 = vadd.f32 %v3964, %v4672
        %v5590 = vadd.f32 %v3965, %v4673
        %v5591 = vadd.f32 %v3966, %v4674
        %v5592 = vadd.f32 %v3967, %v4675
        %v5593 = vadd.f32 %v3968, %v4676
        %v5594 = vadd.f32 %v3969, %v4677
        %v5595 = vadd.f32 %v3970, %v4678
        %vm5596 = vcmask 7168
        %v5597 = vsel %vm5596, %v5580, 0.0
        %v5598 = vsel %vm5596, %v5581, 0.0
        %v5599 = vadd.f32 %v5597, %v5598
        %v5600 = vsel %vm5596, %v5582, 0.0
        %v5601 = vadd.f32 %v5599, %v5600
        %v5602 = vsel %vm5596, %v5583, 0.0
        %v5603 = vadd.f32 %v5601, %v5602
        %v5604 = vsel %vm5596, %v5584, 0.0
        %v5605 = vadd.f32 %v5603, %v5604
        %v5606 = vsel %vm5596, %v5585, 0.0
        %v5607 = vadd.f32 %v5605, %v5606
        %v5608 = vsel %vm5596, %v5586, 0.0
        %v5609 = vadd.f32 %v5607, %v5608
        %v5610 = vsel %vm5596, %v5587, 0.0
        %v5611 = vadd.f32 %v5609, %v5610
        %v5612 = vsel %vm5596, %v5588, 0.0
        %v5613 = vadd.f32 %v5611, %v5612
        %v5614 = vsel %vm5596, %v5589, 0.0
        %v5615 = vadd.f32 %v5613, %v5614
        %v5616 = vsel %vm5596, %v5590, 0.0
        %v5617 = vadd.f32 %v5615, %v5616
        %v5618 = vsel %vm5596, %v5591, 0.0
        %v5619 = vadd.f32 %v5617, %v5618
        %v5620 = vsel %vm5596, %v5592, 0.0
        %v5621 = vadd.f32 %v5619, %v5620
        %v5622 = vsel %vm5596, %v5593, 0.0
        %v5623 = vadd.f32 %v5621, %v5622
        %v5624 = vsel %vm5596, %v5594, 0.0
        %v5625 = vadd.f32 %v5623, %v5624
        %v5626 = vsel %vm5596, %v5595, 0.0
        %v5627 = vadd.f32 %v5625, %v5626
        %5628 = vadd.xlane.f32.xlu0 %v5627
        %v5629 = vpop.xlane.xlu0 %5628
        %v5630 = vrot.slane %v5629, 4
        %v5631 = vadd.f32 %v5629, %v5630
        %v5632 = vrot.slane %v5631, 2
        %v5633 = vadd.f32 %v5631, %v5632
        %v5634 = vrot.slane %v5633, 1
        %v5635 = vadd.f32 %v5633, %v5634
        %s5636 = vtos %v5635
        %s5637 = sadd.f32 %s5579, %s5636
        %s5638 = scalar_lea.smem [#allocation6], 0
        %5639 = sst [smem:[%s5638]] %s5637
        %s5640 = sld [smem:[#allocation6 + $0x1]]
        %v5641 = vadd.f32 %v5113, %v5563
        %v5642 = vadd.f32 %v5114, %v5564
        %v5643 = vadd.f32 %v5115, %v5565
        %v5644 = vadd.f32 %v5116, %v5566
        %v5645 = vadd.f32 %v5117, %v5567
        %v5646 = vadd.f32 %v5118, %v5568
        %v5647 = vadd.f32 %v5119, %v5569
        %v5648 = vadd.f32 %v5120, %v5570
        %v5649 = vadd.f32 %v5121, %v5571
        %v5650 = vadd.f32 %v5122, %v5572
        %v5651 = vadd.f32 %v5123, %v5573
        %v5652 = vadd.f32 %v5124, %v5574
        %v5653 = vadd.f32 %v5125, %v5575
        %v5654 = vadd.f32 %v5126, %v5576
        %v5655 = vadd.f32 %v5127, %v5577
        %v5656 = vadd.f32 %v5128, %v5578
        %v5657 = vsel %vm5596, %v5641, 0.0
        %v5658 = vsel %vm5596, %v5642, 0.0
        %v5659 = vadd.f32 %v5657, %v5658
        %v5660 = vsel %vm5596, %v5643, 0.0
        %v5661 = vadd.f32 %v5659, %v5660
        %v5662 = vsel %vm5596, %v5644, 0.0
        %v5663 = vadd.f32 %v5661, %v5662
        %v5664 = vsel %vm5596, %v5645, 0.0
        %v5665 = vadd.f32 %v5663, %v5664
        %v5666 = vsel %vm5596, %v5646, 0.0
        %v5667 = vadd.f32 %v5665, %v5666
        %v5668 = vsel %vm5596, %v5647, 0.0
        %v5669 = vadd.f32 %v5667, %v5668
        %v5670 = vsel %vm5596, %v5648, 0.0
        %v5671 = vadd.f32 %v5669, %v5670
        %v5672 = vsel %vm5596, %v5649, 0.0
        %v5673 = vadd.f32 %v5671, %v5672
        %v5674 = vsel %vm5596, %v5650, 0.0
        %v5675 = vadd.f32 %v5673, %v5674
        %v5676 = vsel %vm5596, %v5651, 0.0
        %v5677 = vadd.f32 %v5675, %v5676
        %v5678 = vsel %vm5596, %v5652, 0.0
        %v5679 = vadd.f32 %v5677, %v5678
        %v5680 = vsel %vm5596, %v5653, 0.0
        %v5681 = vadd.f32 %v5679, %v5680
        %v5682 = vsel %vm5596, %v5654, 0.0
        %v5683 = vadd.f32 %v5681, %v5682
        %v5684 = vsel %vm5596, %v5655, 0.0
        %v5685 = vadd.f32 %v5683, %v5684
        %v5686 = vsel %vm5596, %v5656, 0.0
        %v5687 = vadd.f32 %v5685, %v5686
        %5688 = vadd.xlane.f32.xlu0 %v5687
        %v5689 = vpop.xlane.xlu0 %5688
        %v5690 = vrot.slane %v5689, 4
        %v5691 = vadd.f32 %v5689, %v5690
        %v5692 = vrot.slane %v5691, 2
        %v5693 = vadd.f32 %v5691, %v5692
        %v5694 = vrot.slane %v5693, 1
        %v5695 = vadd.f32 %v5693, %v5694
        %s5696 = vtos %v5695
        %s5697 = sadd.f32 %s5640, %s5696
        %s5698 = scalar_lea.smem [#allocation6], 1
        %5699 = sst [smem:[%s5698]] %s5697
        %p5700 = scmp.eq.s32.totalorder %s19, 1
        // Predicated region
        $region57: #{pallas_slip_loss.1} parent=35 // pred_check
          %p5701 = pneg %p5700
        $region58: #{pallas_slip_loss.1} parent=35 // pred_check_branch
          %5703 = sbr.rel (%p5701) target = $region60
        $region59: #{pallas_slip_loss.1} parent=35 // pred_region
          %s5704 = sld [smem:[#allocation6]]
          %s5705 = smul.f32 %s5704, 0.001953125
          %s5706 = sld [smem:[#allocation6 + $0x1]]
          %s5707 = smul.f32 %s5706, 0.001953125
          %s5708 = smul.f32 %s5705, %s5707
          %s5709 = scalar_lea.smem [#allocation15], 0
          %5710 = sst [smem:[%s5709]] %s5708
        $region60: #{pallas_slip_loss.1} parent=35 // pred_fallthru
          _
        // Predicated region
        $region61: #{pallas_slip_loss.1} parent=35 // pred_check
          %p5711 = pneg %p116
        $region62: #{pallas_slip_loss.1} parent=35 // pred_check_branch
          %5713 = sbr.rel (%p5711) target = $region64
        $region63: #{pallas_slip_loss.1} parent=35 // pred_region
          %5715 = vsyncadd [#allocation9], 0
          %s5717 = sshll.u32 %s4, 4
          %s5718 = int_to_ptr.hbm [resolvable:$true] %s5717
          %5720 = dma.smem_to_hbm [#allocation15], 16, %s5718, [#allocation9]
        $region64: #{pallas_slip_loss.1} parent=35 // pred_fallthru
          _
        // Predicated region
        $region65: #{pallas_slip_loss.1} parent=35 // pred_check
          %p5721 = pneg %p116
        $region66: #{pallas_slip_loss.1} parent=35 // pred_check_branch
          %5723 = sbr.rel (%p5721) target = $region68
        $region67: #{pallas_slip_loss.1} parent=35 // pred_region
          %5725 = dma.done [#allocation9], 16
        $region68: #{pallas_slip_loss.1} parent=35 // pred_fallthru
          _
        %5726 = sfence
      $region36: #{pallas_slip_loss.1} parent=5 // pred_fallthru
        _
      %p5727 = scmp.le.s32.totalorder 2, %s14
      // Predicated region
      $region69: #{pallas_slip_loss.1} parent=5 // pred_check
        %p5728 = pneg %p5727
      $region70: #{pallas_slip_loss.1} parent=5 // pred_check_branch
        %5730 = sbr.rel (%p5728) target = $region72
      $region71: #{pallas_slip_loss.1} parent=5 // pred_region
        %s5731 = ssub.s32 %s14, 2
      $region72: #{pallas_slip_loss.1} parent=5 // pred_fallthru
        _
    $region6: #{pallas_slip_loss.1} parent=1 // loop_footer
      %s18 = sadd.s32 1, %s14
    $region7: #{pallas_slip_loss.1} parent=1 // loop_footer_branch
      %13 = sbr.rel target = $region3
    $region8: #{pallas_slip_loss.1} parent=1 // loop_exit
      _
    %5732 = vsyncpa [#allocation8], 1
    %s5733 = scalar_lea.sflag [#allocation8], 1
    %5734 = vsyncpa %s5733, 1
    %5735 = vsyncpa [#allocation11], 1
    %5736 = vsyncpa [#allocation14], 1
    %5737 = vsyncpa [#allocation9], 1
    %s5738 = scalar_lea.sflag [#allocation9], 1
    %5739 = vsyncpa %s5738, 1

</llo_original>
